<compile_context>
chip_gen: v5e
topology: v5e:2x2
jax: 0.10.0
libtpu: 0.0.40
codegen_flags: <defaults>
</compile_context>

<pallas_src>
import functools

import numpy as np
import jax
import jax.numpy as jnp
from jax import lax
from jax.experimental import pallas as pl
from jax.experimental.pallas import tpu as pltpu

BN_EPS = 1e-5
GEM_EPS = 1e-6


# ----------------------------------------------------------------------------
# Fused Pallas kernel: one batch tile per grid step, everything in VMEM/vregs.
# ----------------------------------------------------------------------------
def _cbam_block_kernel(x_ref, w1_ref, t1_ref, w2_ref, t2_ref, wse1_ref, wse2_ref,
                       wsg_ref, scal_ref, pool_ref, o_ref, slab1_ref, slab2_ref,
                       *, Bt, L, K, KSG, p_stoch, has_projection, gem_eps):
    cin = x_ref.shape[1]
    cout = o_ref.shape[1]
    Lo = o_ref.shape[2]
    N = Bt * L
    pad = K // 2
    padg = (KSG - 1) // 2
    f32 = jnp.float32

    def _sigmoid(v):
        # Exact form (no approx reciprocal): exp(-v) -> inf gives exactly 0.
        return 1.0 / (1.0 + jnp.exp(-v))

    def _silu(v):
        return v * _sigmoid(v)

    # Per-column index within its batch segment / segment id (constants + iota).
    col = lax.broadcasted_iota(jnp.int32, (1, L), 1)
    if Bt > 1:
        col_in_seg = jnp.concatenate([col] * Bt, axis=1)
        seg_id = jnp.concatenate(
            [jnp.full((1, L), b, jnp.int32) for b in range(Bt)], axis=1)
    else:
        col_in_seg = col
        seg_id = None

    def shifted(v, d):
        """out[:, i] = v[:, i + d] if the source stays inside the same batch
        segment (zero-padding conv semantics), else 0.  The lane shift rides the
        XLU (pltpu.roll), the boundary mask rides the VPU, and all resulting
        stores are full-width lane-aligned (no masked vst from halo offsets)."""
        if d == 0:
            return v
        mask = (col_in_seg + d >= 0) & (col_in_seg + d < L)
        return jnp.where(mask, pltpu.roll(v, (-d) % N, 1), 0.0)

    # ---- stack the Bt batch elements along lanes: xs = (Cin, Bt*L) ------------
    if Bt > 1:
        xs = jnp.concatenate([x_ref[b] for b in range(Bt)], axis=1)
    else:
        xs = x_ref[0]

    # ---- conv1 (+ projection-shortcut conv) as ONE bf16 im2col matmul ---------
    for k in range(K):
        slab1_ref[k * cin:(k + 1) * cin, :] = (
            shifted(xs, k - pad).astype(slab1_ref.dtype))
    h = jnp.dot(w1_ref[...], slab1_ref[...],
                preferred_element_type=f32) + t1_ref[...]
    if has_projection:
        h1 = _silu(h[:cout, :])                  # conv1 + BN1 + SiLU
        sc = h[cout:, :]                         # shortcut conv + BN (pre-GeM)
    else:
        h1 = _silu(h)
        sc = xs                                  # identity shortcut (aligned, f32)

    # ---- conv2 + BN2 -----------------------------------------------------------
    for k in range(K):
        slab2_ref[k * cout:(k + 1) * cout, :] = (
            shifted(h1, k - pad).astype(slab2_ref.dtype))
    h2 = jnp.dot(w2_ref[...], slab2_ref[...],
                 preferred_element_type=f32) + t2_ref[...]

    # ---- SE channel attention (per batch element) ------------------------------
    means = jnp.concatenate(
        [jnp.mean(h2[:, b * L:(b + 1) * L], axis=1, keepdims=True)
         for b in range(Bt)], axis=1)                                    # (Cout, Bt)
    z = _silu(jnp.dot(wse1_ref[...], means, preferred_element_type=f32))     # (Cr, Bt)
    gate = _sigmoid(jnp.dot(wse2_ref[...], z, preferred_element_type=f32))   # (Cout, Bt)
    if Bt > 1:
        gate_cols = gate[:, 0:1]
        for b in range(1, Bt):
            gate_cols = jnp.where(seg_id == b, gate[:, b:b + 1], gate_cols)
    else:
        gate_cols = gate
    h2 = h2 * gate_cols

    # ---- CBAM spatial gate: 2*KSG taps as lane-rolls + VPU MACs ----------------
    cp_max = jnp.max(h2, axis=0, keepdims=True)      # (1, N)
    cp_mean = jnp.mean(h2, axis=0, keepdims=True)    # (1, N)
    g = jnp.zeros((1, N), f32)
    for k in range(KSG):
        d = k - padg
        g = g + wsg_ref[k] * shifted(cp_max, d) + wsg_ref[KSG + k] * shifted(cp_mean, d)
    g = g + scal_ref[2]                              # folded conv bias + BN shift
    h3 = h2 * _sigmoid(_silu(g))

    # ---- GeM (residual + shortcut fused in ONE matmul), combine, final SiLU ----
    if has_projection:
        p_res = scal_ref[0]
        p_sc = scal_ref[1]
        rows = lax.broadcasted_iota(jnp.int32, (2 * cout, 1), 0)
        p_vec = jnp.where(rows < cout, p_res, p_sc)
        stacked = jnp.concatenate([h3, sc], axis=0)                      # (2*Cout, N)
        powed = jnp.exp(jnp.log(jnp.maximum(stacked, gem_eps)) * p_vec)
        pooled = jnp.dot(powed, pool_ref[...], preferred_element_type=f32)
        gem = jnp.exp(jnp.log(pooled) / p_vec)                           # (2*Cout, Bt*Lo)
        out = _silu(gem[:cout, :] * p_stoch + gem[cout:, :])
    else:
        out = _silu(h3 * p_stoch + sc)

    for b in range(Bt):
        o_ref[b] = out[:, b * Lo:(b + 1) * Lo].astype(o_ref.dtype)


# ----------------------------------------------------------------------------
# Folding helpers (done once in XLA, outside the kernel)
# ----------------------------------------------------------------------------
def _fold_bn(bn, conv_bias=None):
    scale = bn["g"] / jnp.sqrt(bn["v"] + BN_EPS)
    shift = bn["b"] - bn["m"] * scale
    if conv_bias is not None:
        shift = shift + conv_bias * scale
    return scale, shift


def _fold_conv_w(w, scale):
    """(Cout, Cin, K) conv weight * per-out-channel BN scale -> (Cout, K*Cin),
    flattened tap-major to match the im2col slab row order."""
    co, ci, k = w.shape
    return jnp.transpose(w * scale[:, None, None], (0, 2, 1)).reshape(co, k * ci)


def _pick_batch_tile(B, L, cin, cout, K, has_projection, downsample):
    """Largest batch tile (divisor of B) that keeps the per-step working set small
    (v7x has the tightest VMEM: 64 MiB physical / 32 MiB scoped default) while
    giving the conv matmuls a wide N = Bt*L."""
    best = 1
    for bt in range(1, B + 1):
        if B % bt:
            continue
        n = bt * L
        if n > 4096:                               # bound vreg / live-set pressure
            continue
        bytes_est = 2 * n * K * (cin + cout)       # bf16 im2col slabs
        bytes_est += 4 * n * (cin + 6 * cout)      # rough f32 intermediates
        if has_projection:
            bytes_est += 4 * n * (bt * (L // downsample))   # block-diag GeM pool mat
        if bytes_est <= 8 * 1024 * 1024:
            best = bt
    return best


# ----------------------------------------------------------------------------
# Wrapper: one pallas_call for the whole block
# ----------------------------------------------------------------------------
def cbam_resblock_forward(params, x, *, kernel_size, downsample, sg_kernel_size,
                          p_stoch, batch_tile=None):
    B, cin, L = x.shape
    cout = params["conv1_w"].shape[0]
    K, KSG = kernel_size, sg_kernel_size
    assert K % 2 == 1 and KSG % 2 == 1, "odd kernel sizes expected (k//2 padding)"
    has_projection = (downsample != 1) or (cin != cout)
    Lo = L // downsample if has_projection else L

    Bt = batch_tile or _pick_batch_tile(B, L, cin, cout, K, has_projection, downsample)
    assert B % Bt == 0
    grid = (B // Bt,)

    x = x.astype(jnp.float32)

    # --- fold BN into conv weights (scale) and per-channel shifts, cast to bf16 --
    s1, t1 = _fold_bn(params["bn1"])
    w1 = _fold_conv_w(params["conv1_w"], s1)
    s2, t2 = _fold_bn(params["bn2"])
    w2 = _fold_conv_w(params["conv2_w"], s2).astype(jnp.bfloat16)
    ssg, tsg = _fold_bn(params["sg_bn"], conv_bias=params["sg_conv_b"])
    wsg = params["sg_conv_w"][0] * ssg[0]                                # (2, KSG)
    wsg_flat = jnp.concatenate([wsg[0], wsg[1]]).astype(jnp.float32)     # (2*KSG,)

    if has_projection:
        ssc, tsc = _fold_bn(params["sc_bn"])
        wsc = _fold_conv_w(params["sc_conv_w"], ssc)
        w1m = jnp.concatenate([w1, wsc], axis=0).astype(jnp.bfloat16)    # (2*Cout, K*Cin)
        t1m = jnp.concatenate([t1, tsc], axis=0)[:, None]
        # Block-diagonal average-pooling matrix over the stacked (Bt*L) columns.
        N, Nout = Bt * L, Bt * Lo
        j = jnp.arange(N)
        m = jnp.arange(Nout)
        same_seg = (j[:, None] // L) == (m[None, :] // Lo)
        same_win = ((j[:, None] % L) // downsample) == (m[None, :] % Lo)
        pool = jnp.where(same_seg & same_win, 1.0 / downsample, 0.0).astype(jnp.float32)
        scal = jnp.concatenate([
            jnp.reshape(jnp.asarray(params["gem_res_p"], jnp.float32), (1,)),
            jnp.reshape(jnp.asarray(params["gem_sc_p"], jnp.float32), (1,)),
            tsg.astype(jnp.float32)])
    else:
        w1m = w1.astype(jnp.bfloat16)
        t1m = t1[:, None]
        pool = jnp.zeros((1, 1), jnp.float32)                 # unused
        scal = jnp.concatenate([jnp.ones((2,), jnp.float32), tsg.astype(jnp.float32)])
    t2m = t2[:, None]
    wse1 = params["se_fc1_w"].astype(jnp.float32)             # (Cr, Cout)
    wse2 = params["se_fc2_w"].astype(jnp.float32)             # (Cout, Cr)

    kernel = functools.partial(_cbam_block_kernel, Bt=Bt, L=L, K=K, KSG=KSG,
                               p_stoch=float(p_stoch),
                               has_projection=has_projection, gem_eps=GEM_EPS)
    rep2 = lambda g: (0, 0)
    smem_spec = pl.BlockSpec(memory_space=pltpu.MemorySpace.SMEM)
    return pl.pallas_call(
        kernel,
        out_shape=jax.ShapeDtypeStruct((B, cout, Lo), jnp.float32),
        grid=grid,
        in_specs=[
            pl.BlockSpec((Bt, cin, L), lambda g: (g, 0, 0)),
            pl.BlockSpec(w1m.shape, rep2),
            pl.BlockSpec(t1m.shape, rep2),
            pl.BlockSpec(w2.shape, rep2),
            pl.BlockSpec(t2m.shape, rep2),
            pl.BlockSpec(wse1.shape, rep2),
            pl.BlockSpec(wse2.shape, rep2),
            smem_spec,                     # spatial-gate taps (scalars in SMEM)
            smem_spec,                     # [gem_p_res, gem_p_sc, sg_shift] in SMEM
            pl.BlockSpec(pool.shape, rep2),
        ],
        out_specs=pl.BlockSpec((Bt, cout, Lo), lambda g: (g, 0, 0)),
        scratch_shapes=[
            pltpu.VMEM((K * cin, Bt * L), jnp.bfloat16),   # conv1 (+shortcut) im2col slab
            pltpu.VMEM((K * cout, Bt * L), jnp.bfloat16),  # conv2 im2col slab
        ],
        compiler_params=pltpu.CompilerParams(dimension_semantics=("parallel",)),
    )(x, w1m, t1m, w2, t2m, wse1, wse2, wsg_flat, scal, pool)


# ----------------------------------------------------------------------------
# Pure-JAX reference (mirrors the PyTorch module in eval mode)
# ----------------------------------------------------------------------------
def reference_forward(params, x, *, kernel_size, downsample, sg_kernel_size, p_stoch):
    K, KSG = kernel_size, sg_kernel_size
    cin = x.shape[1]
    cout = params["conv1_w"].shape[0]
    has_projection = (downsample != 1) or (cin != cout)
    hi = jax.lax.Precision.HIGHEST

    def conv1d(v, w, b=None, pad=0):
        y = jax.lax.conv_general_dilated(v, w, (1,), [(pad, pad)],
                                         dimension_numbers=("NCH", "OIH", "NCH"),
                                         precision=hi)
        return y if b is None else y + b[None, :, None]

    def bn(v, bnp):
        sc = bnp["g"] / jnp.sqrt(bnp["v"] + BN_EPS)
        return (v - bnp["m"][None, :, None]) * sc[None, :, None] + bnp["b"][None, :, None]

    def gem(v, p, ks):
        Bv, Cv, Lv = v.shape
        Lo = Lv // ks
        vp = jnp.maximum(v, GEM_EPS) ** p
        return vp[:, :, :Lo * ks].reshape(Bv, Cv, Lo, ks).mean(axis=3) ** (1.0 / p)

    pad = K // 2
    r = jax.nn.silu(bn(conv1d(x, params["conv1_w"], pad=pad), params["bn1"]))
    r = bn(conv1d(r, params["conv2_w"], pad=pad), params["bn2"])
    # SE channel attention
    y = jnp.mean(r, axis=2)
    y = jax.nn.silu(jnp.dot(y, params["se_fc1_w"].T, precision=hi))
    y = jax.nn.sigmoid(jnp.dot(y, params["se_fc2_w"].T, precision=hi))
    r = r * y[:, :, None]
    # CBAM spatial gate
    cp = jnp.concatenate([jnp.max(r, axis=1, keepdims=True),
                          jnp.mean(r, axis=1, keepdims=True)], axis=1)
    g = conv1d(cp, params["sg_conv_w"], params["sg_conv_b"], pad=(KSG - 1) // 2)
    g = jax.nn.silu(bn(g, params["sg_bn"]))
    r = r * jax.nn.sigmoid(g)
    if has_projection:
        r = gem(r, params["gem_res_p"], downsample)
        s = bn(conv1d(x, params["sc_conv_w"], pad=pad), params["sc_bn"])
        s = gem(s, params["gem_sc_p"], downsample)
    else:
        s = x
    return jax.nn.silu(r * p_stoch + s)


# ----------------------------------------------------------------------------
# Parameter init (random conv/linear weights, randomized BN running stats)
# ----------------------------------------------------------------------------
def init_block_params(key, cin, cout, k, ksg, reduction, has_projection):
    keys = jax.random.split(key, 12)

    def conv_w(kk, co, ci, kw):
        return jax.random.normal(kk, (co, ci, kw), jnp.float32) / np.sqrt(ci * kw)

    def bn(kk, c):
        kg, kb, km, kv = jax.random.split(kk, 4)
        return {"g": 1.0 + 0.1 * jax.random.normal(kg, (c,), jnp.float32),
                "b": 0.1 * jax.random.normal(kb, (c,), jnp.float32),
                "m": 0.1 * jax.random.normal(km, (c,), jnp.float32),
                "v": jax.random.uniform(kv, (c,), jnp.float32, minval=0.5, maxval=1.5)}

    cr = int(cout // reduction)
    p = {"conv1_w": conv_w(keys[0], cout, cin, k), "bn1": bn(keys[1], cout),
         "conv2_w": conv_w(keys[2], cout, cout, k), "bn2": bn(keys[3], cout),
         "se_fc1_w": jax.random.normal(keys[4], (cr, cout), jnp.float32) / np.sqrt(cout),
         "se_fc2_w": jax.random.normal(keys[5], (cout, cr), jnp.float32) / np.sqrt(cr),
         "sg_conv_w": conv_w(keys[6], 1, 2, ksg),
         "sg_conv_b": 0.1 * jax.random.normal(keys[7], (1,), jnp.float32),
         "sg_bn": bn(keys[8], 1)}
    if has_projection:
        p["sc_conv_w"] = conv_w(keys[9], cout, cin, k)
        p["sc_bn"] = bn(keys[10], cout)
        p["gem_res_p"] = jnp.asarray(3.0, jnp.float32)   # GeM p parameters
        p["gem_sc_p"] = jnp.asarray(2.5, jnp.float32)
    return p


# ---------------------------------- main --------------------------------------
if __name__ == "__main__":
    root = jax.random.PRNGKey(0)
    kp1, kp2, kx1, kx2 = jax.random.split(root, 4)

    # -- projection / downsampling variant (exercises every sub-module) --------
    B, CIN, COUT, L = 2, 16, 32, 256
    K, KSG, DS, RED, P_STOCH = 7, 15, 2, 4, 0.9
    params = init_block_params(kp1, CIN, COUT, K, KSG, RED, has_projection=True)
    x = jax.random.normal(kx1, (B, CIN, L), jnp.float32)

    fwd = jax.jit(functools.partial(cbam_resblock_forward, kernel_size=K,
                                    downsample=DS, sg_kernel_size=KSG,
                                    p_stoch=P_STOCH))
    out = jax.block_until_ready(fwd(params, x))
    ref = reference_forward(params, x, kernel_size=K, downsample=DS,
                            sg_kernel_size=KSG, p_stoch=P_STOCH)
    assert out.shape == (B, COUT, L // DS), out.shape
    assert bool(jnp.all(jnp.isfinite(out)))
    err = float(jnp.max(jnp.abs(out - ref)))
    assert err < 1e-1, err   # bf16 conv matmuls (f32 accumulate) -> loose abs tol

    # -- identity-shortcut variant (downsample=1, in_channels == out_channels) --
    params2 = init_block_params(kp2, COUT, COUT, K, KSG, RED, has_projection=False)
    x2 = jax.random.normal(kx2, (B, COUT, L), jnp.float32)
    fwd2 = jax.jit(functools.partial(cbam_resblock_forward, kernel_size=K,
                                     downsample=1, sg_kernel_size=KSG, p_stoch=1.0))
    out2 = jax.block_until_ready(fwd2(params2, x2))
    ref2 = reference_forward(params2, x2, kernel_size=K, downsample=1,
                             sg_kernel_size=KSG, p_stoch=1.0)
    assert out2.shape == (B, COUT, L), out2.shape
    assert bool(jnp.all(jnp.isfinite(out2)))
    err2 = float(jnp.max(jnp.abs(out2 - ref2)))
    assert err2 < 1e-1, err2

    print("KERNEL_OK")
</pallas_src>

<mosaic_0001>
module attributes {stable_mosaic.version = 11 : i64} {
  func.func @_cbam_block_kernel(%arg0: i32, %arg1: memref<2x16x256xf32, #tpu.memory_space<vmem>>, %arg2: memref<64x112xbf16, #tpu.memory_space<vmem>>, %arg3: memref<64x1xf32, #tpu.memory_space<vmem>>, %arg4: memref<32x224xbf16, #tpu.memory_space<vmem>>, %arg5: memref<32x1xf32, #tpu.memory_space<vmem>>, %arg6: memref<8x32xf32, #tpu.memory_space<vmem>>, %arg7: memref<32x8xf32, #tpu.memory_space<vmem>>, %arg8: memref<30xf32, #tpu.memory_space<smem>>, %arg9: memref<3xf32, #tpu.memory_space<smem>>, %arg10: memref<512x256xf32, #tpu.memory_space<vmem>>, %arg11: memref<2x32x128xf32, #tpu.memory_space<vmem>>, %arg12: memref<112x512xbf16, #tpu.memory_space<vmem>>, %arg13: memref<224x512xbf16, #tpu.memory_space<vmem>>) attributes {dimension_semantics = [#tpu.dimension_semantics<parallel>], iteration_bounds = array<i64: 1>, scalar_prefetch = 0 : i64, scratch_operands = 2 : i64, tpu.core_type = #tpu.core_type<tc>, window_params = [{transform_indices = @transform_0, window_bounds = array<i64: 2, 16, 256>}, {pipeline_mode = #tpu.pipeline_mode<synchronous>, transform_indices = @transform_1, window_bounds = array<i64: 64, 112>}, {pipeline_mode = #tpu.pipeline_mode<synchronous>, transform_indices = @transform_2, window_bounds = array<i64: 64, 1>}, {pipeline_mode = #tpu.pipeline_mode<synchronous>, transform_indices = @transform_3, window_bounds = array<i64: 32, 224>}, {pipeline_mode = #tpu.pipeline_mode<synchronous>, transform_indices = @transform_4, window_bounds = array<i64: 32, 1>}, {pipeline_mode = #tpu.pipeline_mode<synchronous>, transform_indices = @transform_5, window_bounds = array<i64: 8, 32>}, {pipeline_mode = #tpu.pipeline_mode<synchronous>, transform_indices = @transform_6, window_bounds = array<i64: 32, 8>}, {transform_indices = @transform_7, window_bounds = array<i64: 30>}, {transform_indices = @transform_8, window_bounds = array<i64: 3>}, {pipeline_mode = #tpu.pipeline_mode<synchronous>, transform_indices = @transform_9, window_bounds = array<i64: 512, 256>}, {transform_indices = @transform_10, window_bounds = array<i64: 2, 32, 128>}]} {
    %0 = tpu.iota {dimensions = array<i32: 1>} : vector<1x256xi32>
    %1 = tpu.concatenate %0, %0 in 1 : vector<1x256xi32>, vector<1x256xi32> -> vector<1x512xi32>
    %c0_i32 = arith.constant 0 : i32
    %2 = vector.broadcast %c0_i32 : i32 to vector<1x256xi32>
    %c1_i32 = arith.constant 1 : i32
    %3 = vector.broadcast %c1_i32 : i32 to vector<1x256xi32>
    %4 = tpu.concatenate %2, %3 in 1 : vector<1x256xi32>, vector<1x256xi32> -> vector<1x512xi32>
    %c0 = arith.constant 0 : index
    %c0_0 = arith.constant 0 : index
    %c0_1 = arith.constant 0 : index
    %5 = vector.load %arg1[%c0, %c0_0, %c0_1] : memref<2x16x256xf32, #tpu.memory_space<vmem>>, vector<1x16x256xf32>
    %6 = vector.shape_cast %5 : vector<1x16x256xf32> to vector<16x256xf32>
    %c1 = arith.constant 1 : index
    %c0_2 = arith.constant 0 : index
    %c0_3 = arith.constant 0 : index
    %7 = vector.load %arg1[%c1, %c0_2, %c0_3] : memref<2x16x256xf32, #tpu.memory_space<vmem>>, vector<1x16x256xf32>
    %8 = vector.shape_cast %7 : vector<1x16x256xf32> to vector<16x256xf32>
    %9 = tpu.concatenate %6, %8 in 1 : vector<16x256xf32>, vector<16x256xf32> -> vector<16x512xf32>
    %c-3_i32 = arith.constant -3 : i32
    %10 = vector.broadcast %c-3_i32 : i32 to vector<1x512xi32>
    %11 = arith.addi %1, %10 : vector<1x512xi32>
    %c0_i32_4 = arith.constant 0 : i32
    %12 = vector.broadcast %c0_i32_4 : i32 to vector<1x512xi32>
    %13 = arith.cmpi sge, %11, %12 : vector<1x512xi32>
    %c-3_i32_5 = arith.constant -3 : i32
    %14 = vector.broadcast %c-3_i32_5 : i32 to vector<1x512xi32>
    %15 = arith.addi %1, %14 : vector<1x512xi32>
    %c256_i32 = arith.constant 256 : i32
    %16 = vector.broadcast %c256_i32 : i32 to vector<1x512xi32>
    %17 = arith.cmpi slt, %15, %16 : vector<1x512xi32>
    %18 = arith.andi %13, %17 : vector<1x512xi1>
    %c3_i32 = arith.constant 3 : i32
    %19 = tpu.dynamic_rotate %9 by %c3_i32 dim 1 : vector<16x512xf32>, i32 -> vector<16x512xf32>
    %cst = arith.constant 0.000000e+00 : f32
    %20 = vector.shape_cast %18 : vector<1x512xi1> to vector<1x512xi1>
    %21 = vector.broadcast %20 : vector<1x512xi1> to vector<16x512xi1>
    %22 = vector.broadcast %cst : f32 to vector<16x512xf32>
    %23 = arith.select %21, %19, %22 : vector<16x512xi1>, vector<16x512xf32>
    %24 = arith.truncf %23 : vector<16x512xf32> to vector<16x512xbf16>
    %c0_6 = arith.constant 0 : index
    %c0_7 = arith.constant 0 : index
    %25 = vector.load %arg12[%c0_6, %c0_7] : memref<112x512xbf16, #tpu.memory_space<vmem>>, vector<16x512xbf16>
    tpu.vector_store %arg12[%c0_6, %c0_7], %24 {strides = array<i32>} : memref<112x512xbf16, #tpu.memory_space<vmem>>, vector<16x512xbf16>,
    %c-2_i32 = arith.constant -2 : i32
    %26 = vector.broadcast %c-2_i32 : i32 to vector<1x512xi32>
    %27 = arith.addi %1, %26 : vector<1x512xi32>
    %c0_i32_8 = arith.constant 0 : i32
    %28 = vector.broadcast %c0_i32_8 : i32 to vector<1x512xi32>
    %29 = arith.cmpi sge, %27, %28 : vector<1x512xi32>
    %c-2_i32_9 = arith.constant -2 : i32
    %30 = vector.broadcast %c-2_i32_9 : i32 to vector<1x512xi32>
    %31 = arith.addi %1, %30 : vector<1x512xi32>
    %c256_i32_10 = arith.constant 256 : i32
    %32 = vector.broadcast %c256_i32_10 : i32 to vector<1x512xi32>
    %33 = arith.cmpi slt, %31, %32 : vector<1x512xi32>
    %34 = arith.andi %29, %33 : vector<1x512xi1>
    %c2_i32 = arith.constant 2 : i32
    %35 = tpu.dynamic_rotate %9 by %c2_i32 dim 1 : vector<16x512xf32>, i32 -> vector<16x512xf32>
    %cst_11 = arith.constant 0.000000e+00 : f32
    %36 = vector.shape_cast %34 : vector<1x512xi1> to vector<1x512xi1>
    %37 = vector.broadcast %36 : vector<1x512xi1> to vector<16x512xi1>
    %38 = vector.broadcast %cst_11 : f32 to vector<16x512xf32>
    %39 = arith.select %37, %35, %38 : vector<16x512xi1>, vector<16x512xf32>
    %40 = arith.truncf %39 : vector<16x512xf32> to vector<16x512xbf16>
    %c16 = arith.constant 16 : index
    %c0_12 = arith.constant 0 : index
    %41 = vector.load %arg12[%c16, %c0_12] : memref<112x512xbf16, #tpu.memory_space<vmem>>, vector<16x512xbf16>
    tpu.vector_store %arg12[%c16, %c0_12], %40 {strides = array<i32>} : memref<112x512xbf16, #tpu.memory_space<vmem>>, vector<16x512xbf16>,
    %c-1_i32 = arith.constant -1 : i32
    %42 = vector.broadcast %c-1_i32 : i32 to vector<1x512xi32>
    %43 = arith.addi %1, %42 : vector<1x512xi32>
    %c0_i32_13 = arith.constant 0 : i32
    %44 = vector.broadcast %c0_i32_13 : i32 to vector<1x512xi32>
    %45 = arith.cmpi sge, %43, %44 : vector<1x512xi32>
    %c-1_i32_14 = arith.constant -1 : i32
    %46 = vector.broadcast %c-1_i32_14 : i32 to vector<1x512xi32>
    %47 = arith.addi %1, %46 : vector<1x512xi32>
    %c256_i32_15 = arith.constant 256 : i32
    %48 = vector.broadcast %c256_i32_15 : i32 to vector<1x512xi32>
    %49 = arith.cmpi slt, %47, %48 : vector<1x512xi32>
    %50 = arith.andi %45, %49 : vector<1x512xi1>
    %c1_i32_16 = arith.constant 1 : i32
    %51 = tpu.dynamic_rotate %9 by %c1_i32_16 dim 1 : vector<16x512xf32>, i32 -> vector<16x512xf32>
    %cst_17 = arith.constant 0.000000e+00 : f32
    %52 = vector.shape_cast %50 : vector<1x512xi1> to vector<1x512xi1>
    %53 = vector.broadcast %52 : vector<1x512xi1> to vector<16x512xi1>
    %54 = vector.broadcast %cst_17 : f32 to vector<16x512xf32>
    %55 = arith.select %53, %51, %54 : vector<16x512xi1>, vector<16x512xf32>
    %56 = arith.truncf %55 : vector<16x512xf32> to vector<16x512xbf16>
    %c32 = arith.constant 32 : index
    %c0_18 = arith.constant 0 : index
    %57 = vector.load %arg12[%c32, %c0_18] : memref<112x512xbf16, #tpu.memory_space<vmem>>, vector<16x512xbf16>
    tpu.vector_store %arg12[%c32, %c0_18], %56 {strides = array<i32>} : memref<112x512xbf16, #tpu.memory_space<vmem>>, vector<16x512xbf16>,
    %58 = arith.truncf %9 : vector<16x512xf32> to vector<16x512xbf16>
    %c48 = arith.constant 48 : index
    %c0_19 = arith.constant 0 : index
    %59 = vector.load %arg12[%c48, %c0_19] : memref<112x512xbf16, #tpu.memory_space<vmem>>, vector<16x512xbf16>
    tpu.vector_store %arg12[%c48, %c0_19], %58 {strides = array<i32>} : memref<112x512xbf16, #tpu.memory_space<vmem>>, vector<16x512xbf16>,
    %c1_i32_20 = arith.constant 1 : i32
    %60 = vector.broadcast %c1_i32_20 : i32 to vector<1x512xi32>
    %61 = arith.addi %1, %60 : vector<1x512xi32>
    %c0_i32_21 = arith.constant 0 : i32
    %62 = vector.broadcast %c0_i32_21 : i32 to vector<1x512xi32>
    %63 = arith.cmpi sge, %61, %62 : vector<1x512xi32>
    %c1_i32_22 = arith.constant 1 : i32
    %64 = vector.broadcast %c1_i32_22 : i32 to vector<1x512xi32>
    %65 = arith.addi %1, %64 : vector<1x512xi32>
    %c256_i32_23 = arith.constant 256 : i32
    %66 = vector.broadcast %c256_i32_23 : i32 to vector<1x512xi32>
    %67 = arith.cmpi slt, %65, %66 : vector<1x512xi32>
    %68 = arith.andi %63, %67 : vector<1x512xi1>
    %c511_i32 = arith.constant 511 : i32
    %69 = tpu.dynamic_rotate %9 by %c511_i32 dim 1 : vector<16x512xf32>, i32 -> vector<16x512xf32>
    %cst_24 = arith.constant 0.000000e+00 : f32
    %70 = vector.shape_cast %68 : vector<1x512xi1> to vector<1x512xi1>
    %71 = vector.broadcast %70 : vector<1x512xi1> to vector<16x512xi1>
    %72 = vector.broadcast %cst_24 : f32 to vector<16x512xf32>
    %73 = arith.select %71, %69, %72 : vector<16x512xi1>, vector<16x512xf32>
    %74 = arith.truncf %73 : vector<16x512xf32> to vector<16x512xbf16>
    %c64 = arith.constant 64 : index
    %c0_25 = arith.constant 0 : index
    %75 = vector.load %arg12[%c64, %c0_25] : memref<112x512xbf16, #tpu.memory_space<vmem>>, vector<16x512xbf16>
    tpu.vector_store %arg12[%c64, %c0_25], %74 {strides = array<i32>} : memref<112x512xbf16, #tpu.memory_space<vmem>>, vector<16x512xbf16>,
    %c2_i32_26 = arith.constant 2 : i32
    %76 = vector.broadcast %c2_i32_26 : i32 to vector<1x512xi32>
    %77 = arith.addi %1, %76 : vector<1x512xi32>
    %c0_i32_27 = arith.constant 0 : i32
    %78 = vector.broadcast %c0_i32_27 : i32 to vector<1x512xi32>
    %79 = arith.cmpi sge, %77, %78 : vector<1x512xi32>
    %c2_i32_28 = arith.constant 2 : i32
    %80 = vector.broadcast %c2_i32_28 : i32 to vector<1x512xi32>
    %81 = arith.addi %1, %80 : vector<1x512xi32>
    %c256_i32_29 = arith.constant 256 : i32
    %82 = vector.broadcast %c256_i32_29 : i32 to vector<1x512xi32>
    %83 = arith.cmpi slt, %81, %82 : vector<1x512xi32>
    %84 = arith.andi %79, %83 : vector<1x512xi1>
    %c510_i32 = arith.constant 510 : i32
    %85 = tpu.dynamic_rotate %9 by %c510_i32 dim 1 : vector<16x512xf32>, i32 -> vector<16x512xf32>
    %cst_30 = arith.constant 0.000000e+00 : f32
    %86 = vector.shape_cast %84 : vector<1x512xi1> to vector<1x512xi1>
    %87 = vector.broadcast %86 : vector<1x512xi1> to vector<16x512xi1>
    %88 = vector.broadcast %cst_30 : f32 to vector<16x512xf32>
    %89 = arith.select %87, %85, %88 : vector<16x512xi1>, vector<16x512xf32>
    %90 = arith.truncf %89 : vector<16x512xf32> to vector<16x512xbf16>
    %c80 = arith.constant 80 : index
    %c0_31 = arith.constant 0 : index
    %91 = vector.load %arg12[%c80, %c0_31] : memref<112x512xbf16, #tpu.memory_space<vmem>>, vector<16x512xbf16>
    tpu.vector_store %arg12[%c80, %c0_31], %90 {strides = array<i32>} : memref<112x512xbf16, #tpu.memory_space<vmem>>, vector<16x512xbf16>,
    %c3_i32_32 = arith.constant 3 : i32
    %92 = vector.broadcast %c3_i32_32 : i32 to vector<1x512xi32>
    %93 = arith.addi %1, %92 : vector<1x512xi32>
    %c0_i32_33 = arith.constant 0 : i32
    %94 = vector.broadcast %c0_i32_33 : i32 to vector<1x512xi32>
    %95 = arith.cmpi sge, %93, %94 : vector<1x512xi32>
    %c3_i32_34 = arith.constant 3 : i32
    %96 = vector.broadcast %c3_i32_34 : i32 to vector<1x512xi32>
    %97 = arith.addi %1, %96 : vector<1x512xi32>
    %c256_i32_35 = arith.constant 256 : i32
    %98 = vector.broadcast %c256_i32_35 : i32 to vector<1x512xi32>
    %99 = arith.cmpi slt, %97, %98 : vector<1x512xi32>
    %100 = arith.andi %95, %99 : vector<1x512xi1>
    %c509_i32 = arith.constant 509 : i32
    %101 = tpu.dynamic_rotate %9 by %c509_i32 dim 1 : vector<16x512xf32>, i32 -> vector<16x512xf32>
    %cst_36 = arith.constant 0.000000e+00 : f32
    %102 = vector.shape_cast %100 : vector<1x512xi1> to vector<1x512xi1>
    %103 = vector.broadcast %102 : vector<1x512xi1> to vector<16x512xi1>
    %104 = vector.broadcast %cst_36 : f32 to vector<16x512xf32>
    %105 = arith.select %103, %101, %104 : vector<16x512xi1>, vector<16x512xf32>
    %106 = arith.truncf %105 : vector<16x512xf32> to vector<16x512xbf16>
    %c96 = arith.constant 96 : index
    %c0_37 = arith.constant 0 : index
    %107 = vector.load %arg12[%c96, %c0_37] : memref<112x512xbf16, #tpu.memory_space<vmem>>, vector<16x512xbf16>
    tpu.vector_store %arg12[%c96, %c0_37], %106 {strides = array<i32>} : memref<112x512xbf16, #tpu.memory_space<vmem>>, vector<16x512xbf16>,
    %c0_38 = arith.constant 0 : index
    %c0_39 = arith.constant 0 : index
    %108 = vector.load %arg2[%c0_38, %c0_39] : memref<64x112xbf16, #tpu.memory_space<vmem>>, vector<64x112xbf16>
    %c0_40 = arith.constant 0 : index
    %c0_41 = arith.constant 0 : index
    %109 = vector.load %arg12[%c0_40, %c0_41] : memref<112x512xbf16, #tpu.memory_space<vmem>>, vector<112x512xbf16>
    %cst_42 = arith.constant dense<0.000000e+00> : vector<64x512xf32>
    %110 = tpu.matmul %108, %109, %cst_42 {dimension_numbers = #tpu.dot_dimension_numbers<[1], [0], [0], [1], [0, 0, 1, 1], [], []>} : vector<64x112xbf16>, vector<112x512xbf16>, vector<64x512xf32> -> vector<64x512xf32>
    %c0_43 = arith.constant 0 : index
    %c0_44 = arith.constant 0 : index
    %111 = vector.load %arg3[%c0_43, %c0_44] : memref<64x1xf32, #tpu.memory_space<vmem>>, vector<64x1xf32>
    %112 = vector.broadcast %111 : vector<64x1xf32> to vector<64x512xf32>
    %113 = arith.addf %110, %112 : vector<64x512xf32>
    %114 = vector.extract_strided_slice %113 {offsets = [0, 0], sizes = [32, 512], strides = [1, 1]} : vector<64x512xf32> to vector<32x512xf32>
    %cst_45 = arith.constant 0.000000e+00 : f32
    %115 = vector.broadcast %cst_45 : f32 to vector<32x512xf32>
    %116 = arith.subf %115, %114 : vector<32x512xf32>
    %117 = math.exp %116 : vector<32x512xf32>
    %cst_46 = arith.constant 1.000000e+00 : f32
    %118 = vector.broadcast %cst_46 : f32 to vector<32x512xf32>
    %119 = arith.addf %118, %117 : vector<32x512xf32>
    %cst_47 = arith.constant 1.000000e+00 : f32
    %120 = vector.broadcast %cst_47 : f32 to vector<32x512xf32>
    %121 = arith.divf %120, %119 : vector<32x512xf32>
    %122 = arith.mulf %114, %121 : vector<32x512xf32>
    %123 = vector.extract_strided_slice %113 {offsets = [32, 0], sizes = [32, 512], strides = [1, 1]} : vector<64x512xf32> to vector<32x512xf32>
    %c-3_i32_48 = arith.constant -3 : i32
    %124 = vector.broadcast %c-3_i32_48 : i32 to vector<1x512xi32>
    %125 = arith.addi %1, %124 : vector<1x512xi32>
    %c0_i32_49 = arith.constant 0 : i32
    %126 = vector.broadcast %c0_i32_49 : i32 to vector<1x512xi32>
    %127 = arith.cmpi sge, %125, %126 : vector<1x512xi32>
    %c-3_i32_50 = arith.constant -3 : i32
    %128 = vector.broadcast %c-3_i32_50 : i32 to vector<1x512xi32>
    %129 = arith.addi %1, %128 : vector<1x512xi32>
    %c256_i32_51 = arith.constant 256 : i32
    %130 = vector.broadcast %c256_i32_51 : i32 to vector<1x512xi32>
    %131 = arith.cmpi slt, %129, %130 : vector<1x512xi32>
    %132 = arith.andi %127, %131 : vector<1x512xi1>
    %c3_i32_52 = arith.constant 3 : i32
    %133 = tpu.dynamic_rotate %122 by %c3_i32_52 dim 1 : vector<32x512xf32>, i32 -> vector<32x512xf32>
    %cst_53 = arith.constant 0.000000e+00 : f32
    %134 = vector.shape_cast %132 : vector<1x512xi1> to vector<1x512xi1>
    %135 = vector.broadcast %134 : vector<1x512xi1> to vector<32x512xi1>
    %136 = vector.broadcast %cst_53 : f32 to vector<32x512xf32>
    %137 = arith.select %135, %133, %136 : vector<32x512xi1>, vector<32x512xf32>
    %138 = arith.truncf %137 : vector<32x512xf32> to vector<32x512xbf16>
    %c0_54 = arith.constant 0 : index
    %c0_55 = arith.constant 0 : index
    %139 = vector.load %arg13[%c0_54, %c0_55] : memref<224x512xbf16, #tpu.memory_space<vmem>>, vector<32x512xbf16>
    tpu.vector_store %arg13[%c0_54, %c0_55], %138 {strides = array<i32>} : memref<224x512xbf16, #tpu.memory_space<vmem>>, vector<32x512xbf16>,
    %c-2_i32_56 = arith.constant -2 : i32
    %140 = vector.broadcast %c-2_i32_56 : i32 to vector<1x512xi32>
    %141 = arith.addi %1, %140 : vector<1x512xi32>
    %c0_i32_57 = arith.constant 0 : i32
    %142 = vector.broadcast %c0_i32_57 : i32 to vector<1x512xi32>
    %143 = arith.cmpi sge, %141, %142 : vector<1x512xi32>
    %c-2_i32_58 = arith.constant -2 : i32
    %144 = vector.broadcast %c-2_i32_58 : i32 to vector<1x512xi32>
    %145 = arith.addi %1, %144 : vector<1x512xi32>
    %c256_i32_59 = arith.constant 256 : i32
    %146 = vector.broadcast %c256_i32_59 : i32 to vector<1x512xi32>
    %147 = arith.cmpi slt, %145, %146 : vector<1x512xi32>
    %148 = arith.andi %143, %147 : vector<1x512xi1>
    %c2_i32_60 = arith.constant 2 : i32
    %149 = tpu.dynamic_rotate %122 by %c2_i32_60 dim 1 : vector<32x512xf32>, i32 -> vector<32x512xf32>
    %cst_61 = arith.constant 0.000000e+00 : f32
    %150 = vector.shape_cast %148 : vector<1x512xi1> to vector<1x512xi1>
    %151 = vector.broadcast %150 : vector<1x512xi1> to vector<32x512xi1>
    %152 = vector.broadcast %cst_61 : f32 to vector<32x512xf32>
    %153 = arith.select %151, %149, %152 : vector<32x512xi1>, vector<32x512xf32>
    %154 = arith.truncf %153 : vector<32x512xf32> to vector<32x512xbf16>
    %c32_62 = arith.constant 32 : index
    %c0_63 = arith.constant 0 : index
    %155 = vector.load %arg13[%c32_62, %c0_63] : memref<224x512xbf16, #tpu.memory_space<vmem>>, vector<32x512xbf16>
    tpu.vector_store %arg13[%c32_62, %c0_63], %154 {strides = array<i32>} : memref<224x512xbf16, #tpu.memory_space<vmem>>, vector<32x512xbf16>,
    %c-1_i32_64 = arith.constant -1 : i32
    %156 = vector.broadcast %c-1_i32_64 : i32 to vector<1x512xi32>
    %157 = arith.addi %1, %156 : vector<1x512xi32>
    %c0_i32_65 = arith.constant 0 : i32
    %158 = vector.broadcast %c0_i32_65 : i32 to vector<1x512xi32>
    %159 = arith.cmpi sge, %157, %158 : vector<1x512xi32>
    %c-1_i32_66 = arith.constant -1 : i32
    %160 = vector.broadcast %c-1_i32_66 : i32 to vector<1x512xi32>
    %161 = arith.addi %1, %160 : vector<1x512xi32>
    %c256_i32_67 = arith.constant 256 : i32
    %162 = vector.broadcast %c256_i32_67 : i32 to vector<1x512xi32>
    %163 = arith.cmpi slt, %161, %162 : vector<1x512xi32>
    %164 = arith.andi %159, %163 : vector<1x512xi1>
    %c1_i32_68 = arith.constant 1 : i32
    %165 = tpu.dynamic_rotate %122 by %c1_i32_68 dim 1 : vector<32x512xf32>, i32 -> vector<32x512xf32>
    %cst_69 = arith.constant 0.000000e+00 : f32
    %166 = vector.shape_cast %164 : vector<1x512xi1> to vector<1x512xi1>
    %167 = vector.broadcast %166 : vector<1x512xi1> to vector<32x512xi1>
    %168 = vector.broadcast %cst_69 : f32 to vector<32x512xf32>
    %169 = arith.select %167, %165, %168 : vector<32x512xi1>, vector<32x512xf32>
    %170 = arith.truncf %169 : vector<32x512xf32> to vector<32x512xbf16>
    %c64_70 = arith.constant 64 : index
    %c0_71 = arith.constant 0 : index
    %171 = vector.load %arg13[%c64_70, %c0_71] : memref<224x512xbf16, #tpu.memory_space<vmem>>, vector<32x512xbf16>
    tpu.vector_store %arg13[%c64_70, %c0_71], %170 {strides = array<i32>} : memref<224x512xbf16, #tpu.memory_space<vmem>>, vector<32x512xbf16>,
    %172 = arith.truncf %122 : vector<32x512xf32> to vector<32x512xbf16>
    %c96_72 = arith.constant 96 : index
    %c0_73 = arith.constant 0 : index
    %173 = vector.load %arg13[%c96_72, %c0_73] : memref<224x512xbf16, #tpu.memory_space<vmem>>, vector<32x512xbf16>
    tpu.vector_store %arg13[%c96_72, %c0_73], %172 {strides = array<i32>} : memref<224x512xbf16, #tpu.memory_space<vmem>>, vector<32x512xbf16>,
    %c1_i32_74 = arith.constant 1 : i32
    %174 = vector.broadcast %c1_i32_74 : i32 to vector<1x512xi32>
    %175 = arith.addi %1, %174 : vector<1x512xi32>
    %c0_i32_75 = arith.constant 0 : i32
    %176 = vector.broadcast %c0_i32_75 : i32 to vector<1x512xi32>
    %177 = arith.cmpi sge, %175, %176 : vector<1x512xi32>
    %c1_i32_76 = arith.constant 1 : i32
    %178 = vector.broadcast %c1_i32_76 : i32 to vector<1x512xi32>
    %179 = arith.addi %1, %178 : vector<1x512xi32>
    %c256_i32_77 = arith.constant 256 : i32
    %180 = vector.broadcast %c256_i32_77 : i32 to vector<1x512xi32>
    %181 = arith.cmpi slt, %179, %180 : vector<1x512xi32>
    %182 = arith.andi %177, %181 : vector<1x512xi1>
    %c511_i32_78 = arith.constant 511 : i32
    %183 = tpu.dynamic_rotate %122 by %c511_i32_78 dim 1 : vector<32x512xf32>, i32 -> vector<32x512xf32>
    %cst_79 = arith.constant 0.000000e+00 : f32
    %184 = vector.shape_cast %182 : vector<1x512xi1> to vector<1x512xi1>
    %185 = vector.broadcast %184 : vector<1x512xi1> to vector<32x512xi1>
    %186 = vector.broadcast %cst_79 : f32 to vector<32x512xf32>
    %187 = arith.select %185, %183, %186 : vector<32x512xi1>, vector<32x512xf32>
    %188 = arith.truncf %187 : vector<32x512xf32> to vector<32x512xbf16>
    %c128 = arith.constant 128 : index
    %c0_80 = arith.constant 0 : index
    %189 = vector.load %arg13[%c128, %c0_80] : memref<224x512xbf16, #tpu.memory_space<vmem>>, vector<32x512xbf16>
    tpu.vector_store %arg13[%c128, %c0_80], %188 {strides = array<i32>} : memref<224x512xbf16, #tpu.memory_space<vmem>>, vector<32x512xbf16>,
    %c2_i32_81 = arith.constant 2 : i32
    %190 = vector.broadcast %c2_i32_81 : i32 to vector<1x512xi32>
    %191 = arith.addi %1, %190 : vector<1x512xi32>
    %c0_i32_82 = arith.constant 0 : i32
    %192 = vector.broadcast %c0_i32_82 : i32 to vector<1x512xi32>
    %193 = arith.cmpi sge, %191, %192 : vector<1x512xi32>
    %c2_i32_83 = arith.constant 2 : i32
    %194 = vector.broadcast %c2_i32_83 : i32 to vector<1x512xi32>
    %195 = arith.addi %1, %194 : vector<1x512xi32>
    %c256_i32_84 = arith.constant 256 : i32
    %196 = vector.broadcast %c256_i32_84 : i32 to vector<1x512xi32>
    %197 = arith.cmpi slt, %195, %196 : vector<1x512xi32>
    %198 = arith.andi %193, %197 : vector<1x512xi1>
    %c510_i32_85 = arith.constant 510 : i32
    %199 = tpu.dynamic_rotate %122 by %c510_i32_85 dim 1 : vector<32x512xf32>, i32 -> vector<32x512xf32>
    %cst_86 = arith.constant 0.000000e+00 : f32
    %200 = vector.shape_cast %198 : vector<1x512xi1> to vector<1x512xi1>
    %201 = vector.broadcast %200 : vector<1x512xi1> to vector<32x512xi1>
    %202 = vector.broadcast %cst_86 : f32 to vector<32x512xf32>
    %203 = arith.select %201, %199, %202 : vector<32x512xi1>, vector<32x512xf32>
    %204 = arith.truncf %203 : vector<32x512xf32> to vector<32x512xbf16>
    %c160 = arith.constant 160 : index
    %c0_87 = arith.constant 0 : index
    %205 = vector.load %arg13[%c160, %c0_87] : memref<224x512xbf16, #tpu.memory_space<vmem>>, vector<32x512xbf16>
    tpu.vector_store %arg13[%c160, %c0_87], %204 {strides = array<i32>} : memref<224x512xbf16, #tpu.memory_space<vmem>>, vector<32x512xbf16>,
    %c3_i32_88 = arith.constant 3 : i32
    %206 = vector.broadcast %c3_i32_88 : i32 to vector<1x512xi32>
    %207 = arith.addi %1, %206 : vector<1x512xi32>
    %c0_i32_89 = arith.constant 0 : i32
    %208 = vector.broadcast %c0_i32_89 : i32 to vector<1x512xi32>
    %209 = arith.cmpi sge, %207, %208 : vector<1x512xi32>
    %c3_i32_90 = arith.constant 3 : i32
    %210 = vector.broadcast %c3_i32_90 : i32 to vector<1x512xi32>
    %211 = arith.addi %1, %210 : vector<1x512xi32>
    %c256_i32_91 = arith.constant 256 : i32
    %212 = vector.broadcast %c256_i32_91 : i32 to vector<1x512xi32>
    %213 = arith.cmpi slt, %211, %212 : vector<1x512xi32>
    %214 = arith.andi %209, %213 : vector<1x512xi1>
    %c509_i32_92 = arith.constant 509 : i32
    %215 = tpu.dynamic_rotate %122 by %c509_i32_92 dim 1 : vector<32x512xf32>, i32 -> vector<32x512xf32>
    %cst_93 = arith.constant 0.000000e+00 : f32
    %216 = vector.shape_cast %214 : vector<1x512xi1> to vector<1x512xi1>
    %217 = vector.broadcast %216 : vector<1x512xi1> to vector<32x512xi1>
    %218 = vector.broadcast %cst_93 : f32 to vector<32x512xf32>
    %219 = arith.select %217, %215, %218 : vector<32x512xi1>, vector<32x512xf32>
    %220 = arith.truncf %219 : vector<32x512xf32> to vector<32x512xbf16>
    %c192 = arith.constant 192 : index
    %c0_94 = arith.constant 0 : index
    %221 = vector.load %arg13[%c192, %c0_94] : memref<224x512xbf16, #tpu.memory_space<vmem>>, vector<32x512xbf16>
    tpu.vector_store %arg13[%c192, %c0_94], %220 {strides = array<i32>} : memref<224x512xbf16, #tpu.memory_space<vmem>>, vector<32x512xbf16>,
    %c0_95 = arith.constant 0 : index
    %c0_96 = arith.constant 0 : index
    %222 = vector.load %arg4[%c0_95, %c0_96] : memref<32x224xbf16, #tpu.memory_space<vmem>>, vector<32x224xbf16>
    %c0_97 = arith.constant 0 : index
    %c0_98 = arith.constant 0 : index
    %223 = vector.load %arg13[%c0_97, %c0_98] : memref<224x512xbf16, #tpu.memory_space<vmem>>, vector<224x512xbf16>
    %cst_99 = arith.constant dense<0.000000e+00> : vector<32x512xf32>
    %224 = tpu.matmul %222, %223, %cst_99 {dimension_numbers = #tpu.dot_dimension_numbers<[1], [0], [0], [1], [0, 0, 1, 1], [], []>} : vector<32x224xbf16>, vector<224x512xbf16>, vector<32x512xf32> -> vector<32x512xf32>
    %c0_100 = arith.constant 0 : index
    %c0_101 = arith.constant 0 : index
    %225 = vector.load %arg5[%c0_100, %c0_101] : memref<32x1xf32, #tpu.memory_space<vmem>>, vector<32x1xf32>
    %226 = vector.broadcast %225 : vector<32x1xf32> to vector<32x512xf32>
    %227 = arith.addf %224, %226 : vector<32x512xf32>
    %228 = vector.extract_strided_slice %227 {offsets = [0, 0], sizes = [32, 256], strides = [1, 1]} : vector<32x512xf32> to vector<32x256xf32>
    %cst_102 = arith.constant dense<0.000000e+00> : vector<32xf32>
    %229 = vector.multi_reduction <add>, %228, %cst_102 [1] : vector<32x256xf32> to vector<32xf32>
    %230 = vector.shape_cast %229 : vector<32xf32> to vector<32x1xf32>
    %cst_103 = arith.constant 2.560000e+02 : f32
    %231 = vector.broadcast %cst_103 : f32 to vector<32x1xf32>
    %232 = arith.divf %230, %231 : vector<32x1xf32>
    %233 = vector.extract_strided_slice %227 {offsets = [0, 256], sizes = [32, 256], strides = [1, 1]} : vector<32x512xf32> to vector<32x256xf32>
    %cst_104 = arith.constant dense<0.000000e+00> : vector<32xf32>
    %234 = vector.multi_reduction <add>, %233, %cst_104 [1] : vector<32x256xf32> to vector<32xf32>
    %235 = vector.shape_cast %234 : vector<32xf32> to vector<32x1xf32>
    %cst_105 = arith.constant 2.560000e+02 : f32
    %236 = vector.broadcast %cst_105 : f32 to vector<32x1xf32>
    %237 = arith.divf %235, %236 : vector<32x1xf32>
    %238 = tpu.concatenate %232, %237 in 1 : vector<32x1xf32>, vector<32x1xf32> -> vector<32x2xf32>
    %c0_106 = arith.constant 0 : index
    %c0_107 = arith.constant 0 : index
    %239 = vector.load %arg6[%c0_106, %c0_107] : memref<8x32xf32, #tpu.memory_space<vmem>>, vector<8x32xf32>
    %cst_108 = arith.constant dense<0.000000e+00> : vector<8x2xf32>
    %240 = tpu.matmul %239, %238, %cst_108 {dimension_numbers = #tpu.dot_dimension_numbers<[1], [0], [0], [1], [0, 0, 1, 1], [], []>} : vector<8x32xf32>, vector<32x2xf32>, vector<8x2xf32> -> vector<8x2xf32>
    %cst_109 = arith.constant 0.000000e+00 : f32
    %241 = vector.broadcast %cst_109 : f32 to vector<8x2xf32>
    %242 = arith.subf %241, %240 : vector<8x2xf32>
    %243 = math.exp %242 : vector<8x2xf32>
    %cst_110 = arith.constant 1.000000e+00 : f32
    %244 = vector.broadcast %cst_110 : f32 to vector<8x2xf32>
    %245 = arith.addf %244, %243 : vector<8x2xf32>
    %cst_111 = arith.constant 1.000000e+00 : f32
    %246 = vector.broadcast %cst_111 : f32 to vector<8x2xf32>
    %247 = arith.divf %246, %245 : vector<8x2xf32>
    %248 = arith.mulf %240, %247 : vector<8x2xf32>
    %c0_112 = arith.constant 0 : index
    %c0_113 = arith.constant 0 : index
    %249 = vector.load %arg7[%c0_112, %c0_113] : memref<32x8xf32, #tpu.memory_space<vmem>>, vector<32x8xf32>
    %cst_114 = arith.constant dense<0.000000e+00> : vector<32x2xf32>
    %250 = tpu.matmul %249, %248, %cst_114 {dimension_numbers = #tpu.dot_dimension_numbers<[1], [0], [0], [1], [0, 0, 1, 1], [], []>} : vector<32x8xf32>, vector<8x2xf32>, vector<32x2xf32> -> vector<32x2xf32>
    %cst_115 = arith.constant 0.000000e+00 : f32
    %251 = vector.broadcast %cst_115 : f32 to vector<32x2xf32>
    %252 = arith.subf %251, %250 : vector<32x2xf32>
    %253 = math.exp %252 : vector<32x2xf32>
    %cst_116 = arith.constant 1.000000e+00 : f32
    %254 = vector.broadcast %cst_116 : f32 to vector<32x2xf32>
    %255 = arith.addf %254, %253 : vector<32x2xf32>
    %cst_117 = arith.constant 1.000000e+00 : f32
    %256 = vector.broadcast %cst_117 : f32 to vector<32x2xf32>
    %257 = arith.divf %256, %255 : vector<32x2xf32>
    %258 = vector.extract_strided_slice %257 {offsets = [0, 0], sizes = [32, 1], strides = [1, 1]} : vector<32x2xf32> to vector<32x1xf32>
    %c1_i32_118 = arith.constant 1 : i32
    %259 = vector.broadcast %c1_i32_118 : i32 to vector<1x512xi32>
    %260 = arith.cmpi eq, %4, %259 : vector<1x512xi32>
    %261 = vector.extract_strided_slice %257 {offsets = [0, 1], sizes = [32, 1], strides = [1, 1]} : vector<32x2xf32> to vector<32x1xf32>
    %262 = vector.shape_cast %260 : vector<1x512xi1> to vector<1x512xi1>
    %263 = vector.broadcast %262 : vector<1x512xi1> to vector<32x512xi1>
    %264 = vector.shape_cast %261 : vector<32x1xf32> to vector<32x1xf32>
    %265 = vector.broadcast %264 : vector<32x1xf32> to vector<32x512xf32>
    %266 = vector.shape_cast %258 : vector<32x1xf32> to vector<32x1xf32>
    %267 = vector.broadcast %266 : vector<32x1xf32> to vector<32x512xf32>
    %268 = arith.select %263, %265, %267 : vector<32x512xi1>, vector<32x512xf32>
    %269 = arith.mulf %227, %268 : vector<32x512xf32>
    %cst_119 = arith.constant dense<0xFF800000> : vector<512xf32>
    %270 = vector.multi_reduction <maximumf>, %269, %cst_119 [0] : vector<32x512xf32> to vector<512xf32>
    %271 = vector.shape_cast %270 : vector<512xf32> to vector<1x512xf32>
    %cst_120 = arith.constant dense<0.000000e+00> : vector<512xf32>
    %272 = vector.multi_reduction <add>, %269, %cst_120 [0] : vector<32x512xf32> to vector<512xf32>
    %273 = vector.shape_cast %272 : vector<512xf32> to vector<1x512xf32>
    %cst_121 = arith.constant 3.200000e+01 : f32
    %274 = vector.broadcast %cst_121 : f32 to vector<1x512xf32>
    %275 = arith.divf %273, %274 : vector<1x512xf32>
    %cst_122 = arith.constant 0.000000e+00 : f32
    %276 = vector.broadcast %cst_122 : f32 to vector<1x512xf32>
    %c0_123 = arith.constant 0 : index
    %277 = memref.load %arg8[%c0_123] : memref<30xf32, #tpu.memory_space<smem>>
    %c-7_i32 = arith.constant -7 : i32
    %278 = vector.broadcast %c-7_i32 : i32 to vector<1x512xi32>
    %279 = arith.addi %1, %278 : vector<1x512xi32>
    %c0_i32_124 = arith.constant 0 : i32
    %280 = vector.broadcast %c0_i32_124 : i32 to vector<1x512xi32>
    %281 = arith.cmpi sge, %279, %280 : vector<1x512xi32>
    %c-7_i32_125 = arith.constant -7 : i32
    %282 = vector.broadcast %c-7_i32_125 : i32 to vector<1x512xi32>
    %283 = arith.addi %1, %282 : vector<1x512xi32>
    %c256_i32_126 = arith.constant 256 : i32
    %284 = vector.broadcast %c256_i32_126 : i32 to vector<1x512xi32>
    %285 = arith.cmpi slt, %283, %284 : vector<1x512xi32>
    %286 = arith.andi %281, %285 : vector<1x512xi1>
    %c7_i32 = arith.constant 7 : i32
    %287 = tpu.dynamic_rotate %271 by %c7_i32 dim 1 : vector<1x512xf32>, i32 -> vector<1x512xf32>
    %cst_127 = arith.constant 0.000000e+00 : f32
    %288 = vector.broadcast %cst_127 : f32 to vector<1x512xf32>
    %289 = arith.select %286, %287, %288 : vector<1x512xi1>, vector<1x512xf32>
    %290 = vector.broadcast %277 : f32 to vector<1x512xf32>
    %291 = arith.mulf %290, %289 : vector<1x512xf32>
    %292 = arith.addf %276, %291 : vector<1x512xf32>
    %c15 = arith.constant 15 : index
    %293 = memref.load %arg8[%c15] : memref<30xf32, #tpu.memory_space<smem>>
    %c-7_i32_128 = arith.constant -7 : i32
    %294 = vector.broadcast %c-7_i32_128 : i32 to vector<1x512xi32>
    %295 = arith.addi %1, %294 : vector<1x512xi32>
    %c0_i32_129 = arith.constant 0 : i32
    %296 = vector.broadcast %c0_i32_129 : i32 to vector<1x512xi32>
    %297 = arith.cmpi sge, %295, %296 : vector<1x512xi32>
    %c-7_i32_130 = arith.constant -7 : i32
    %298 = vector.broadcast %c-7_i32_130 : i32 to vector<1x512xi32>
    %299 = arith.addi %1, %298 : vector<1x512xi32>
    %c256_i32_131 = arith.constant 256 : i32
    %300 = vector.broadcast %c256_i32_131 : i32 to vector<1x512xi32>
    %301 = arith.cmpi slt, %299, %300 : vector<1x512xi32>
    %302 = arith.andi %297, %301 : vector<1x512xi1>
    %c7_i32_132 = arith.constant 7 : i32
    %303 = tpu.dynamic_rotate %275 by %c7_i32_132 dim 1 : vector<1x512xf32>, i32 -> vector<1x512xf32>
    %cst_133 = arith.constant 0.000000e+00 : f32
    %304 = vector.broadcast %cst_133 : f32 to vector<1x512xf32>
    %305 = arith.select %302, %303, %304 : vector<1x512xi1>, vector<1x512xf32>
    %306 = vector.broadcast %293 : f32 to vector<1x512xf32>
    %307 = arith.mulf %306, %305 : vector<1x512xf32>
    %308 = arith.addf %292, %307 : vector<1x512xf32>
    %c1_134 = arith.constant 1 : index
    %309 = memref.load %arg8[%c1_134] : memref<30xf32, #tpu.memory_space<smem>>
    %c-6_i32 = arith.constant -6 : i32
    %310 = vector.broadcast %c-6_i32 : i32 to vector<1x512xi32>
    %311 = arith.addi %1, %310 : vector<1x512xi32>
    %c0_i32_135 = arith.constant 0 : i32
    %312 = vector.broadcast %c0_i32_135 : i32 to vector<1x512xi32>
    %313 = arith.cmpi sge, %311, %312 : vector<1x512xi32>
    %c-6_i32_136 = arith.constant -6 : i32
    %314 = vector.broadcast %c-6_i32_136 : i32 to vector<1x512xi32>
    %315 = arith.addi %1, %314 : vector<1x512xi32>
    %c256_i32_137 = arith.constant 256 : i32
    %316 = vector.broadcast %c256_i32_137 : i32 to vector<1x512xi32>
    %317 = arith.cmpi slt, %315, %316 : vector<1x512xi32>
    %318 = arith.andi %313, %317 : vector<1x512xi1>
    %c6_i32 = arith.constant 6 : i32
    %319 = tpu.dynamic_rotate %271 by %c6_i32 dim 1 : vector<1x512xf32>, i32 -> vector<1x512xf32>
    %cst_138 = arith.constant 0.000000e+00 : f32
    %320 = vector.broadcast %cst_138 : f32 to vector<1x512xf32>
    %321 = arith.select %318, %319, %320 : vector<1x512xi1>, vector<1x512xf32>
    %322 = vector.broadcast %309 : f32 to vector<1x512xf32>
    %323 = arith.mulf %322, %321 : vector<1x512xf32>
    %324 = arith.addf %308, %323 : vector<1x512xf32>
    %c16_139 = arith.constant 16 : index
    %325 = memref.load %arg8[%c16_139] : memref<30xf32, #tpu.memory_space<smem>>
    %c-6_i32_140 = arith.constant -6 : i32
    %326 = vector.broadcast %c-6_i32_140 : i32 to vector<1x512xi32>
    %327 = arith.addi %1, %326 : vector<1x512xi32>
    %c0_i32_141 = arith.constant 0 : i32
    %328 = vector.broadcast %c0_i32_141 : i32 to vector<1x512xi32>
    %329 = arith.cmpi sge, %327, %328 : vector<1x512xi32>
    %c-6_i32_142 = arith.constant -6 : i32
    %330 = vector.broadcast %c-6_i32_142 : i32 to vector<1x512xi32>
    %331 = arith.addi %1, %330 : vector<1x512xi32>
    %c256_i32_143 = arith.constant 256 : i32
    %332 = vector.broadcast %c256_i32_143 : i32 to vector<1x512xi32>
    %333 = arith.cmpi slt, %331, %332 : vector<1x512xi32>
    %334 = arith.andi %329, %333 : vector<1x512xi1>
    %c6_i32_144 = arith.constant 6 : i32
    %335 = tpu.dynamic_rotate %275 by %c6_i32_144 dim 1 : vector<1x512xf32>, i32 -> vector<1x512xf32>
    %cst_145 = arith.constant 0.000000e+00 : f32
    %336 = vector.broadcast %cst_145 : f32 to vector<1x512xf32>
    %337 = arith.select %334, %335, %336 : vector<1x512xi1>, vector<1x512xf32>
    %338 = vector.broadcast %325 : f32 to vector<1x512xf32>
    %339 = arith.mulf %338, %337 : vector<1x512xf32>
    %340 = arith.addf %324, %339 : vector<1x512xf32>
    %c2 = arith.constant 2 : index
    %341 = memref.load %arg8[%c2] : memref<30xf32, #tpu.memory_space<smem>>
    %c-5_i32 = arith.constant -5 : i32
    %342 = vector.broadcast %c-5_i32 : i32 to vector<1x512xi32>
    %343 = arith.addi %1, %342 : vector<1x512xi32>
    %c0_i32_146 = arith.constant 0 : i32
    %344 = vector.broadcast %c0_i32_146 : i32 to vector<1x512xi32>
    %345 = arith.cmpi sge, %343, %344 : vector<1x512xi32>
    %c-5_i32_147 = arith.constant -5 : i32
    %346 = vector.broadcast %c-5_i32_147 : i32 to vector<1x512xi32>
    %347 = arith.addi %1, %346 : vector<1x512xi32>
    %c256_i32_148 = arith.constant 256 : i32
    %348 = vector.broadcast %c256_i32_148 : i32 to vector<1x512xi32>
    %349 = arith.cmpi slt, %347, %348 : vector<1x512xi32>
    %350 = arith.andi %345, %349 : vector<1x512xi1>
    %c5_i32 = arith.constant 5 : i32
    %351 = tpu.dynamic_rotate %271 by %c5_i32 dim 1 : vector<1x512xf32>, i32 -> vector<1x512xf32>
    %cst_149 = arith.constant 0.000000e+00 : f32
    %352 = vector.broadcast %cst_149 : f32 to vector<1x512xf32>
    %353 = arith.select %350, %351, %352 : vector<1x512xi1>, vector<1x512xf32>
    %354 = vector.broadcast %341 : f32 to vector<1x512xf32>
    %355 = arith.mulf %354, %353 : vector<1x512xf32>
    %356 = arith.addf %340, %355 : vector<1x512xf32>
    %c17 = arith.constant 17 : index
    %357 = memref.load %arg8[%c17] : memref<30xf32, #tpu.memory_space<smem>>
    %c-5_i32_150 = arith.constant -5 : i32
    %358 = vector.broadcast %c-5_i32_150 : i32 to vector<1x512xi32>
    %359 = arith.addi %1, %358 : vector<1x512xi32>
    %c0_i32_151 = arith.constant 0 : i32
    %360 = vector.broadcast %c0_i32_151 : i32 to vector<1x512xi32>
    %361 = arith.cmpi sge, %359, %360 : vector<1x512xi32>
    %c-5_i32_152 = arith.constant -5 : i32
    %362 = vector.broadcast %c-5_i32_152 : i32 to vector<1x512xi32>
    %363 = arith.addi %1, %362 : vector<1x512xi32>
    %c256_i32_153 = arith.constant 256 : i32
    %364 = vector.broadcast %c256_i32_153 : i32 to vector<1x512xi32>
    %365 = arith.cmpi slt, %363, %364 : vector<1x512xi32>
    %366 = arith.andi %361, %365 : vector<1x512xi1>
    %c5_i32_154 = arith.constant 5 : i32
    %367 = tpu.dynamic_rotate %275 by %c5_i32_154 dim 1 : vector<1x512xf32>, i32 -> vector<1x512xf32>
    %cst_155 = arith.constant 0.000000e+00 : f32
    %368 = vector.broadcast %cst_155 : f32 to vector<1x512xf32>
    %369 = arith.select %366, %367, %368 : vector<1x512xi1>, vector<1x512xf32>
    %370 = vector.broadcast %357 : f32 to vector<1x512xf32>
    %371 = arith.mulf %370, %369 : vector<1x512xf32>
    %372 = arith.addf %356, %371 : vector<1x512xf32>
    %c3 = arith.constant 3 : index
    %373 = memref.load %arg8[%c3] : memref<30xf32, #tpu.memory_space<smem>>
    %c-4_i32 = arith.constant -4 : i32
    %374 = vector.broadcast %c-4_i32 : i32 to vector<1x512xi32>
    %375 = arith.addi %1, %374 : vector<1x512xi32>
    %c0_i32_156 = arith.constant 0 : i32
    %376 = vector.broadcast %c0_i32_156 : i32 to vector<1x512xi32>
    %377 = arith.cmpi sge, %375, %376 : vector<1x512xi32>
    %c-4_i32_157 = arith.constant -4 : i32
    %378 = vector.broadcast %c-4_i32_157 : i32 to vector<1x512xi32>
    %379 = arith.addi %1, %378 : vector<1x512xi32>
    %c256_i32_158 = arith.constant 256 : i32
    %380 = vector.broadcast %c256_i32_158 : i32 to vector<1x512xi32>
    %381 = arith.cmpi slt, %379, %380 : vector<1x512xi32>
    %382 = arith.andi %377, %381 : vector<1x512xi1>
    %c4_i32 = arith.constant 4 : i32
    %383 = tpu.dynamic_rotate %271 by %c4_i32 dim 1 : vector<1x512xf32>, i32 -> vector<1x512xf32>
    %cst_159 = arith.constant 0.000000e+00 : f32
    %384 = vector.broadcast %cst_159 : f32 to vector<1x512xf32>
    %385 = arith.select %382, %383, %384 : vector<1x512xi1>, vector<1x512xf32>
    %386 = vector.broadcast %373 : f32 to vector<1x512xf32>
    %387 = arith.mulf %386, %385 : vector<1x512xf32>
    %388 = arith.addf %372, %387 : vector<1x512xf32>
    %c18 = arith.constant 18 : index
    %389 = memref.load %arg8[%c18] : memref<30xf32, #tpu.memory_space<smem>>
    %c-4_i32_160 = arith.constant -4 : i32
    %390 = vector.broadcast %c-4_i32_160 : i32 to vector<1x512xi32>
    %391 = arith.addi %1, %390 : vector<1x512xi32>
    %c0_i32_161 = arith.constant 0 : i32
    %392 = vector.broadcast %c0_i32_161 : i32 to vector<1x512xi32>
    %393 = arith.cmpi sge, %391, %392 : vector<1x512xi32>
    %c-4_i32_162 = arith.constant -4 : i32
    %394 = vector.broadcast %c-4_i32_162 : i32 to vector<1x512xi32>
    %395 = arith.addi %1, %394 : vector<1x512xi32>
    %c256_i32_163 = arith.constant 256 : i32
    %396 = vector.broadcast %c256_i32_163 : i32 to vector<1x512xi32>
    %397 = arith.cmpi slt, %395, %396 : vector<1x512xi32>
    %398 = arith.andi %393, %397 : vector<1x512xi1>
    %c4_i32_164 = arith.constant 4 : i32
    %399 = tpu.dynamic_rotate %275 by %c4_i32_164 dim 1 : vector<1x512xf32>, i32 -> vector<1x512xf32>
    %cst_165 = arith.constant 0.000000e+00 : f32
    %400 = vector.broadcast %cst_165 : f32 to vector<1x512xf32>
    %401 = arith.select %398, %399, %400 : vector<1x512xi1>, vector<1x512xf32>
    %402 = vector.broadcast %389 : f32 to vector<1x512xf32>
    %403 = arith.mulf %402, %401 : vector<1x512xf32>
    %404 = arith.addf %388, %403 : vector<1x512xf32>
    %c4 = arith.constant 4 : index
    %405 = memref.load %arg8[%c4] : memref<30xf32, #tpu.memory_space<smem>>
    %c-3_i32_166 = arith.constant -3 : i32
    %406 = vector.broadcast %c-3_i32_166 : i32 to vector<1x512xi32>
    %407 = arith.addi %1, %406 : vector<1x512xi32>
    %c0_i32_167 = arith.constant 0 : i32
    %408 = vector.broadcast %c0_i32_167 : i32 to vector<1x512xi32>
    %409 = arith.cmpi sge, %407, %408 : vector<1x512xi32>
    %c-3_i32_168 = arith.constant -3 : i32
    %410 = vector.broadcast %c-3_i32_168 : i32 to vector<1x512xi32>
    %411 = arith.addi %1, %410 : vector<1x512xi32>
    %c256_i32_169 = arith.constant 256 : i32
    %412 = vector.broadcast %c256_i32_169 : i32 to vector<1x512xi32>
    %413 = arith.cmpi slt, %411, %412 : vector<1x512xi32>
    %414 = arith.andi %409, %413 : vector<1x512xi1>
    %c3_i32_170 = arith.constant 3 : i32
    %415 = tpu.dynamic_rotate %271 by %c3_i32_170 dim 1 : vector<1x512xf32>, i32 -> vector<1x512xf32>
    %cst_171 = arith.constant 0.000000e+00 : f32
    %416 = vector.broadcast %cst_171 : f32 to vector<1x512xf32>
    %417 = arith.select %414, %415, %416 : vector<1x512xi1>, vector<1x512xf32>
    %418 = vector.broadcast %405 : f32 to vector<1x512xf32>
    %419 = arith.mulf %418, %417 : vector<1x512xf32>
    %420 = arith.addf %404, %419 : vector<1x512xf32>
    %c19 = arith.constant 19 : index
    %421 = memref.load %arg8[%c19] : memref<30xf32, #tpu.memory_space<smem>>
    %c-3_i32_172 = arith.constant -3 : i32
    %422 = vector.broadcast %c-3_i32_172 : i32 to vector<1x512xi32>
    %423 = arith.addi %1, %422 : vector<1x512xi32>
    %c0_i32_173 = arith.constant 0 : i32
    %424 = vector.broadcast %c0_i32_173 : i32 to vector<1x512xi32>
    %425 = arith.cmpi sge, %423, %424 : vector<1x512xi32>
    %c-3_i32_174 = arith.constant -3 : i32
    %426 = vector.broadcast %c-3_i32_174 : i32 to vector<1x512xi32>
    %427 = arith.addi %1, %426 : vector<1x512xi32>
    %c256_i32_175 = arith.constant 256 : i32
    %428 = vector.broadcast %c256_i32_175 : i32 to vector<1x512xi32>
    %429 = arith.cmpi slt, %427, %428 : vector<1x512xi32>
    %430 = arith.andi %425, %429 : vector<1x512xi1>
    %c3_i32_176 = arith.constant 3 : i32
    %431 = tpu.dynamic_rotate %275 by %c3_i32_176 dim 1 : vector<1x512xf32>, i32 -> vector<1x512xf32>
    %cst_177 = arith.constant 0.000000e+00 : f32
    %432 = vector.broadcast %cst_177 : f32 to vector<1x512xf32>
    %433 = arith.select %430, %431, %432 : vector<1x512xi1>, vector<1x512xf32>
    %434 = vector.broadcast %421 : f32 to vector<1x512xf32>
    %435 = arith.mulf %434, %433 : vector<1x512xf32>
    %436 = arith.addf %420, %435 : vector<1x512xf32>
    %c5 = arith.constant 5 : index
    %437 = memref.load %arg8[%c5] : memref<30xf32, #tpu.memory_space<smem>>
    %c-2_i32_178 = arith.constant -2 : i32
    %438 = vector.broadcast %c-2_i32_178 : i32 to vector<1x512xi32>
    %439 = arith.addi %1, %438 : vector<1x512xi32>
    %c0_i32_179 = arith.constant 0 : i32
    %440 = vector.broadcast %c0_i32_179 : i32 to vector<1x512xi32>
    %441 = arith.cmpi sge, %439, %440 : vector<1x512xi32>
    %c-2_i32_180 = arith.constant -2 : i32
    %442 = vector.broadcast %c-2_i32_180 : i32 to vector<1x512xi32>
    %443 = arith.addi %1, %442 : vector<1x512xi32>
    %c256_i32_181 = arith.constant 256 : i32
    %444 = vector.broadcast %c256_i32_181 : i32 to vector<1x512xi32>
    %445 = arith.cmpi slt, %443, %444 : vector<1x512xi32>
    %446 = arith.andi %441, %445 : vector<1x512xi1>
    %c2_i32_182 = arith.constant 2 : i32
    %447 = tpu.dynamic_rotate %271 by %c2_i32_182 dim 1 : vector<1x512xf32>, i32 -> vector<1x512xf32>
    %cst_183 = arith.constant 0.000000e+00 : f32
    %448 = vector.broadcast %cst_183 : f32 to vector<1x512xf32>
    %449 = arith.select %446, %447, %448 : vector<1x512xi1>, vector<1x512xf32>
    %450 = vector.broadcast %437 : f32 to vector<1x512xf32>
    %451 = arith.mulf %450, %449 : vector<1x512xf32>
    %452 = arith.addf %436, %451 : vector<1x512xf32>
    %c20 = arith.constant 20 : index
    %453 = memref.load %arg8[%c20] : memref<30xf32, #tpu.memory_space<smem>>
    %c-2_i32_184 = arith.constant -2 : i32
    %454 = vector.broadcast %c-2_i32_184 : i32 to vector<1x512xi32>
    %455 = arith.addi %1, %454 : vector<1x512xi32>
    %c0_i32_185 = arith.constant 0 : i32
    %456 = vector.broadcast %c0_i32_185 : i32 to vector<1x512xi32>
    %457 = arith.cmpi sge, %455, %456 : vector<1x512xi32>
    %c-2_i32_186 = arith.constant -2 : i32
    %458 = vector.broadcast %c-2_i32_186 : i32 to vector<1x512xi32>
    %459 = arith.addi %1, %458 : vector<1x512xi32>
    %c256_i32_187 = arith.constant 256 : i32
    %460 = vector.broadcast %c256_i32_187 : i32 to vector<1x512xi32>
    %461 = arith.cmpi slt, %459, %460 : vector<1x512xi32>
    %462 = arith.andi %457, %461 : vector<1x512xi1>
    %c2_i32_188 = arith.constant 2 : i32
    %463 = tpu.dynamic_rotate %275 by %c2_i32_188 dim 1 : vector<1x512xf32>, i32 -> vector<1x512xf32>
    %cst_189 = arith.constant 0.000000e+00 : f32
    %464 = vector.broadcast %cst_189 : f32 to vector<1x512xf32>
    %465 = arith.select %462, %463, %464 : vector<1x512xi1>, vector<1x512xf32>
    %466 = vector.broadcast %453 : f32 to vector<1x512xf32>
    %467 = arith.mulf %466, %465 : vector<1x512xf32>
    %468 = arith.addf %452, %467 : vector<1x512xf32>
    %c6 = arith.constant 6 : index
    %469 = memref.load %arg8[%c6] : memref<30xf32, #tpu.memory_space<smem>>
    %c-1_i32_190 = arith.constant -1 : i32
    %470 = vector.broadcast %c-1_i32_190 : i32 to vector<1x512xi32>
    %471 = arith.addi %1, %470 : vector<1x512xi32>
    %c0_i32_191 = arith.constant 0 : i32
    %472 = vector.broadcast %c0_i32_191 : i32 to vector<1x512xi32>
    %473 = arith.cmpi sge, %471, %472 : vector<1x512xi32>
    %c-1_i32_192 = arith.constant -1 : i32
    %474 = vector.broadcast %c-1_i32_192 : i32 to vector<1x512xi32>
    %475 = arith.addi %1, %474 : vector<1x512xi32>
    %c256_i32_193 = arith.constant 256 : i32
    %476 = vector.broadcast %c256_i32_193 : i32 to vector<1x512xi32>
    %477 = arith.cmpi slt, %475, %476 : vector<1x512xi32>
    %478 = arith.andi %473, %477 : vector<1x512xi1>
    %c1_i32_194 = arith.constant 1 : i32
    %479 = tpu.dynamic_rotate %271 by %c1_i32_194 dim 1 : vector<1x512xf32>, i32 -> vector<1x512xf32>
    %cst_195 = arith.constant 0.000000e+00 : f32
    %480 = vector.broadcast %cst_195 : f32 to vector<1x512xf32>
    %481 = arith.select %478, %479, %480 : vector<1x512xi1>, vector<1x512xf32>
    %482 = vector.broadcast %469 : f32 to vector<1x512xf32>
    %483 = arith.mulf %482, %481 : vector<1x512xf32>
    %484 = arith.addf %468, %483 : vector<1x512xf32>
    %c21 = arith.constant 21 : index
    %485 = memref.load %arg8[%c21] : memref<30xf32, #tpu.memory_space<smem>>
    %c-1_i32_196 = arith.constant -1 : i32
    %486 = vector.broadcast %c-1_i32_196 : i32 to vector<1x512xi32>
    %487 = arith.addi %1, %486 : vector<1x512xi32>
    %c0_i32_197 = arith.constant 0 : i32
    %488 = vector.broadcast %c0_i32_197 : i32 to vector<1x512xi32>
    %489 = arith.cmpi sge, %487, %488 : vector<1x512xi32>
    %c-1_i32_198 = arith.constant -1 : i32
    %490 = vector.broadcast %c-1_i32_198 : i32 to vector<1x512xi32>
    %491 = arith.addi %1, %490 : vector<1x512xi32>
    %c256_i32_199 = arith.constant 256 : i32
    %492 = vector.broadcast %c256_i32_199 : i32 to vector<1x512xi32>
    %493 = arith.cmpi slt, %491, %492 : vector<1x512xi32>
    %494 = arith.andi %489, %493 : vector<1x512xi1>
    %c1_i32_200 = arith.constant 1 : i32
    %495 = tpu.dynamic_rotate %275 by %c1_i32_200 dim 1 : vector<1x512xf32>, i32 -> vector<1x512xf32>
    %cst_201 = arith.constant 0.000000e+00 : f32
    %496 = vector.broadcast %cst_201 : f32 to vector<1x512xf32>
    %497 = arith.select %494, %495, %496 : vector<1x512xi1>, vector<1x512xf32>
    %498 = vector.broadcast %485 : f32 to vector<1x512xf32>
    %499 = arith.mulf %498, %497 : vector<1x512xf32>
    %500 = arith.addf %484, %499 : vector<1x512xf32>
    %c7 = arith.constant 7 : index
    %501 = memref.load %arg8[%c7] : memref<30xf32, #tpu.memory_space<smem>>
    %502 = vector.broadcast %501 : f32 to vector<1x512xf32>
    %503 = arith.mulf %502, %271 : vector<1x512xf32>
    %504 = arith.addf %500, %503 : vector<1x512xf32>
    %c22 = arith.constant 22 : index
    %505 = memref.load %arg8[%c22] : memref<30xf32, #tpu.memory_space<smem>>
    %506 = vector.broadcast %505 : f32 to vector<1x512xf32>
    %507 = arith.mulf %506, %275 : vector<1x512xf32>
    %508 = arith.addf %504, %507 : vector<1x512xf32>
    %c8 = arith.constant 8 : index
    %509 = memref.load %arg8[%c8] : memref<30xf32, #tpu.memory_space<smem>>
    %c1_i32_202 = arith.constant 1 : i32
    %510 = vector.broadcast %c1_i32_202 : i32 to vector<1x512xi32>
    %511 = arith.addi %1, %510 : vector<1x512xi32>
    %c0_i32_203 = arith.constant 0 : i32
    %512 = vector.broadcast %c0_i32_203 : i32 to vector<1x512xi32>
    %513 = arith.cmpi sge, %511, %512 : vector<1x512xi32>
    %c1_i32_204 = arith.constant 1 : i32
    %514 = vector.broadcast %c1_i32_204 : i32 to vector<1x512xi32>
    %515 = arith.addi %1, %514 : vector<1x512xi32>
    %c256_i32_205 = arith.constant 256 : i32
    %516 = vector.broadcast %c256_i32_205 : i32 to vector<1x512xi32>
    %517 = arith.cmpi slt, %515, %516 : vector<1x512xi32>
    %518 = arith.andi %513, %517 : vector<1x512xi1>
    %c511_i32_206 = arith.constant 511 : i32
    %519 = tpu.dynamic_rotate %271 by %c511_i32_206 dim 1 : vector<1x512xf32>, i32 -> vector<1x512xf32>
    %cst_207 = arith.constant 0.000000e+00 : f32
    %520 = vector.broadcast %cst_207 : f32 to vector<1x512xf32>
    %521 = arith.select %518, %519, %520 : vector<1x512xi1>, vector<1x512xf32>
    %522 = vector.broadcast %509 : f32 to vector<1x512xf32>
    %523 = arith.mulf %522, %521 : vector<1x512xf32>
    %524 = arith.addf %508, %523 : vector<1x512xf32>
    %c23 = arith.constant 23 : index
    %525 = memref.load %arg8[%c23] : memref<30xf32, #tpu.memory_space<smem>>
    %c1_i32_208 = arith.constant 1 : i32
    %526 = vector.broadcast %c1_i32_208 : i32 to vector<1x512xi32>
    %527 = arith.addi %1, %526 : vector<1x512xi32>
    %c0_i32_209 = arith.constant 0 : i32
    %528 = vector.broadcast %c0_i32_209 : i32 to vector<1x512xi32>
    %529 = arith.cmpi sge, %527, %528 : vector<1x512xi32>
    %c1_i32_210 = arith.constant 1 : i32
    %530 = vector.broadcast %c1_i32_210 : i32 to vector<1x512xi32>
    %531 = arith.addi %1, %530 : vector<1x512xi32>
    %c256_i32_211 = arith.constant 256 : i32
    %532 = vector.broadcast %c256_i32_211 : i32 to vector<1x512xi32>
    %533 = arith.cmpi slt, %531, %532 : vector<1x512xi32>
    %534 = arith.andi %529, %533 : vector<1x512xi1>
    %c511_i32_212 = arith.constant 511 : i32
    %535 = tpu.dynamic_rotate %275 by %c511_i32_212 dim 1 : vector<1x512xf32>, i32 -> vector<1x512xf32>
    %cst_213 = arith.constant 0.000000e+00 : f32
    %536 = vector.broadcast %cst_213 : f32 to vector<1x512xf32>
    %537 = arith.select %534, %535, %536 : vector<1x512xi1>, vector<1x512xf32>
    %538 = vector.broadcast %525 : f32 to vector<1x512xf32>
    %539 = arith.mulf %538, %537 : vector<1x512xf32>
    %540 = arith.addf %524, %539 : vector<1x512xf32>
    %c9 = arith.constant 9 : index
    %541 = memref.load %arg8[%c9] : memref<30xf32, #tpu.memory_space<smem>>
    %c2_i32_214 = arith.constant 2 : i32
    %542 = vector.broadcast %c2_i32_214 : i32 to vector<1x512xi32>
    %543 = arith.addi %1, %542 : vector<1x512xi32>
    %c0_i32_215 = arith.constant 0 : i32
    %544 = vector.broadcast %c0_i32_215 : i32 to vector<1x512xi32>
    %545 = arith.cmpi sge, %543, %544 : vector<1x512xi32>
    %c2_i32_216 = arith.constant 2 : i32
    %546 = vector.broadcast %c2_i32_216 : i32 to vector<1x512xi32>
    %547 = arith.addi %1, %546 : vector<1x512xi32>
    %c256_i32_217 = arith.constant 256 : i32
    %548 = vector.broadcast %c256_i32_217 : i32 to vector<1x512xi32>
    %549 = arith.cmpi slt, %547, %548 : vector<1x512xi32>
    %550 = arith.andi %545, %549 : vector<1x512xi1>
    %c510_i32_218 = arith.constant 510 : i32
    %551 = tpu.dynamic_rotate %271 by %c510_i32_218 dim 1 : vector<1x512xf32>, i32 -> vector<1x512xf32>
    %cst_219 = arith.constant 0.000000e+00 : f32
    %552 = vector.broadcast %cst_219 : f32 to vector<1x512xf32>
    %553 = arith.select %550, %551, %552 : vector<1x512xi1>, vector<1x512xf32>
    %554 = vector.broadcast %541 : f32 to vector<1x512xf32>
    %555 = arith.mulf %554, %553 : vector<1x512xf32>
    %556 = arith.addf %540, %555 : vector<1x512xf32>
    %c24 = arith.constant 24 : index
    %557 = memref.load %arg8[%c24] : memref<30xf32, #tpu.memory_space<smem>>
    %c2_i32_220 = arith.constant 2 : i32
    %558 = vector.broadcast %c2_i32_220 : i32 to vector<1x512xi32>
    %559 = arith.addi %1, %558 : vector<1x512xi32>
    %c0_i32_221 = arith.constant 0 : i32
    %560 = vector.broadcast %c0_i32_221 : i32 to vector<1x512xi32>
    %561 = arith.cmpi sge, %559, %560 : vector<1x512xi32>
    %c2_i32_222 = arith.constant 2 : i32
    %562 = vector.broadcast %c2_i32_222 : i32 to vector<1x512xi32>
    %563 = arith.addi %1, %562 : vector<1x512xi32>
    %c256_i32_223 = arith.constant 256 : i32
    %564 = vector.broadcast %c256_i32_223 : i32 to vector<1x512xi32>
    %565 = arith.cmpi slt, %563, %564 : vector<1x512xi32>
    %566 = arith.andi %561, %565 : vector<1x512xi1>
    %c510_i32_224 = arith.constant 510 : i32
    %567 = tpu.dynamic_rotate %275 by %c510_i32_224 dim 1 : vector<1x512xf32>, i32 -> vector<1x512xf32>
    %cst_225 = arith.constant 0.000000e+00 : f32
    %568 = vector.broadcast %cst_225 : f32 to vector<1x512xf32>
    %569 = arith.select %566, %567, %568 : vector<1x512xi1>, vector<1x512xf32>
    %570 = vector.broadcast %557 : f32 to vector<1x512xf32>
    %571 = arith.mulf %570, %569 : vector<1x512xf32>
    %572 = arith.addf %556, %571 : vector<1x512xf32>
    %c10 = arith.constant 10 : index
    %573 = memref.load %arg8[%c10] : memref<30xf32, #tpu.memory_space<smem>>
    %c3_i32_226 = arith.constant 3 : i32
    %574 = vector.broadcast %c3_i32_226 : i32 to vector<1x512xi32>
    %575 = arith.addi %1, %574 : vector<1x512xi32>
    %c0_i32_227 = arith.constant 0 : i32
    %576 = vector.broadcast %c0_i32_227 : i32 to vector<1x512xi32>
    %577 = arith.cmpi sge, %575, %576 : vector<1x512xi32>
    %c3_i32_228 = arith.constant 3 : i32
    %578 = vector.broadcast %c3_i32_228 : i32 to vector<1x512xi32>
    %579 = arith.addi %1, %578 : vector<1x512xi32>
    %c256_i32_229 = arith.constant 256 : i32
    %580 = vector.broadcast %c256_i32_229 : i32 to vector<1x512xi32>
    %581 = arith.cmpi slt, %579, %580 : vector<1x512xi32>
    %582 = arith.andi %577, %581 : vector<1x512xi1>
    %c509_i32_230 = arith.constant 509 : i32
    %583 = tpu.dynamic_rotate %271 by %c509_i32_230 dim 1 : vector<1x512xf32>, i32 -> vector<1x512xf32>
    %cst_231 = arith.constant 0.000000e+00 : f32
    %584 = vector.broadcast %cst_231 : f32 to vector<1x512xf32>
    %585 = arith.select %582, %583, %584 : vector<1x512xi1>, vector<1x512xf32>
    %586 = vector.broadcast %573 : f32 to vector<1x512xf32>
    %587 = arith.mulf %586, %585 : vector<1x512xf32>
    %588 = arith.addf %572, %587 : vector<1x512xf32>
    %c25 = arith.constant 25 : index
    %589 = memref.load %arg8[%c25] : memref<30xf32, #tpu.memory_space<smem>>
    %c3_i32_232 = arith.constant 3 : i32
    %590 = vector.broadcast %c3_i32_232 : i32 to vector<1x512xi32>
    %591 = arith.addi %1, %590 : vector<1x512xi32>
    %c0_i32_233 = arith.constant 0 : i32
    %592 = vector.broadcast %c0_i32_233 : i32 to vector<1x512xi32>
    %593 = arith.cmpi sge, %591, %592 : vector<1x512xi32>
    %c3_i32_234 = arith.constant 3 : i32
    %594 = vector.broadcast %c3_i32_234 : i32 to vector<1x512xi32>
    %595 = arith.addi %1, %594 : vector<1x512xi32>
    %c256_i32_235 = arith.constant 256 : i32
    %596 = vector.broadcast %c256_i32_235 : i32 to vector<1x512xi32>
    %597 = arith.cmpi slt, %595, %596 : vector<1x512xi32>
    %598 = arith.andi %593, %597 : vector<1x512xi1>
    %c509_i32_236 = arith.constant 509 : i32
    %599 = tpu.dynamic_rotate %275 by %c509_i32_236 dim 1 : vector<1x512xf32>, i32 -> vector<1x512xf32>
    %cst_237 = arith.constant 0.000000e+00 : f32
    %600 = vector.broadcast %cst_237 : f32 to vector<1x512xf32>
    %601 = arith.select %598, %599, %600 : vector<1x512xi1>, vector<1x512xf32>
    %602 = vector.broadcast %589 : f32 to vector<1x512xf32>
    %603 = arith.mulf %602, %601 : vector<1x512xf32>
    %604 = arith.addf %588, %603 : vector<1x512xf32>
    %c11 = arith.constant 11 : index
    %605 = memref.load %arg8[%c11] : memref<30xf32, #tpu.memory_space<smem>>
    %c4_i32_238 = arith.constant 4 : i32
    %606 = vector.broadcast %c4_i32_238 : i32 to vector<1x512xi32>
    %607 = arith.addi %1, %606 : vector<1x512xi32>
    %c0_i32_239 = arith.constant 0 : i32
    %608 = vector.broadcast %c0_i32_239 : i32 to vector<1x512xi32>
    %609 = arith.cmpi sge, %607, %608 : vector<1x512xi32>
    %c4_i32_240 = arith.constant 4 : i32
    %610 = vector.broadcast %c4_i32_240 : i32 to vector<1x512xi32>
    %611 = arith.addi %1, %610 : vector<1x512xi32>
    %c256_i32_241 = arith.constant 256 : i32
    %612 = vector.broadcast %c256_i32_241 : i32 to vector<1x512xi32>
    %613 = arith.cmpi slt, %611, %612 : vector<1x512xi32>
    %614 = arith.andi %609, %613 : vector<1x512xi1>
    %c508_i32 = arith.constant 508 : i32
    %615 = tpu.dynamic_rotate %271 by %c508_i32 dim 1 : vector<1x512xf32>, i32 -> vector<1x512xf32>
    %cst_242 = arith.constant 0.000000e+00 : f32
    %616 = vector.broadcast %cst_242 : f32 to vector<1x512xf32>
    %617 = arith.select %614, %615, %616 : vector<1x512xi1>, vector<1x512xf32>
    %618 = vector.broadcast %605 : f32 to vector<1x512xf32>
    %619 = arith.mulf %618, %617 : vector<1x512xf32>
    %620 = arith.addf %604, %619 : vector<1x512xf32>
    %c26 = arith.constant 26 : index
    %621 = memref.load %arg8[%c26] : memref<30xf32, #tpu.memory_space<smem>>
    %c4_i32_243 = arith.constant 4 : i32
    %622 = vector.broadcast %c4_i32_243 : i32 to vector<1x512xi32>
    %623 = arith.addi %1, %622 : vector<1x512xi32>
    %c0_i32_244 = arith.constant 0 : i32
    %624 = vector.broadcast %c0_i32_244 : i32 to vector<1x512xi32>
    %625 = arith.cmpi sge, %623, %624 : vector<1x512xi32>
    %c4_i32_245 = arith.constant 4 : i32
    %626 = vector.broadcast %c4_i32_245 : i32 to vector<1x512xi32>
    %627 = arith.addi %1, %626 : vector<1x512xi32>
    %c256_i32_246 = arith.constant 256 : i32
    %628 = vector.broadcast %c256_i32_246 : i32 to vector<1x512xi32>
    %629 = arith.cmpi slt, %627, %628 : vector<1x512xi32>
    %630 = arith.andi %625, %629 : vector<1x512xi1>
    %c508_i32_247 = arith.constant 508 : i32
    %631 = tpu.dynamic_rotate %275 by %c508_i32_247 dim 1 : vector<1x512xf32>, i32 -> vector<1x512xf32>
    %cst_248 = arith.constant 0.000000e+00 : f32
    %632 = vector.broadcast %cst_248 : f32 to vector<1x512xf32>
    %633 = arith.select %630, %631, %632 : vector<1x512xi1>, vector<1x512xf32>
    %634 = vector.broadcast %621 : f32 to vector<1x512xf32>
    %635 = arith.mulf %634, %633 : vector<1x512xf32>
    %636 = arith.addf %620, %635 : vector<1x512xf32>
    %c12 = arith.constant 12 : index
    %637 = memref.load %arg8[%c12] : memref<30xf32, #tpu.memory_space<smem>>
    %c5_i32_249 = arith.constant 5 : i32
    %638 = vector.broadcast %c5_i32_249 : i32 to vector<1x512xi32>
    %639 = arith.addi %1, %638 : vector<1x512xi32>
    %c0_i32_250 = arith.constant 0 : i32
    %640 = vector.broadcast %c0_i32_250 : i32 to vector<1x512xi32>
    %641 = arith.cmpi sge, %639, %640 : vector<1x512xi32>
    %c5_i32_251 = arith.constant 5 : i32
    %642 = vector.broadcast %c5_i32_251 : i32 to vector<1x512xi32>
    %643 = arith.addi %1, %642 : vector<1x512xi32>
    %c256_i32_252 = arith.constant 256 : i32
    %644 = vector.broadcast %c256_i32_252 : i32 to vector<1x512xi32>
    %645 = arith.cmpi slt, %643, %644 : vector<1x512xi32>
    %646 = arith.andi %641, %645 : vector<1x512xi1>
    %c507_i32 = arith.constant 507 : i32
    %647 = tpu.dynamic_rotate %271 by %c507_i32 dim 1 : vector<1x512xf32>, i32 -> vector<1x512xf32>
    %cst_253 = arith.constant 0.000000e+00 : f32
    %648 = vector.broadcast %cst_253 : f32 to vector<1x512xf32>
    %649 = arith.select %646, %647, %648 : vector<1x512xi1>, vector<1x512xf32>
    %650 = vector.broadcast %637 : f32 to vector<1x512xf32>
    %651 = arith.mulf %650, %649 : vector<1x512xf32>
    %652 = arith.addf %636, %651 : vector<1x512xf32>
    %c27 = arith.constant 27 : index
    %653 = memref.load %arg8[%c27] : memref<30xf32, #tpu.memory_space<smem>>
    %c5_i32_254 = arith.constant 5 : i32
    %654 = vector.broadcast %c5_i32_254 : i32 to vector<1x512xi32>
    %655 = arith.addi %1, %654 : vector<1x512xi32>
    %c0_i32_255 = arith.constant 0 : i32
    %656 = vector.broadcast %c0_i32_255 : i32 to vector<1x512xi32>
    %657 = arith.cmpi sge, %655, %656 : vector<1x512xi32>
    %c5_i32_256 = arith.constant 5 : i32
    %658 = vector.broadcast %c5_i32_256 : i32 to vector<1x512xi32>
    %659 = arith.addi %1, %658 : vector<1x512xi32>
    %c256_i32_257 = arith.constant 256 : i32
    %660 = vector.broadcast %c256_i32_257 : i32 to vector<1x512xi32>
    %661 = arith.cmpi slt, %659, %660 : vector<1x512xi32>
    %662 = arith.andi %657, %661 : vector<1x512xi1>
    %c507_i32_258 = arith.constant 507 : i32
    %663 = tpu.dynamic_rotate %275 by %c507_i32_258 dim 1 : vector<1x512xf32>, i32 -> vector<1x512xf32>
    %cst_259 = arith.constant 0.000000e+00 : f32
    %664 = vector.broadcast %cst_259 : f32 to vector<1x512xf32>
    %665 = arith.select %662, %663, %664 : vector<1x512xi1>, vector<1x512xf32>
    %666 = vector.broadcast %653 : f32 to vector<1x512xf32>
    %667 = arith.mulf %666, %665 : vector<1x512xf32>
    %668 = arith.addf %652, %667 : vector<1x512xf32>
    %c13 = arith.constant 13 : index
    %669 = memref.load %arg8[%c13] : memref<30xf32, #tpu.memory_space<smem>>
    %c6_i32_260 = arith.constant 6 : i32
    %670 = vector.broadcast %c6_i32_260 : i32 to vector<1x512xi32>
    %671 = arith.addi %1, %670 : vector<1x512xi32>
    %c0_i32_261 = arith.constant 0 : i32
    %672 = vector.broadcast %c0_i32_261 : i32 to vector<1x512xi32>
    %673 = arith.cmpi sge, %671, %672 : vector<1x512xi32>
    %c6_i32_262 = arith.constant 6 : i32
    %674 = vector.broadcast %c6_i32_262 : i32 to vector<1x512xi32>
    %675 = arith.addi %1, %674 : vector<1x512xi32>
    %c256_i32_263 = arith.constant 256 : i32
    %676 = vector.broadcast %c256_i32_263 : i32 to vector<1x512xi32>
    %677 = arith.cmpi slt, %675, %676 : vector<1x512xi32>
    %678 = arith.andi %673, %677 : vector<1x512xi1>
    %c506_i32 = arith.constant 506 : i32
    %679 = tpu.dynamic_rotate %271 by %c506_i32 dim 1 : vector<1x512xf32>, i32 -> vector<1x512xf32>
    %cst_264 = arith.constant 0.000000e+00 : f32
    %680 = vector.broadcast %cst_264 : f32 to vector<1x512xf32>
    %681 = arith.select %678, %679, %680 : vector<1x512xi1>, vector<1x512xf32>
    %682 = vector.broadcast %669 : f32 to vector<1x512xf32>
    %683 = arith.mulf %682, %681 : vector<1x512xf32>
    %684 = arith.addf %668, %683 : vector<1x512xf32>
    %c28 = arith.constant 28 : index
    %685 = memref.load %arg8[%c28] : memref<30xf32, #tpu.memory_space<smem>>
    %c6_i32_265 = arith.constant 6 : i32
    %686 = vector.broadcast %c6_i32_265 : i32 to vector<1x512xi32>
    %687 = arith.addi %1, %686 : vector<1x512xi32>
    %c0_i32_266 = arith.constant 0 : i32
    %688 = vector.broadcast %c0_i32_266 : i32 to vector<1x512xi32>
    %689 = arith.cmpi sge, %687, %688 : vector<1x512xi32>
    %c6_i32_267 = arith.constant 6 : i32
    %690 = vector.broadcast %c6_i32_267 : i32 to vector<1x512xi32>
    %691 = arith.addi %1, %690 : vector<1x512xi32>
    %c256_i32_268 = arith.constant 256 : i32
    %692 = vector.broadcast %c256_i32_268 : i32 to vector<1x512xi32>
    %693 = arith.cmpi slt, %691, %692 : vector<1x512xi32>
    %694 = arith.andi %689, %693 : vector<1x512xi1>
    %c506_i32_269 = arith.constant 506 : i32
    %695 = tpu.dynamic_rotate %275 by %c506_i32_269 dim 1 : vector<1x512xf32>, i32 -> vector<1x512xf32>
    %cst_270 = arith.constant 0.000000e+00 : f32
    %696 = vector.broadcast %cst_270 : f32 to vector<1x512xf32>
    %697 = arith.select %694, %695, %696 : vector<1x512xi1>, vector<1x512xf32>
    %698 = vector.broadcast %685 : f32 to vector<1x512xf32>
    %699 = arith.mulf %698, %697 : vector<1x512xf32>
    %700 = arith.addf %684, %699 : vector<1x512xf32>
    %c14 = arith.constant 14 : index
    %701 = memref.load %arg8[%c14] : memref<30xf32, #tpu.memory_space<smem>>
    %c7_i32_271 = arith.constant 7 : i32
    %702 = vector.broadcast %c7_i32_271 : i32 to vector<1x512xi32>
    %703 = arith.addi %1, %702 : vector<1x512xi32>
    %c0_i32_272 = arith.constant 0 : i32
    %704 = vector.broadcast %c0_i32_272 : i32 to vector<1x512xi32>
    %705 = arith.cmpi sge, %703, %704 : vector<1x512xi32>
    %c7_i32_273 = arith.constant 7 : i32
    %706 = vector.broadcast %c7_i32_273 : i32 to vector<1x512xi32>
    %707 = arith.addi %1, %706 : vector<1x512xi32>
    %c256_i32_274 = arith.constant 256 : i32
    %708 = vector.broadcast %c256_i32_274 : i32 to vector<1x512xi32>
    %709 = arith.cmpi slt, %707, %708 : vector<1x512xi32>
    %710 = arith.andi %705, %709 : vector<1x512xi1>
    %c505_i32 = arith.constant 505 : i32
    %711 = tpu.dynamic_rotate %271 by %c505_i32 dim 1 : vector<1x512xf32>, i32 -> vector<1x512xf32>
    %cst_275 = arith.constant 0.000000e+00 : f32
    %712 = vector.broadcast %cst_275 : f32 to vector<1x512xf32>
    %713 = arith.select %710, %711, %712 : vector<1x512xi1>, vector<1x512xf32>
    %714 = vector.broadcast %701 : f32 to vector<1x512xf32>
    %715 = arith.mulf %714, %713 : vector<1x512xf32>
    %716 = arith.addf %700, %715 : vector<1x512xf32>
    %c29 = arith.constant 29 : index
    %717 = memref.load %arg8[%c29] : memref<30xf32, #tpu.memory_space<smem>>
    %c7_i32_276 = arith.constant 7 : i32
    %718 = vector.broadcast %c7_i32_276 : i32 to vector<1x512xi32>
    %719 = arith.addi %1, %718 : vector<1x512xi32>
    %c0_i32_277 = arith.constant 0 : i32
    %720 = vector.broadcast %c0_i32_277 : i32 to vector<1x512xi32>
    %721 = arith.cmpi sge, %719, %720 : vector<1x512xi32>
    %c7_i32_278 = arith.constant 7 : i32
    %722 = vector.broadcast %c7_i32_278 : i32 to vector<1x512xi32>
    %723 = arith.addi %1, %722 : vector<1x512xi32>
    %c256_i32_279 = arith.constant 256 : i32
    %724 = vector.broadcast %c256_i32_279 : i32 to vector<1x512xi32>
    %725 = arith.cmpi slt, %723, %724 : vector<1x512xi32>
    %726 = arith.andi %721, %725 : vector<1x512xi1>
    %c505_i32_280 = arith.constant 505 : i32
    %727 = tpu.dynamic_rotate %275 by %c505_i32_280 dim 1 : vector<1x512xf32>, i32 -> vector<1x512xf32>
    %cst_281 = arith.constant 0.000000e+00 : f32
    %728 = vector.broadcast %cst_281 : f32 to vector<1x512xf32>
    %729 = arith.select %726, %727, %728 : vector<1x512xi1>, vector<1x512xf32>
    %730 = vector.broadcast %717 : f32 to vector<1x512xf32>
    %731 = arith.mulf %730, %729 : vector<1x512xf32>
    %732 = arith.addf %716, %731 : vector<1x512xf32>
    %c2_282 = arith.constant 2 : index
    %733 = memref.load %arg9[%c2_282] : memref<3xf32, #tpu.memory_space<smem>>
    %734 = vector.broadcast %733 : f32 to vector<1x512xf32>
    %735 = arith.addf %732, %734 : vector<1x512xf32>
    %cst_283 = arith.constant 0.000000e+00 : f32
    %736 = vector.broadcast %cst_283 : f32 to vector<1x512xf32>
    %737 = arith.subf %736, %735 : vector<1x512xf32>
    %738 = math.exp %737 : vector<1x512xf32>
    %cst_284 = arith.constant 1.000000e+00 : f32
    %739 = vector.broadcast %cst_284 : f32 to vector<1x512xf32>
    %740 = arith.addf %739, %738 : vector<1x512xf32>
    %cst_285 = arith.constant 1.000000e+00 : f32
    %741 = vector.broadcast %cst_285 : f32 to vector<1x512xf32>
    %742 = arith.divf %741, %740 : vector<1x512xf32>
    %743 = arith.mulf %735, %742 : vector<1x512xf32>
    %cst_286 = arith.constant 0.000000e+00 : f32
    %744 = vector.broadcast %cst_286 : f32 to vector<1x512xf32>
    %745 = arith.subf %744, %743 : vector<1x512xf32>
    %746 = math.exp %745 : vector<1x512xf32>
    %cst_287 = arith.constant 1.000000e+00 : f32
    %747 = vector.broadcast %cst_287 : f32 to vector<1x512xf32>
    %748 = arith.addf %747, %746 : vector<1x512xf32>
    %cst_288 = arith.constant 1.000000e+00 : f32
    %749 = vector.broadcast %cst_288 : f32 to vector<1x512xf32>
    %750 = arith.divf %749, %748 : vector<1x512xf32>
    %751 = vector.broadcast %750 : vector<1x512xf32> to vector<32x512xf32>
    %752 = arith.mulf %269, %751 : vector<32x512xf32>
    %c0_289 = arith.constant 0 : index
    %753 = memref.load %arg9[%c0_289] : memref<3xf32, #tpu.memory_space<smem>>
    %c1_290 = arith.constant 1 : index
    %754 = memref.load %arg9[%c1_290] : memref<3xf32, #tpu.memory_space<smem>>
    %755 = tpu.iota {dimensions = array<i32: 0>} : vector<64x1xi32>
    %c32_i32 = arith.constant 32 : i32
    %756 = vector.broadcast %c32_i32 : i32 to vector<64x1xi32>
    %757 = arith.cmpi slt, %755, %756 : vector<64x1xi32>
    %758 = vector.broadcast %753 : f32 to vector<64x1xf32>
    %759 = vector.broadcast %754 : f32 to vector<64x1xf32>
    %760 = arith.select %757, %758, %759 : vector<64x1xi1>, vector<64x1xf32>
    %761 = tpu.concatenate %752, %123 in 0 : vector<32x512xf32>, vector<32x512xf32> -> vector<64x512xf32>
    %cst_291 = arith.constant 9.99999997E-7 : f32
    %762 = vector.broadcast %cst_291 : f32 to vector<64x512xf32>
    %763 = arith.maximumf %761, %762 : vector<64x512xf32>
    %764 = math.log %763 : vector<64x512xf32>
    %765 = vector.broadcast %760 : vector<64x1xf32> to vector<64x512xf32>
    %766 = arith.mulf %764, %765 : vector<64x512xf32>
    %767 = math.exp %766 : vector<64x512xf32>
    %c0_292 = arith.constant 0 : index
    %c0_293 = arith.constant 0 : index
    %768 = vector.load %arg10[%c0_292, %c0_293] : memref<512x256xf32, #tpu.memory_space<vmem>>, vector<512x256xf32>
    %cst_294 = arith.constant dense<0.000000e+00> : vector<64x256xf32>
    %769 = tpu.matmul %767, %768, %cst_294 {dimension_numbers = #tpu.dot_dimension_numbers<[1], [0], [0], [1], [0, 0, 1, 1], [], []>} : vector<64x512xf32>, vector<512x256xf32>, vector<64x256xf32> -> vector<64x256xf32>
    %770 = math.log %769 : vector<64x256xf32>
    %771 = vector.broadcast %760 : vector<64x1xf32> to vector<64x256xf32>
    %772 = arith.divf %770, %771 : vector<64x256xf32>
    %773 = math.exp %772 : vector<64x256xf32>
    %774 = vector.extract_strided_slice %773 {offsets = [0, 0], sizes = [32, 256], strides = [1, 1]} : vector<64x256xf32> to vector<32x256xf32>
    %cst_295 = arith.constant 0.899999976 : f32
    %775 = vector.broadcast %cst_295 : f32 to vector<32x256xf32>
    %776 = arith.mulf %774, %775 : vector<32x256xf32>
    %777 = vector.extract_strided_slice %773 {offsets = [32, 0], sizes = [32, 256], strides = [1, 1]} : vector<64x256xf32> to vector<32x256xf32>
    %778 = arith.addf %776, %777 : vector<32x256xf32>
    %cst_296 = arith.constant 0.000000e+00 : f32
    %779 = vector.broadcast %cst_296 : f32 to vector<32x256xf32>
    %780 = arith.subf %779, %778 : vector<32x256xf32>
    %781 = math.exp %780 : vector<32x256xf32>
    %cst_297 = arith.constant 1.000000e+00 : f32
    %782 = vector.broadcast %cst_297 : f32 to vector<32x256xf32>
    %783 = arith.addf %782, %781 : vector<32x256xf32>
    %cst_298 = arith.constant 1.000000e+00 : f32
    %784 = vector.broadcast %cst_298 : f32 to vector<32x256xf32>
    %785 = arith.divf %784, %783 : vector<32x256xf32>
    %786 = arith.mulf %778, %785 : vector<32x256xf32>
    %787 = vector.extract_strided_slice %786 {offsets = [0, 0], sizes = [32, 128], strides = [1, 1]} : vector<32x256xf32> to vector<32x128xf32>
    %c0_299 = arith.constant 0 : index
    %c0_300 = arith.constant 0 : index
    %c0_301 = arith.constant 0 : index
    %788 = vector.load %arg11[%c0_299, %c0_300, %c0_301] : memref<2x32x128xf32, #tpu.memory_space<vmem>>, vector<1x32x128xf32>
    %789 = vector.shape_cast %788 : vector<1x32x128xf32> to vector<32x128xf32>
    %790 = vector.shape_cast %787 : vector<32x128xf32> to vector<1x32x128xf32>
    tpu.vector_store %arg11[%c0_299, %c0_300, %c0_301], %790 {strides = array<i32>} : memref<2x32x128xf32, #tpu.memory_space<vmem>>, vector<1x32x128xf32>,
    %791 = vector.extract_strided_slice %786 {offsets = [0, 128], sizes = [32, 128], strides = [1, 1]} : vector<32x256xf32> to vector<32x128xf32>
    %c1_302 = arith.constant 1 : index
    %c0_303 = arith.constant 0 : index
    %c0_304 = arith.constant 0 : index
    %792 = vector.load %arg11[%c1_302, %c0_303, %c0_304] : memref<2x32x128xf32, #tpu.memory_space<vmem>>, vector<1x32x128xf32>
    %793 = vector.shape_cast %792 : vector<1x32x128xf32> to vector<32x128xf32>
    %794 = vector.shape_cast %791 : vector<32x128xf32> to vector<1x32x128xf32>
    tpu.vector_store %arg11[%c1_302, %c0_303, %c0_304], %794 {strides = array<i32>} : memref<2x32x128xf32, #tpu.memory_space<vmem>>, vector<1x32x128xf32>,
    return
  }
  func.func @transform_0(%arg0: i32) -> (i32, i32, i32) {
    %c0_i32 = arith.constant 0 : i32
    %c0_i32_0 = arith.constant 0 : i32
    %c0_i32_1 = arith.constant 0 : i32
    return %arg0, %c0_i32, %c0_i32_0 : i32, i32, i32
  }
  func.func @transform_1(%arg0: i32) -> (i32, i32) {
    %c0_i32 = arith.constant 0 : i32
    %c0_i32_0 = arith.constant 0 : i32
    %c0_i32_1 = arith.constant 0 : i32
    return %c0_i32, %c0_i32_0 : i32, i32
  }
  func.func @transform_2(%arg0: i32) -> (i32, i32) {
    %c0_i32 = arith.constant 0 : i32
    %c0_i32_0 = arith.constant 0 : i32
    %c0_i32_1 = arith.constant 0 : i32
    return %c0_i32, %c0_i32_0 : i32, i32
  }
  func.func @transform_3(%arg0: i32) -> (i32, i32) {
    %c0_i32 = arith.constant 0 : i32
    %c0_i32_0 = arith.constant 0 : i32
    %c0_i32_1 = arith.constant 0 : i32
    return %c0_i32, %c0_i32_0 : i32, i32
  }
  func.func @transform_4(%arg0: i32) -> (i32, i32) {
    %c0_i32 = arith.constant 0 : i32
    %c0_i32_0 = arith.constant 0 : i32
    %c0_i32_1 = arith.constant 0 : i32
    return %c0_i32, %c0_i32_0 : i32, i32
  }
  func.func @transform_5(%arg0: i32) -> (i32, i32) {
    %c0_i32 = arith.constant 0 : i32
    %c0_i32_0 = arith.constant 0 : i32
    %c0_i32_1 = arith.constant 0 : i32
    return %c0_i32, %c0_i32_0 : i32, i32
  }
  func.func @transform_6(%arg0: i32) -> (i32, i32) {
    %c0_i32 = arith.constant 0 : i32
    %c0_i32_0 = arith.constant 0 : i32
    %c0_i32_1 = arith.constant 0 : i32
    return %c0_i32, %c0_i32_0 : i32, i32
  }
  func.func @transform_7(%arg0: i32) -> i32 {
    %c0_i32 = arith.constant 0 : i32
    %c0_i32_0 = arith.constant 0 : i32
    return %c0_i32 : i32
  }
  func.func @transform_8(%arg0: i32) -> i32 {
    %c0_i32 = arith.constant 0 : i32
    %c0_i32_0 = arith.constant 0 : i32
    return %c0_i32 : i32
  }
  func.func @transform_9(%arg0: i32) -> (i32, i32) {
    %c0_i32 = arith.constant 0 : i32
    %c0_i32_0 = arith.constant 0 : i32
    %c0_i32_1 = arith.constant 0 : i32
    return %c0_i32, %c0_i32_0 : i32, i32
  }
  func.func @transform_10(%arg0: i32) -> (i32, i32, i32) {
    %c0_i32 = arith.constant 0 : i32
    %c0_i32_0 = arith.constant 0 : i32
    %c0_i32_1 = arith.constant 0 : i32
    return %arg0, %c0_i32, %c0_i32_0 : i32, i32, i32
  }
}

</mosaic_0001>

<llo_original>
// kernel: cbam_resblock_forward.1
$region0: #{cbam_resblock_forward.1}
  #allocation0 [shape = 'u32[]', space=smem, size = 0x4, offset = 0x4, fixed_abs, tag = 'smem constant byte address 0x4 - core index']
  #allocation1 [shape = 'u32[72,128]{1,0:T(1,128)}', space=vmem, size = 0x9000, scoped, tag = 'internal scratch']
  #allocation2 [shape = 'bf16[112,512]{1,0:T(8,128)(2,1)}', space=vmem, size = 0x1c000, scoped, tag = 'scratch operand']
  #allocation3 [shape = 'bf16[224,512]{1,0:T(8,128)(2,1)}', space=vmem, size = 0x38000, scoped, tag = 'scratch operand']
  %s0 = inlined_call_operand.vmem [shape: f32[2,16,256], index: 0, kind: input, shape index: {}]
  %s1 = inlined_call_operand.vmem [shape: bf16[64,112], index: 1, kind: input, shape index: {}]
  %s2 = inlined_call_operand.vmem [shape: f32[64,1], index: 2, kind: input, shape index: {}]
  %s3 = inlined_call_operand.vmem [shape: bf16[32,224], index: 3, kind: input, shape index: {}]
  %s4 = inlined_call_operand.vmem [shape: f32[32,1], index: 4, kind: input, shape index: {}]
  %s5 = inlined_call_operand.vmem [shape: f32[8,32], index: 5, kind: input, shape index: {}]
  %s6 = inlined_call_operand.vmem [shape: f32[32,8], index: 6, kind: input, shape index: {}]
  %s7 = inlined_call_operand.vmem [shape: f32[30], index: 7, kind: input, shape index: {}]
  %s8 = inlined_call_operand.vmem [shape: f32[3], index: 8, kind: input, shape index: {}]
  %s9 = inlined_call_operand.vmem [shape: f32[512,256], index: 9, kind: input, shape index: {}]
  %s10 = inlined_call_operand.hbm [shape: f32[2,32,128], index: 10, kind: output, shape index: {}]
  %s11 = sld [smem:[#allocation0]]
  $region58: #{cbam_resblock_forward.1} parent=0
    _
  %s13 = ssub.s32 1, %s11
  %s14 = scalar_select 0, %s13, %s11
  $region1: #{cbam_resblock_forward.1} parent=0
    #allocation4 [shape = 'u8[512]{0}', space=smem, size = 0x200, scoped, tag = 'input window, operand 7, single buffered']
    #allocation5 [shape = 's32[1]{0}', space=sflag, size = 0x4, scoped, tag = 'scoped memory for cbam_resblock_forward.1']
    #allocation6 [shape = 's32[1]{0}', space=sflag, size = 0x4, scoped, tag = 'scoped memory for cbam_resblock_forward.1']
    #allocation7 [shape = 'u8[512]{0}', space=smem, size = 0x200, scoped, tag = 'input window, operand 8, single buffered']
    #allocation8 [shape = 's32[1]{0}', space=sflag, size = 0x4, scoped, tag = 'scoped memory for cbam_resblock_forward.1']
    #allocation9 [shape = 'u8[32768]{0}', space=vmem, size = 0x8000, scoped, tag = 'output window, operand 0, single buffered']
    %15 = vsyncpa [#allocation6], 0
    %16 = vsyncpa [#allocation8], 0
    %17 = vsyncpa [#allocation5], 0
    // Predicated region
    $region2: #{cbam_resblock_forward.1} parent=1 // pred_check
      _
    $region3: #{cbam_resblock_forward.1} parent=1 // pred_check_branch
      %19 = sbr.rel (0) target = $region5
    $region4: #{cbam_resblock_forward.1} parent=1 // pred_region
      _
    $region5: #{cbam_resblock_forward.1} parent=1 // pred_fallthru
      _
    // Predicated region
    $region6: #{cbam_resblock_forward.1} parent=1 // pred_check
      _
    $region7: #{cbam_resblock_forward.1} parent=1 // pred_check_branch
      %21 = sbr.rel (0) target = $region9
    $region8: #{cbam_resblock_forward.1} parent=1 // pred_region
      _
    $region9: #{cbam_resblock_forward.1} parent=1 // pred_fallthru
      _
    // Predicated region
    $region10: #{cbam_resblock_forward.1} parent=1 // pred_check
      _
    $region11: #{cbam_resblock_forward.1} parent=1 // pred_check_branch
      %23 = sbr.rel (0) target = $region13
    $region12: #{cbam_resblock_forward.1} parent=1 // pred_region
      _
    $region13: #{cbam_resblock_forward.1} parent=1 // pred_fallthru
      _
    // Predicated region
    $region14: #{cbam_resblock_forward.1} parent=1 // pred_check
      _
    $region15: #{cbam_resblock_forward.1} parent=1 // pred_check_branch
      %25 = sbr.rel (0) target = $region17
    $region16: #{cbam_resblock_forward.1} parent=1 // pred_region
      _
    $region17: #{cbam_resblock_forward.1} parent=1 // pred_fallthru
      _
    // Predicated region
    $region18: #{cbam_resblock_forward.1} parent=1 // pred_check
      _
    $region19: #{cbam_resblock_forward.1} parent=1 // pred_check_branch
      %27 = sbr.rel (0) target = $region21
    $region20: #{cbam_resblock_forward.1} parent=1 // pred_region
      _
    $region21: #{cbam_resblock_forward.1} parent=1 // pred_fallthru
      _
    // Predicated region
    $region22: #{cbam_resblock_forward.1} parent=1 // pred_check
      _
    $region23: #{cbam_resblock_forward.1} parent=1 // pred_check_branch
      %29 = sbr.rel (0) target = $region25
    $region24: #{cbam_resblock_forward.1} parent=1 // pred_region
      _
    $region25: #{cbam_resblock_forward.1} parent=1 // pred_fallthru
      _
    // Predicated region
    $region26: #{cbam_resblock_forward.1} parent=1 // pred_check
      _
    $region27: #{cbam_resblock_forward.1} parent=1 // pred_check_branch
      %31 = sbr.rel (0) target = $region29
    $region28: #{cbam_resblock_forward.1} parent=1 // pred_region
      _
    $region29: #{cbam_resblock_forward.1} parent=1 // pred_fallthru
      _
    // Predicated region
    $region30: #{cbam_resblock_forward.1} parent=1 // pred_check
      _
    $region31: #{cbam_resblock_forward.1} parent=1 // pred_check_branch
      %33 = sbr.rel (0) target = $region33
    $region32: #{cbam_resblock_forward.1} parent=1 // pred_region
      %35 = vsyncadd [#allocation6], 0
      %s37 = sshll.u32 %s7, 4
      %s38 = int_to_ptr.vmem [resolvable:$true] %s37
      %40 = dma.vmem_to_smem %s38, 16, [#allocation4], [#allocation6]
    $region33: #{cbam_resblock_forward.1} parent=1 // pred_fallthru
      _
    // Predicated region
    $region34: #{cbam_resblock_forward.1} parent=1 // pred_check
      _
    $region35: #{cbam_resblock_forward.1} parent=1 // pred_check_branch
      %42 = sbr.rel (0) target = $region37
    $region36: #{cbam_resblock_forward.1} parent=1 // pred_region
      %44 = vsyncadd [#allocation8], 0
      %s46 = sshll.u32 %s8, 4
      %s47 = int_to_ptr.vmem [resolvable:$true] %s46
      %49 = dma.vmem_to_smem %s47, 16, [#allocation7], [#allocation8]
    $region37: #{cbam_resblock_forward.1} parent=1 // pred_fallthru
      _
    // Predicated region
    $region38: #{cbam_resblock_forward.1} parent=1 // pred_check
      _
    $region39: #{cbam_resblock_forward.1} parent=1 // pred_check_branch
      %51 = sbr.rel (0) target = $region41
    $region40: #{cbam_resblock_forward.1} parent=1 // pred_region
      _
    $region41: #{cbam_resblock_forward.1} parent=1 // pred_fallthru
      _
    // Predicated region
    $region42: #{cbam_resblock_forward.1} parent=1 // pred_check
      _
    $region43: #{cbam_resblock_forward.1} parent=1 // pred_check_branch
      %53 = sbr.rel (0) target = $region45
    $region44: #{cbam_resblock_forward.1} parent=1 // pred_region
      %55 = dma.done [#allocation6], 16
    $region45: #{cbam_resblock_forward.1} parent=1 // pred_fallthru
      _
    // Predicated region
    $region46: #{cbam_resblock_forward.1} parent=1 // pred_check
      _
    $region47: #{cbam_resblock_forward.1} parent=1 // pred_check_branch
      %57 = sbr.rel (0) target = $region49
    $region48: #{cbam_resblock_forward.1} parent=1 // pred_region
      %59 = dma.done [#allocation8], 16
    $region49: #{cbam_resblock_forward.1} parent=1 // pred_fallthru
      _
    %60 = sfence
    %v62 = vlaneseq
    %v63 = vand.u32 %v62, 127
    %v64 = vadd.s32 %v63, 128
    %v65 = vld [vmem:[%s0] sm:$0xff]
    %v66 = vld [vmem:[%s0 + $0x8] sm:$0xff]
    %v67 = vld [vmem:[%s0 + $0x10] sm:$0xff]
    %v68 = vld [vmem:[%s0 + $0x18] sm:$0xff]
    %s69 = scalar_lea.vmem %s0, 32
    %v70 = vld [vmem:[%s69] sm:$0xff]
    %v71 = vld [vmem:[%s69 + $0x8] sm:$0xff]
    %v72 = vld [vmem:[%s69 + $0x10] sm:$0xff]
    %v73 = vld [vmem:[%s69 + $0x18] sm:$0xff]
    %v74 = vadd.s32 %v63, 4294967293
    %v75 = vadd.s32 %v64, 4294967293
    %vm76 = vcmp.ge.s32.totalorder %v74, 0
    %vm77 = vcmp.ge.s32.totalorder %v75, 0
    %vm78 = vcmp.lt.s32.totalorder %v74, 256
    %vm79 = vcmp.lt.s32.totalorder %v75, 256
    %vm80 = vmand %vm76, %vm78
    %vm81 = vmand %vm77, %vm79
    %82 = vrot.lane.b32.xlu0 %v65, 3
    %v83 = vpop.permute.xlu0 %82
    %84 = vrot.lane.b32.xlu0 %v67, 3
    %v85 = vpop.permute.xlu0 %84
    %86 = vrot.lane.b32.xlu0 %v66, 3
    %v87 = vpop.permute.xlu0 %86
    %88 = vrot.lane.b32.xlu0 %v68, 3
    %v89 = vpop.permute.xlu0 %88
    %90 = vrot.lane.b32.xlu0 %v70, 3
    %v91 = vpop.permute.xlu0 %90
    %92 = vrot.lane.b32.xlu0 %v72, 3
    %v93 = vpop.permute.xlu0 %92
    %94 = vrot.lane.b32.xlu0 %v71, 3
    %v95 = vpop.permute.xlu0 %94
    %96 = vrot.lane.b32.xlu0 %v73, 3
    %v97 = vpop.permute.xlu0 %96
    %vm98 = vcmp.lt.s32.totalorder %v63, 3
    %v99 = vsel %vm98, %v91, %v95
    %v100 = vsel %vm98, %v93, %v97
    %v101 = vsel %vm98, %v87, %v91
    %v102 = vsel %vm98, %v89, %v93
    %v103 = vsel %vm98, %v83, %v87
    %v104 = vsel %vm98, %v85, %v89
    %v105 = vsel %vm98, %v95, %v83
    %v106 = vsel %vm98, %v97, %v85
    %v107 = vsel %vm80, 1, 0
    %v108 = vsel %vm81, 1, 0
    %v109 = vperm.slane %v107, 0
    %v110 = vperm.slane %v108, 0
    %vm111 = vcmp.eq.s32.totalorder %v109, 1
    %vm112 = vcmp.eq.s32.totalorder %v110, 1
    %v113 = vsel %vm111, %v105, 0.0
    %v114 = vsel %vm112, %v103, 0.0
    %v115 = vsel %vm111, %v101, 0.0
    %v116 = vsel %vm112, %v99, 0.0
    %v117 = vsel %vm111, %v106, 0.0
    %v118 = vsel %vm112, %v104, 0.0
    %v119 = vsel %vm111, %v102, 0.0
    %v120 = vsel %vm112, %v100, 0.0
    %v121 = vpack.c.bf16 %v114, %v113
    %v122 = vpack.c.bf16 %v116, %v115
    %v123 = vpack.c.bf16 %v118, %v117
    %v124 = vpack.c.bf16 %v120, %v119
    %125 = vst [vmem:[#allocation2] sm:$0xff] %v121
    %126 = vst [vmem:[#allocation2 + $0x8] sm:$0xff] %v122
    %127 = vst [vmem:[#allocation2 + $0x10] sm:$0xff] %v123
    %128 = vst [vmem:[#allocation2 + $0x18] sm:$0xff] %v124
    %v129 = vadd.s32 %v63, 4294967294
    %v130 = vadd.s32 %v64, 4294967294
    %vm131 = vcmp.ge.s32.totalorder %v129, 0
    %vm132 = vcmp.ge.s32.totalorder %v130, 0
    %vm133 = vcmp.lt.s32.totalorder %v129, 256
    %vm134 = vcmp.lt.s32.totalorder %v130, 256
    %vm135 = vmand %vm131, %vm133
    %vm136 = vmand %vm132, %vm134
    %137 = vrot.lane.b32.xlu0 %v65, 2
    %v138 = vpop.permute.xlu0 %137
    %139 = vrot.lane.b32.xlu0 %v67, 2
    %v140 = vpop.permute.xlu0 %139
    %141 = vrot.lane.b32.xlu0 %v66, 2
    %v142 = vpop.permute.xlu0 %141
    %143 = vrot.lane.b32.xlu0 %v68, 2
    %v144 = vpop.permute.xlu0 %143
    %145 = vrot.lane.b32.xlu0 %v70, 2
    %v146 = vpop.permute.xlu0 %145
    %147 = vrot.lane.b32.xlu0 %v72, 2
    %v148 = vpop.permute.xlu0 %147
    %149 = vrot.lane.b32.xlu0 %v71, 2
    %v150 = vpop.permute.xlu0 %149
    %151 = vrot.lane.b32.xlu0 %v73, 2
    %v152 = vpop.permute.xlu0 %151
    %vm153 = vcmp.lt.s32.totalorder %v63, 2
    %v154 = vsel %vm153, %v146, %v150
    %v155 = vsel %vm153, %v148, %v152
    %v156 = vsel %vm153, %v142, %v146
    %v157 = vsel %vm153, %v144, %v148
    %v158 = vsel %vm153, %v138, %v142
    %v159 = vsel %vm153, %v140, %v144
    %v160 = vsel %vm153, %v150, %v138
    %v161 = vsel %vm153, %v152, %v140
    %v162 = vsel %vm135, 1, 0
    %v163 = vsel %vm136, 1, 0
    %v164 = vperm.slane %v162, 0
    %v165 = vperm.slane %v163, 0
    %vm166 = vcmp.eq.s32.totalorder %v164, 1
    %vm167 = vcmp.eq.s32.totalorder %v165, 1
    %v168 = vsel %vm166, %v160, 0.0
    %v169 = vsel %vm167, %v158, 0.0
    %v170 = vsel %vm166, %v156, 0.0
    %v171 = vsel %vm167, %v154, 0.0
    %v172 = vsel %vm166, %v161, 0.0
    %v173 = vsel %vm167, %v159, 0.0
    %v174 = vsel %vm166, %v157, 0.0
    %v175 = vsel %vm167, %v155, 0.0
    %v176 = vpack.c.bf16 %v169, %v168
    %v177 = vpack.c.bf16 %v171, %v170
    %v178 = vpack.c.bf16 %v173, %v172
    %v179 = vpack.c.bf16 %v175, %v174
    %180 = vst [vmem:[#allocation2 + $0x20] sm:$0xff] %v176
    %181 = vst [vmem:[#allocation2 + $0x28] sm:$0xff] %v177
    %182 = vst [vmem:[#allocation2 + $0x30] sm:$0xff] %v178
    %183 = vst [vmem:[#allocation2 + $0x38] sm:$0xff] %v179
    %v184 = vadd.s32 %v63, 4294967295
    %v185 = vadd.s32 %v64, 4294967295
    %vm186 = vcmp.ge.s32.totalorder %v184, 0
    %vm187 = vcmp.ge.s32.totalorder %v185, 0
    %vm188 = vcmp.lt.s32.totalorder %v184, 256
    %vm189 = vcmp.lt.s32.totalorder %v185, 256
    %vm190 = vmand %vm186, %vm188
    %vm191 = vmand %vm187, %vm189
    %192 = vrot.lane.b32.xlu0 %v65, 1
    %v193 = vpop.permute.xlu0 %192
    %194 = vrot.lane.b32.xlu0 %v67, 1
    %v195 = vpop.permute.xlu0 %194
    %196 = vrot.lane.b32.xlu0 %v66, 1
    %v197 = vpop.permute.xlu0 %196
    %198 = vrot.lane.b32.xlu0 %v68, 1
    %v199 = vpop.permute.xlu0 %198
    %200 = vrot.lane.b32.xlu0 %v70, 1
    %v201 = vpop.permute.xlu0 %200
    %202 = vrot.lane.b32.xlu0 %v72, 1
    %v203 = vpop.permute.xlu0 %202
    %204 = vrot.lane.b32.xlu0 %v71, 1
    %v205 = vpop.permute.xlu0 %204
    %206 = vrot.lane.b32.xlu0 %v73, 1
    %v207 = vpop.permute.xlu0 %206
    %vm208 = vcmp.lt.s32.totalorder %v63, 1
    %v209 = vsel %vm208, %v201, %v205
    %v210 = vsel %vm208, %v203, %v207
    %v211 = vsel %vm208, %v197, %v201
    %v212 = vsel %vm208, %v199, %v203
    %v213 = vsel %vm208, %v193, %v197
    %v214 = vsel %vm208, %v195, %v199
    %v215 = vsel %vm208, %v205, %v193
    %v216 = vsel %vm208, %v207, %v195
    %v217 = vsel %vm190, 1, 0
    %v218 = vsel %vm191, 1, 0
    %v219 = vperm.slane %v217, 0
    %v220 = vperm.slane %v218, 0
    %vm221 = vcmp.eq.s32.totalorder %v219, 1
    %vm222 = vcmp.eq.s32.totalorder %v220, 1
    %v223 = vsel %vm221, %v215, 0.0
    %v224 = vsel %vm222, %v213, 0.0
    %v225 = vsel %vm221, %v211, 0.0
    %v226 = vsel %vm222, %v209, 0.0
    %v227 = vsel %vm221, %v216, 0.0
    %v228 = vsel %vm222, %v214, 0.0
    %v229 = vsel %vm221, %v212, 0.0
    %v230 = vsel %vm222, %v210, 0.0
    %v231 = vpack.c.bf16 %v224, %v223
    %v232 = vpack.c.bf16 %v226, %v225
    %v233 = vpack.c.bf16 %v228, %v227
    %v234 = vpack.c.bf16 %v230, %v229
    %235 = vst [vmem:[#allocation2 + $0x40] sm:$0xff] %v231
    %236 = vst [vmem:[#allocation2 + $0x48] sm:$0xff] %v232
    %237 = vst [vmem:[#allocation2 + $0x50] sm:$0xff] %v233
    %238 = vst [vmem:[#allocation2 + $0x58] sm:$0xff] %v234
    %v239 = vpack.c.bf16 %v66, %v65
    %v240 = vpack.c.bf16 %v71, %v70
    %v241 = vpack.c.bf16 %v68, %v67
    %v242 = vpack.c.bf16 %v73, %v72
    %243 = vst [vmem:[#allocation2 + $0x60] sm:$0xff] %v239
    %244 = vst [vmem:[#allocation2 + $0x68] sm:$0xff] %v240
    %245 = vst [vmem:[#allocation2 + $0x70] sm:$0xff] %v241
    %246 = vst [vmem:[#allocation2 + $0x78] sm:$0xff] %v242
    %v247 = vadd.s32 %v63, 1
    %v248 = vadd.s32 %v64, 1
    %vm249 = vcmp.ge.s32.totalorder %v247, 0
    %vm250 = vcmp.ge.s32.totalorder %v248, 0
    %vm251 = vcmp.lt.s32.totalorder %v247, 256
    %vm252 = vcmp.lt.s32.totalorder %v248, 256
    %vm253 = vmand %vm249, %vm251
    %vm254 = vmand %vm250, %vm252
    %255 = vrot.lane.b32.xlu0 %v65, 127
    %v256 = vpop.permute.xlu0 %255
    %257 = vrot.lane.b32.xlu0 %v67, 127
    %v258 = vpop.permute.xlu0 %257
    %259 = vrot.lane.b32.xlu0 %v66, 127
    %v260 = vpop.permute.xlu0 %259
    %261 = vrot.lane.b32.xlu0 %v68, 127
    %v262 = vpop.permute.xlu0 %261
    %263 = vrot.lane.b32.xlu0 %v70, 127
    %v264 = vpop.permute.xlu0 %263
    %265 = vrot.lane.b32.xlu0 %v72, 127
    %v266 = vpop.permute.xlu0 %265
    %267 = vrot.lane.b32.xlu0 %v71, 127
    %v268 = vpop.permute.xlu0 %267
    %269 = vrot.lane.b32.xlu0 %v73, 127
    %v270 = vpop.permute.xlu0 %269
    %vm271 = vcmp.lt.s32.totalorder %v63, 127
    %v272 = vsel %vm271, %v264, %v268
    %v273 = vsel %vm271, %v266, %v270
    %v274 = vsel %vm271, %v260, %v264
    %v275 = vsel %vm271, %v262, %v266
    %v276 = vsel %vm271, %v256, %v260
    %v277 = vsel %vm271, %v258, %v262
    %v278 = vsel %vm271, %v268, %v256
    %v279 = vsel %vm271, %v270, %v258
    %v280 = vsel %vm253, 1, 0
    %v281 = vsel %vm254, 1, 0
    %v282 = vperm.slane %v280, 0
    %v283 = vperm.slane %v281, 0
    %vm284 = vcmp.eq.s32.totalorder %v282, 1
    %vm285 = vcmp.eq.s32.totalorder %v283, 1
    %v286 = vsel %vm284, %v276, 0.0
    %v287 = vsel %vm285, %v274, 0.0
    %v288 = vsel %vm284, %v272, 0.0
    %v289 = vsel %vm285, %v278, 0.0
    %v290 = vsel %vm284, %v277, 0.0
    %v291 = vsel %vm285, %v275, 0.0
    %v292 = vsel %vm284, %v273, 0.0
    %v293 = vsel %vm285, %v279, 0.0
    %v294 = vpack.c.bf16 %v287, %v286
    %v295 = vpack.c.bf16 %v289, %v288
    %v296 = vpack.c.bf16 %v291, %v290
    %v297 = vpack.c.bf16 %v293, %v292
    %298 = vst [vmem:[#allocation2 + $0x80] sm:$0xff] %v294
    %299 = vst [vmem:[#allocation2 + $0x88] sm:$0xff] %v295
    %300 = vst [vmem:[#allocation2 + $0x90] sm:$0xff] %v296
    %301 = vst [vmem:[#allocation2 + $0x98] sm:$0xff] %v297
    %v302 = vadd.s32 %v63, 2
    %v303 = vadd.s32 %v64, 2
    %vm304 = vcmp.ge.s32.totalorder %v302, 0
    %vm305 = vcmp.ge.s32.totalorder %v303, 0
    %vm306 = vcmp.lt.s32.totalorder %v302, 256
    %vm307 = vcmp.lt.s32.totalorder %v303, 256
    %vm308 = vmand %vm304, %vm306
    %vm309 = vmand %vm305, %vm307
    %310 = vrot.lane.b32.xlu0 %v65, 126
    %v311 = vpop.permute.xlu0 %310
    %312 = vrot.lane.b32.xlu0 %v67, 126
    %v313 = vpop.permute.xlu0 %312
    %314 = vrot.lane.b32.xlu0 %v66, 126
    %v315 = vpop.permute.xlu0 %314
    %316 = vrot.lane.b32.xlu0 %v68, 126
    %v317 = vpop.permute.xlu0 %316
    %318 = vrot.lane.b32.xlu0 %v70, 126
    %v319 = vpop.permute.xlu0 %318
    %320 = vrot.lane.b32.xlu0 %v72, 126
    %v321 = vpop.permute.xlu0 %320
    %322 = vrot.lane.b32.xlu0 %v71, 126
    %v323 = vpop.permute.xlu0 %322
    %324 = vrot.lane.b32.xlu0 %v73, 126
    %v325 = vpop.permute.xlu0 %324
    %vm326 = vcmp.lt.s32.totalorder %v63, 126
    %v327 = vsel %vm326, %v319, %v323
    %v328 = vsel %vm326, %v321, %v325
    %v329 = vsel %vm326, %v315, %v319
    %v330 = vsel %vm326, %v317, %v321
    %v331 = vsel %vm326, %v311, %v315
    %v332 = vsel %vm326, %v313, %v317
    %v333 = vsel %vm326, %v323, %v311
    %v334 = vsel %vm326, %v325, %v313
    %v335 = vsel %vm308, 1, 0
    %v336 = vsel %vm309, 1, 0
    %v337 = vperm.slane %v335, 0
    %v338 = vperm.slane %v336, 0
    %vm339 = vcmp.eq.s32.totalorder %v337, 1
    %vm340 = vcmp.eq.s32.totalorder %v338, 1
    %v341 = vsel %vm339, %v331, 0.0
    %v342 = vsel %vm340, %v329, 0.0
    %v343 = vsel %vm339, %v327, 0.0
    %v344 = vsel %vm340, %v333, 0.0
    %v345 = vsel %vm339, %v332, 0.0
    %v346 = vsel %vm340, %v330, 0.0
    %v347 = vsel %vm339, %v328, 0.0
    %v348 = vsel %vm340, %v334, 0.0
    %v349 = vpack.c.bf16 %v342, %v341
    %v350 = vpack.c.bf16 %v344, %v343
    %v351 = vpack.c.bf16 %v346, %v345
    %v352 = vpack.c.bf16 %v348, %v347
    %353 = vst [vmem:[#allocation2 + $0xa0] sm:$0xff] %v349
    %354 = vst [vmem:[#allocation2 + $0xa8] sm:$0xff] %v350
    %355 = vst [vmem:[#allocation2 + $0xb0] sm:$0xff] %v351
    %356 = vst [vmem:[#allocation2 + $0xb8] sm:$0xff] %v352
    %v357 = vadd.s32 %v63, 3
    %v358 = vadd.s32 %v64, 3
    %vm359 = vcmp.ge.s32.totalorder %v357, 0
    %vm360 = vcmp.ge.s32.totalorder %v358, 0
    %vm361 = vcmp.lt.s32.totalorder %v357, 256
    %vm362 = vcmp.lt.s32.totalorder %v358, 256
    %vm363 = vmand %vm359, %vm361
    %vm364 = vmand %vm360, %vm362
    %365 = vrot.lane.b32.xlu0 %v65, 125
    %v366 = vpop.permute.xlu0 %365
    %367 = vrot.lane.b32.xlu0 %v67, 125
    %v368 = vpop.permute.xlu0 %367
    %369 = vrot.lane.b32.xlu0 %v66, 125
    %v370 = vpop.permute.xlu0 %369
    %371 = vrot.lane.b32.xlu0 %v68, 125
    %v372 = vpop.permute.xlu0 %371
    %373 = vrot.lane.b32.xlu0 %v70, 125
    %v374 = vpop.permute.xlu0 %373
    %375 = vrot.lane.b32.xlu0 %v72, 125
    %v376 = vpop.permute.xlu0 %375
    %377 = vrot.lane.b32.xlu0 %v71, 125
    %v378 = vpop.permute.xlu0 %377
    %379 = vrot.lane.b32.xlu0 %v73, 125
    %v380 = vpop.permute.xlu0 %379
    %vm381 = vcmp.lt.s32.totalorder %v63, 125
    %v382 = vsel %vm381, %v374, %v378
    %v383 = vsel %vm381, %v376, %v380
    %v384 = vsel %vm381, %v370, %v374
    %v385 = vsel %vm381, %v372, %v376
    %v386 = vsel %vm381, %v366, %v370
    %v387 = vsel %vm381, %v368, %v372
    %v388 = vsel %vm381, %v378, %v366
    %v389 = vsel %vm381, %v380, %v368
    %v390 = vsel %vm363, 1, 0
    %v391 = vsel %vm364, 1, 0
    %v392 = vperm.slane %v390, 0
    %v393 = vperm.slane %v391, 0
    %vm394 = vcmp.eq.s32.totalorder %v392, 1
    %vm395 = vcmp.eq.s32.totalorder %v393, 1
    %v396 = vsel %vm394, %v386, 0.0
    %v397 = vsel %vm395, %v384, 0.0
    %v398 = vsel %vm394, %v382, 0.0
    %v399 = vsel %vm395, %v388, 0.0
    %v400 = vsel %vm394, %v387, 0.0
    %v401 = vsel %vm395, %v385, 0.0
    %v402 = vsel %vm394, %v383, 0.0
    %v403 = vsel %vm395, %v389, 0.0
    %v404 = vpack.c.bf16 %v397, %v396
    %v405 = vpack.c.bf16 %v399, %v398
    %v406 = vpack.c.bf16 %v401, %v400
    %v407 = vpack.c.bf16 %v403, %v402
    %408 = vst [vmem:[#allocation2 + $0xc0] sm:$0xff] %v404
    %409 = vst [vmem:[#allocation2 + $0xc8] sm:$0xff] %v405
    %410 = vst [vmem:[#allocation2 + $0xd0] sm:$0xff] %v406
    %411 = vst [vmem:[#allocation2 + $0xd8] sm:$0xff] %v407
    %v412 = vld [vmem:[%s1] sm:$0xf]
    %v413 = vld [vmem:[%s1 + $0x4] sm:$0xf]
    %v414 = vld [vmem:[%s1 + $0x8] sm:$0xf]
    %v415 = vld [vmem:[%s1 + $0xc] sm:$0xf]
    %v416 = vld [vmem:[%s1 + $0x10] sm:$0xf]
    %v417 = vld [vmem:[%s1 + $0x14] sm:$0xf]
    %v418 = vld [vmem:[%s1 + $0x18] sm:$0xf]
    %v419 = vld [vmem:[%s1 + $0x1c] sm:$0xf]
    %v420 = vld [vmem:[#allocation2] sm:$0xff]
    %v421 = vld [vmem:[#allocation2 + $0x8] sm:$0xff]
    %v422 = vld [vmem:[#allocation2 + $0x10] sm:$0xff]
    %v423 = vld [vmem:[#allocation2 + $0x18] sm:$0xff]
    %v424 = vld [vmem:[#allocation2 + $0x20] sm:$0xff]
    %v425 = vld [vmem:[#allocation2 + $0x28] sm:$0xff]
    %v426 = vld [vmem:[#allocation2 + $0x30] sm:$0xff]
    %v427 = vld [vmem:[#allocation2 + $0x38] sm:$0xff]
    %v428 = vld [vmem:[#allocation2 + $0x40] sm:$0xff]
    %v429 = vld [vmem:[#allocation2 + $0x48] sm:$0xff]
    %v430 = vld [vmem:[#allocation2 + $0x50] sm:$0xff]
    %v431 = vld [vmem:[#allocation2 + $0x58] sm:$0xff]
    %v432 = vld [vmem:[#allocation2 + $0x60] sm:$0xff]
    %v433 = vld [vmem:[#allocation2 + $0x68] sm:$0xff]
    %v434 = vld [vmem:[#allocation2 + $0x70] sm:$0xff]
    %v435 = vld [vmem:[#allocation2 + $0x78] sm:$0xff]
    %v436 = vld [vmem:[#allocation2 + $0x80] sm:$0xff]
    %v437 = vld [vmem:[#allocation2 + $0x88] sm:$0xff]
    %v438 = vld [vmem:[#allocation2 + $0x90] sm:$0xff]
    %v439 = vld [vmem:[#allocation2 + $0x98] sm:$0xff]
    %v440 = vld [vmem:[#allocation2 + $0xa0] sm:$0xff]
    %v441 = vld [vmem:[#allocation2 + $0xa8] sm:$0xff]
    %v442 = vld [vmem:[#allocation2 + $0xb0] sm:$0xff]
    %v443 = vld [vmem:[#allocation2 + $0xb8] sm:$0xff]
    %v444 = vld [vmem:[#allocation2 + $0xc0] sm:$0xff]
    %v445 = vld [vmem:[#allocation2 + $0xc8] sm:$0xff]
    %v446 = vld [vmem:[#allocation2 + $0xd0] sm:$0xff]
    %v447 = vld [vmem:[#allocation2 + $0xd8] sm:$0xff]
    %v448 = vld [vmem:[%s2] sm:$0xff]
    %v449 = vld [vmem:[%s2 + $0x8] sm:$0xff]
    %v450 = vld [vmem:[%s2 + $0x10] sm:$0xff]
    %v451 = vld [vmem:[%s2 + $0x18] sm:$0xff]
    %v452 = vld [vmem:[%s2 + $0x20] sm:$0xff]
    %v453 = vld [vmem:[%s2 + $0x28] sm:$0xff]
    %v454 = vld [vmem:[%s2 + $0x30] sm:$0xff]
    %v455 = vld [vmem:[%s2 + $0x38] sm:$0xff]
    %457 = vset.pattern.permute.xlu0 0
    %458 = vperm.xlu0 %457, %v448
    %v459 = vpop.permute.xlu0 %458
    %462 = vset.pattern.permute.xlu0 0
    %463 = vperm.xlu0 %462, %v449
    %v464 = vpop.permute.xlu0 %463
    %467 = vset.pattern.permute.xlu0 0
    %468 = vperm.xlu0 %467, %v450
    %v469 = vpop.permute.xlu0 %468
    %472 = vset.pattern.permute.xlu0 0
    %473 = vperm.xlu0 %472, %v451
    %v474 = vpop.permute.xlu0 %473
    %477 = vset.pattern.permute.xlu0 0
    %478 = vperm.xlu0 %477, %v452
    %v479 = vpop.permute.xlu0 %478
    %482 = vset.pattern.permute.xlu0 0
    %483 = vperm.xlu0 %482, %v453
    %v484 = vpop.permute.xlu0 %483
    %487 = vset.pattern.permute.xlu0 0
    %488 = vperm.xlu0 %487, %v454
    %v489 = vpop.permute.xlu0 %488
    %492 = vset.pattern.permute.xlu0 0
    %493 = vperm.xlu0 %492, %v455
    %v494 = vpop.permute.xlu0 %493
    %v504 = vunpack.c.l.b16 %v412
    %v505 = vunpack.c.l.b16 %v413
    %v506 = vunpack.c.l.b16 %v414
    %v507 = vunpack.c.l.b16 %v415
    %v508 = vunpack.c.l.b16 %v416
    %v509 = vunpack.c.l.b16 %v417
    %v510 = vunpack.c.l.b16 %v418
    %v511 = vunpack.c.l.b16 %v419
    %v512 = vpack.c.b16 %v505, %v504
    %v513 = vpack.c.b16 %v507, %v506
    %v514 = vpack.c.b16 %v509, %v508
    %v515 = vpack.c.b16 %v511, %v510
    %v544 = vunpack.c.l.b16 %v420
    %v545 = vunpack.c.h.b16 %v420
    %v546 = vunpack.c.l.b16 %v421
    %v547 = vunpack.c.h.b16 %v421
    %v548 = vunpack.c.l.b16 %v422
    %v549 = vunpack.c.h.b16 %v422
    %v550 = vunpack.c.l.b16 %v423
    %v551 = vunpack.c.h.b16 %v423
    %v552 = vunpack.c.l.b16 %v424
    %v553 = vunpack.c.h.b16 %v424
    %v554 = vunpack.c.l.b16 %v425
    %v555 = vunpack.c.h.b16 %v425
    %v556 = vunpack.c.l.b16 %v426
    %v557 = vunpack.c.h.b16 %v426
    %v558 = vunpack.c.l.b16 %v427
    %v559 = vunpack.c.h.b16 %v427
    %v560 = vunpack.c.l.b16 %v428
    %v561 = vunpack.c.h.b16 %v428
    %v562 = vunpack.c.l.b16 %v429
    %v563 = vunpack.c.h.b16 %v429
    %v564 = vunpack.c.l.b16 %v430
    %v565 = vunpack.c.h.b16 %v430
    %v566 = vunpack.c.l.b16 %v431
    %v567 = vunpack.c.h.b16 %v431
    %v568 = vunpack.c.l.b16 %v432
    %v569 = vunpack.c.h.b16 %v432
    %v570 = vunpack.c.l.b16 %v433
    %v571 = vunpack.c.h.b16 %v433
    %v572 = vunpack.c.l.b16 %v434
    %v573 = vunpack.c.h.b16 %v434
    %v574 = vunpack.c.l.b16 %v435
    %v575 = vunpack.c.h.b16 %v435
    %v576 = vunpack.c.l.b16 %v436
    %v577 = vunpack.c.h.b16 %v436
    %v578 = vunpack.c.l.b16 %v437
    %v579 = vunpack.c.h.b16 %v437
    %v580 = vunpack.c.l.b16 %v438
    %v581 = vunpack.c.h.b16 %v438
    %v582 = vunpack.c.l.b16 %v439
    %v583 = vunpack.c.h.b16 %v439
    %v584 = vunpack.c.l.b16 %v440
    %v585 = vunpack.c.h.b16 %v440
    %v586 = vunpack.c.l.b16 %v441
    %v587 = vunpack.c.h.b16 %v441
    %v588 = vunpack.c.l.b16 %v442
    %v589 = vunpack.c.h.b16 %v442
    %v590 = vunpack.c.l.b16 %v443
    %v591 = vunpack.c.h.b16 %v443
    %v592 = vunpack.c.l.b16 %v444
    %v593 = vunpack.c.h.b16 %v444
    %v594 = vunpack.c.l.b16 %v445
    %v595 = vunpack.c.h.b16 %v445
    %v596 = vunpack.c.l.b16 %v446
    %v597 = vunpack.c.h.b16 %v446
    %v598 = vunpack.c.l.b16 %v447
    %v599 = vunpack.c.h.b16 %v447
    %v600 = vpack.c.b16 %v548, %v544
    %v601 = vpack.c.b16 %v549, %v545
    %v602 = vpack.c.b16 %v550, %v546
    %v603 = vpack.c.b16 %v551, %v547
    %v604 = vpack.c.b16 %v556, %v552
    %v605 = vpack.c.b16 %v557, %v553
    %v606 = vpack.c.b16 %v558, %v554
    %v607 = vpack.c.b16 %v559, %v555
    %v608 = vpack.c.b16 %v564, %v560
    %v609 = vpack.c.b16 %v565, %v561
    %v610 = vpack.c.b16 %v566, %v562
    %v611 = vpack.c.b16 %v567, %v563
    %v612 = vpack.c.b16 %v572, %v568
    %v613 = vpack.c.b16 %v573, %v569
    %v614 = vpack.c.b16 %v574, %v570
    %v615 = vpack.c.b16 %v575, %v571
    %v616 = vpack.c.b16 %v580, %v576
    %v617 = vpack.c.b16 %v581, %v577
    %v618 = vpack.c.b16 %v582, %v578
    %v619 = vpack.c.b16 %v583, %v579
    %v620 = vpack.c.b16 %v588, %v584
    %v621 = vpack.c.b16 %v589, %v585
    %v622 = vpack.c.b16 %v590, %v586
    %v623 = vpack.c.b16 %v591, %v587
    %v624 = vpack.c.b16 %v596, %v592
    %v625 = vpack.c.b16 %v597, %v593
    %v626 = vpack.c.b16 %v598, %v594
    %v627 = vpack.c.b16 %v599, %v595
    %vm656 = vcmask 916480
    %v658 = vsel %vm656, %v512, 0
    %v661 = vsel %vm656, %v513, 0
    %v664 = vsel %vm656, %v514, 0
    %v667 = vsel %vm656, %v515, 0
    %669 = vmatpush.bf16.msra.mxu0 0
    %670 = vmatpush.bf16.msra.mxu0 %v624
    %671 = vmatpush.bf16.msra.mxu0 %v620
    %672 = vmatpush.bf16.msra.mxu0 %v616
    %673 = vmatpush.bf16.msra.mxu0 %v612
    %674 = vmatpush.bf16.msra.mxu0 %v608
    %675 = vmatpush.bf16.msra.mxu0 %v604
    %676 = vmatpush.bf16.msra.mxu0 %v600
    %677 = vmatmul.bf16.gmra.mxu0 %v658
    %v678 = vpop.f32.mrf.mxu0
    %v679 = vadd.f32 %v459, %v678
    %v680 = vpop.f32.mrf.mxu0
    %v681 = vadd.f32 %v464, %v680
    %682 = vmatmul.bf16.gmra.mxu0 %v661
    %v683 = vpop.f32.mrf.mxu0
    %v684 = vadd.f32 %v469, %v683
    %v685 = vpop.f32.mrf.mxu0
    %v686 = vadd.f32 %v474, %v685
    %687 = vmatmul.bf16.gmra.mxu0 %v664
    %v688 = vpop.f32.mrf.mxu0
    %v689 = vadd.f32 %v479, %v688
    %v690 = vpop.f32.mrf.mxu0
    %v691 = vadd.f32 %v484, %v690
    %692 = vmatmul.bf16.gmra.mxu0 %v667
    %v693 = vpop.f32.mrf.mxu0
    %v694 = vadd.f32 %v489, %v693
    %v695 = vpop.f32.mrf.mxu0
    %v696 = vadd.f32 %v494, %v695
    %697 = vdwg.mxu0
    %698 = vmatpush.bf16.msra.mxu0 0
    %699 = vmatpush.bf16.msra.mxu0 %v625
    %700 = vmatpush.bf16.msra.mxu0 %v621
    %701 = vmatpush.bf16.msra.mxu0 %v617
    %702 = vmatpush.bf16.msra.mxu0 %v613
    %703 = vmatpush.bf16.msra.mxu0 %v609
    %704 = vmatpush.bf16.msra.mxu0 %v605
    %705 = vmatpush.bf16.msra.mxu0 %v601
    %706 = vmatmul.bf16.gmra.mxu0 %v658
    %v707 = vpop.f32.mrf.mxu0
    %v708 = vadd.f32 %v459, %v707
    %v709 = vpop.f32.mrf.mxu0
    %v710 = vadd.f32 %v464, %v709
    %711 = vmatmul.bf16.gmra.mxu0 %v661
    %v712 = vpop.f32.mrf.mxu0
    %v713 = vadd.f32 %v469, %v712
    %v714 = vpop.f32.mrf.mxu0
    %v715 = vadd.f32 %v474, %v714
    %716 = vmatmul.bf16.gmra.mxu0 %v664
    %v717 = vpop.f32.mrf.mxu0
    %v718 = vadd.f32 %v479, %v717
    %v719 = vpop.f32.mrf.mxu0
    %v720 = vadd.f32 %v484, %v719
    %721 = vmatmul.bf16.gmra.mxu0 %v667
    %v722 = vpop.f32.mrf.mxu0
    %v723 = vadd.f32 %v489, %v722
    %v724 = vpop.f32.mrf.mxu0
    %v725 = vadd.f32 %v494, %v724
    %726 = vdwg.mxu0
    %727 = vmatpush.bf16.msra.mxu0 0
    %728 = vmatpush.bf16.msra.mxu0 %v626
    %729 = vmatpush.bf16.msra.mxu0 %v622
    %730 = vmatpush.bf16.msra.mxu0 %v618
    %731 = vmatpush.bf16.msra.mxu0 %v614
    %732 = vmatpush.bf16.msra.mxu0 %v610
    %733 = vmatpush.bf16.msra.mxu0 %v606
    %734 = vmatpush.bf16.msra.mxu0 %v602
    %735 = vmatmul.bf16.gmra.mxu0 %v658
    %v736 = vpop.f32.mrf.mxu0
    %v737 = vadd.f32 %v459, %v736
    %v738 = vpop.f32.mrf.mxu0
    %v739 = vadd.f32 %v464, %v738
    %740 = vmatmul.bf16.gmra.mxu0 %v661
    %v741 = vpop.f32.mrf.mxu0
    %v742 = vadd.f32 %v469, %v741
    %v743 = vpop.f32.mrf.mxu0
    %v744 = vadd.f32 %v474, %v743
    %745 = vmatmul.bf16.gmra.mxu0 %v664
    %v746 = vpop.f32.mrf.mxu0
    %v747 = vadd.f32 %v479, %v746
    %v748 = vpop.f32.mrf.mxu0
    %v749 = vadd.f32 %v484, %v748
    %750 = vmatmul.bf16.gmra.mxu0 %v667
    %v751 = vpop.f32.mrf.mxu0
    %v752 = vadd.f32 %v489, %v751
    %v753 = vpop.f32.mrf.mxu0
    %v754 = vadd.f32 %v494, %v753
    %755 = vdwg.mxu0
    %756 = vmatpush.bf16.msra.mxu0 0
    %757 = vmatpush.bf16.msra.mxu0 %v627
    %758 = vmatpush.bf16.msra.mxu0 %v623
    %759 = vmatpush.bf16.msra.mxu0 %v619
    %760 = vmatpush.bf16.msra.mxu0 %v615
    %761 = vmatpush.bf16.msra.mxu0 %v611
    %762 = vmatpush.bf16.msra.mxu0 %v607
    %763 = vmatpush.bf16.msra.mxu0 %v603
    %764 = vmatmul.bf16.gmra.mxu0 %v658
    %v765 = vpop.f32.mrf.mxu0
    %v766 = vadd.f32 %v459, %v765
    %v767 = vpop.f32.mrf.mxu0
    %v768 = vadd.f32 %v464, %v767
    %769 = vmatmul.bf16.gmra.mxu0 %v661
    %v770 = vpop.f32.mrf.mxu0
    %v771 = vadd.f32 %v469, %v770
    %v772 = vpop.f32.mrf.mxu0
    %v773 = vadd.f32 %v474, %v772
    %774 = vmatmul.bf16.gmra.mxu0 %v664
    %v775 = vpop.f32.mrf.mxu0
    %v776 = vadd.f32 %v479, %v775
    %v777 = vpop.f32.mrf.mxu0
    %v778 = vadd.f32 %v484, %v777
    %779 = vmatmul.bf16.gmra.mxu0 %v667
    %v780 = vpop.f32.mrf.mxu0
    %v781 = vadd.f32 %v489, %v780
    %v782 = vpop.f32.mrf.mxu0
    %v783 = vadd.f32 %v494, %v782
    %784 = vdwg.mxu0
    %v785 = vsub.f32 0.0, %v679
    %v786 = vsub.f32 0.0, %v708
    %v787 = vsub.f32 0.0, %v737
    %v788 = vsub.f32 0.0, %v766
    %v789 = vsub.f32 0.0, %v681
    %v790 = vsub.f32 0.0, %v710
    %v791 = vsub.f32 0.0, %v739
    %v792 = vsub.f32 0.0, %v768
    %v793 = vsub.f32 0.0, %v684
    %v794 = vsub.f32 0.0, %v713
    %v795 = vsub.f32 0.0, %v742
    %v796 = vsub.f32 0.0, %v771
    %v797 = vsub.f32 0.0, %v686
    %v798 = vsub.f32 0.0, %v715
    %v799 = vsub.f32 0.0, %v744
    %v800 = vsub.f32 0.0, %v773
    %v801 = vmul.f32 %v785, 1.442695
    %v802 = vpow.pop %v801
    %v803 = vmul.f32 %v786, 1.442695
    %v804 = vpow.pop %v803
    %v805 = vmul.f32 %v787, 1.442695
    %v806 = vpow.pop %v805
    %v807 = vmul.f32 %v788, 1.442695
    %v808 = vpow.pop %v807
    %v809 = vmul.f32 %v789, 1.442695
    %v810 = vpow.pop %v809
    %v811 = vmul.f32 %v790, 1.442695
    %v812 = vpow.pop %v811
    %v813 = vmul.f32 %v791, 1.442695
    %v814 = vpow.pop %v813
    %v815 = vmul.f32 %v792, 1.442695
    %v816 = vpow.pop %v815
    %v817 = vmul.f32 %v793, 1.442695
    %v818 = vpow.pop %v817
    %v819 = vmul.f32 %v794, 1.442695
    %v820 = vpow.pop %v819
    %v821 = vmul.f32 %v795, 1.442695
    %v822 = vpow.pop %v821
    %v823 = vmul.f32 %v796, 1.442695
    %v824 = vpow.pop %v823
    %v825 = vmul.f32 %v797, 1.442695
    %v826 = vpow.pop %v825
    %v827 = vmul.f32 %v798, 1.442695
    %v828 = vpow.pop %v827
    %v829 = vmul.f32 %v799, 1.442695
    %v830 = vpow.pop %v829
    %v831 = vmul.f32 %v800, 1.442695
    %v832 = vpow.pop %v831
    %v833 = vadd.f32 %v802, 1.0
    %v834 = vadd.f32 %v804, 1.0
    %v835 = vadd.f32 %v806, 1.0
    %v836 = vadd.f32 %v808, 1.0
    %v837 = vadd.f32 %v810, 1.0
    %v838 = vadd.f32 %v812, 1.0
    %v839 = vadd.f32 %v814, 1.0
    %v840 = vadd.f32 %v816, 1.0
    %v841 = vadd.f32 %v818, 1.0
    %v842 = vadd.f32 %v820, 1.0
    %v843 = vadd.f32 %v822, 1.0
    %v844 = vadd.f32 %v824, 1.0
    %v845 = vadd.f32 %v826, 1.0
    %v846 = vadd.f32 %v828, 1.0
    %v847 = vadd.f32 %v830, 1.0
    %v848 = vadd.f32 %v832, 1.0
    %v849 = vrcp.pop %v833
    %v850 = vmul.f32 %v833, %v849
    %v851 = vsub.f32 1.0, %v850
    %v852 = vmul.f32 %v849, %v851
    %v853 = vadd.f32 %v849, %v852
    %vm854 = vweird.f32 %v833
    %vm855 = vweird.f32 %v849
    %vm856 = vmor %vm854, %vm855
    %v857 = vsel %vm856, %v849, %v853
    %v858 = vand.u32 2147483647, %v833
    %vm859 = vcmp.eq.f32.partialorder %v858, 8.507059e+37
    %v860 = vand.u32 %v833, 2147483648
    %v861 = vor.u32 1.1754944e-38, %v860
    %v862 = vsel %vm859, %v861, %v857
    %v863 = vmul.f32 1.0, %v862
    %v864 = vrcp.pop %v834
    %v865 = vmul.f32 %v834, %v864
    %v866 = vsub.f32 1.0, %v865
    %v867 = vmul.f32 %v864, %v866
    %v868 = vadd.f32 %v864, %v867
    %vm869 = vweird.f32 %v834
    %vm870 = vweird.f32 %v864
    %vm871 = vmor %vm869, %vm870
    %v872 = vsel %vm871, %v864, %v868
    %v873 = vand.u32 2147483647, %v834
    %vm874 = vcmp.eq.f32.partialorder %v873, 8.507059e+37
    %v875 = vand.u32 %v834, 2147483648
    %v876 = vor.u32 1.1754944e-38, %v875
    %v877 = vsel %vm874, %v876, %v872
    %v878 = vmul.f32 1.0, %v877
    %v879 = vrcp.pop %v835
    %v880 = vmul.f32 %v835, %v879
    %v881 = vsub.f32 1.0, %v880
    %v882 = vmul.f32 %v879, %v881
    %v883 = vadd.f32 %v879, %v882
    %vm884 = vweird.f32 %v835
    %vm885 = vweird.f32 %v879
    %vm886 = vmor %vm884, %vm885
    %v887 = vsel %vm886, %v879, %v883
    %v888 = vand.u32 2147483647, %v835
    %vm889 = vcmp.eq.f32.partialorder %v888, 8.507059e+37
    %v890 = vand.u32 %v835, 2147483648
    %v891 = vor.u32 1.1754944e-38, %v890
    %v892 = vsel %vm889, %v891, %v887
    %v893 = vmul.f32 1.0, %v892
    %v894 = vrcp.pop %v836
    %v895 = vmul.f32 %v836, %v894
    %v896 = vsub.f32 1.0, %v895
    %v897 = vmul.f32 %v894, %v896
    %v898 = vadd.f32 %v894, %v897
    %vm899 = vweird.f32 %v836
    %vm900 = vweird.f32 %v894
    %vm901 = vmor %vm899, %vm900
    %v902 = vsel %vm901, %v894, %v898
    %v903 = vand.u32 2147483647, %v836
    %vm904 = vcmp.eq.f32.partialorder %v903, 8.507059e+37
    %v905 = vand.u32 %v836, 2147483648
    %v906 = vor.u32 1.1754944e-38, %v905
    %v907 = vsel %vm904, %v906, %v902
    %v908 = vmul.f32 1.0, %v907
    %v909 = vrcp.pop %v837
    %v910 = vmul.f32 %v837, %v909
    %v911 = vsub.f32 1.0, %v910
    %v912 = vmul.f32 %v909, %v911
    %v913 = vadd.f32 %v909, %v912
    %vm914 = vweird.f32 %v837
    %vm915 = vweird.f32 %v909
    %vm916 = vmor %vm914, %vm915
    %v917 = vsel %vm916, %v909, %v913
    %v918 = vand.u32 2147483647, %v837
    %vm919 = vcmp.eq.f32.partialorder %v918, 8.507059e+37
    %v920 = vand.u32 %v837, 2147483648
    %v921 = vor.u32 1.1754944e-38, %v920
    %v922 = vsel %vm919, %v921, %v917
    %v923 = vmul.f32 1.0, %v922
    %v924 = vrcp.pop %v838
    %v925 = vmul.f32 %v838, %v924
    %v926 = vsub.f32 1.0, %v925
    %v927 = vmul.f32 %v924, %v926
    %v928 = vadd.f32 %v924, %v927
    %vm929 = vweird.f32 %v838
    %vm930 = vweird.f32 %v924
    %vm931 = vmor %vm929, %vm930
    %v932 = vsel %vm931, %v924, %v928
    %v933 = vand.u32 2147483647, %v838
    %vm934 = vcmp.eq.f32.partialorder %v933, 8.507059e+37
    %v935 = vand.u32 %v838, 2147483648
    %v936 = vor.u32 1.1754944e-38, %v935
    %v937 = vsel %vm934, %v936, %v932
    %v938 = vmul.f32 1.0, %v937
    %v939 = vrcp.pop %v839
    %v940 = vmul.f32 %v839, %v939
    %v941 = vsub.f32 1.0, %v940
    %v942 = vmul.f32 %v939, %v941
    %v943 = vadd.f32 %v939, %v942
    %vm944 = vweird.f32 %v839
    %vm945 = vweird.f32 %v939
    %vm946 = vmor %vm944, %vm945
    %v947 = vsel %vm946, %v939, %v943
    %v948 = vand.u32 2147483647, %v839
    %vm949 = vcmp.eq.f32.partialorder %v948, 8.507059e+37
    %v950 = vand.u32 %v839, 2147483648
    %v951 = vor.u32 1.1754944e-38, %v950
    %v952 = vsel %vm949, %v951, %v947
    %v953 = vmul.f32 1.0, %v952
    %v954 = vrcp.pop %v840
    %v955 = vmul.f32 %v840, %v954
    %v956 = vsub.f32 1.0, %v955
    %v957 = vmul.f32 %v954, %v956
    %v958 = vadd.f32 %v954, %v957
    %vm959 = vweird.f32 %v840
    %vm960 = vweird.f32 %v954
    %vm961 = vmor %vm959, %vm960
    %v962 = vsel %vm961, %v954, %v958
    %v963 = vand.u32 2147483647, %v840
    %vm964 = vcmp.eq.f32.partialorder %v963, 8.507059e+37
    %v965 = vand.u32 %v840, 2147483648
    %v966 = vor.u32 1.1754944e-38, %v965
    %v967 = vsel %vm964, %v966, %v962
    %v968 = vmul.f32 1.0, %v967
    %v969 = vrcp.pop %v841
    %v970 = vmul.f32 %v841, %v969
    %v971 = vsub.f32 1.0, %v970
    %v972 = vmul.f32 %v969, %v971
    %v973 = vadd.f32 %v969, %v972
    %vm974 = vweird.f32 %v841
    %vm975 = vweird.f32 %v969
    %vm976 = vmor %vm974, %vm975
    %v977 = vsel %vm976, %v969, %v973
    %v978 = vand.u32 2147483647, %v841
    %vm979 = vcmp.eq.f32.partialorder %v978, 8.507059e+37
    %v980 = vand.u32 %v841, 2147483648
    %v981 = vor.u32 1.1754944e-38, %v980
    %v982 = vsel %vm979, %v981, %v977
    %v983 = vmul.f32 1.0, %v982
    %v984 = vrcp.pop %v842
    %v985 = vmul.f32 %v842, %v984
    %v986 = vsub.f32 1.0, %v985
    %v987 = vmul.f32 %v984, %v986
    %v988 = vadd.f32 %v984, %v987
    %vm989 = vweird.f32 %v842
    %vm990 = vweird.f32 %v984
    %vm991 = vmor %vm989, %vm990
    %v992 = vsel %vm991, %v984, %v988
    %v993 = vand.u32 2147483647, %v842
    %vm994 = vcmp.eq.f32.partialorder %v993, 8.507059e+37
    %v995 = vand.u32 %v842, 2147483648
    %v996 = vor.u32 1.1754944e-38, %v995
    %v997 = vsel %vm994, %v996, %v992
    %v998 = vmul.f32 1.0, %v997
    %v999 = vrcp.pop %v843
    %v1000 = vmul.f32 %v843, %v999
    %v1001 = vsub.f32 1.0, %v1000
    %v1002 = vmul.f32 %v999, %v1001
    %v1003 = vadd.f32 %v999, %v1002
    %vm1004 = vweird.f32 %v843
    %vm1005 = vweird.f32 %v999
    %vm1006 = vmor %vm1004, %vm1005
    %v1007 = vsel %vm1006, %v999, %v1003
    %v1008 = vand.u32 2147483647, %v843
    %vm1009 = vcmp.eq.f32.partialorder %v1008, 8.507059e+37
    %v1010 = vand.u32 %v843, 2147483648
    %v1011 = vor.u32 1.1754944e-38, %v1010
    %v1012 = vsel %vm1009, %v1011, %v1007
    %v1013 = vmul.f32 1.0, %v1012
    %v1014 = vrcp.pop %v844
    %v1015 = vmul.f32 %v844, %v1014
    %v1016 = vsub.f32 1.0, %v1015
    %v1017 = vmul.f32 %v1014, %v1016
    %v1018 = vadd.f32 %v1014, %v1017
    %vm1019 = vweird.f32 %v844
    %vm1020 = vweird.f32 %v1014
    %vm1021 = vmor %vm1019, %vm1020
    %v1022 = vsel %vm1021, %v1014, %v1018
    %v1023 = vand.u32 2147483647, %v844
    %vm1024 = vcmp.eq.f32.partialorder %v1023, 8.507059e+37
    %v1025 = vand.u32 %v844, 2147483648
    %v1026 = vor.u32 1.1754944e-38, %v1025
    %v1027 = vsel %vm1024, %v1026, %v1022
    %v1028 = vmul.f32 1.0, %v1027
    %v1029 = vrcp.pop %v845
    %v1030 = vmul.f32 %v845, %v1029
    %v1031 = vsub.f32 1.0, %v1030
    %v1032 = vmul.f32 %v1029, %v1031
    %v1033 = vadd.f32 %v1029, %v1032
    %vm1034 = vweird.f32 %v845
    %vm1035 = vweird.f32 %v1029
    %vm1036 = vmor %vm1034, %vm1035
    %v1037 = vsel %vm1036, %v1029, %v1033
    %v1038 = vand.u32 2147483647, %v845
    %vm1039 = vcmp.eq.f32.partialorder %v1038, 8.507059e+37
    %v1040 = vand.u32 %v845, 2147483648
    %v1041 = vor.u32 1.1754944e-38, %v1040
    %v1042 = vsel %vm1039, %v1041, %v1037
    %v1043 = vmul.f32 1.0, %v1042
    %v1044 = vrcp.pop %v846
    %v1045 = vmul.f32 %v846, %v1044
    %v1046 = vsub.f32 1.0, %v1045
    %v1047 = vmul.f32 %v1044, %v1046
    %v1048 = vadd.f32 %v1044, %v1047
    %vm1049 = vweird.f32 %v846
    %vm1050 = vweird.f32 %v1044
    %vm1051 = vmor %vm1049, %vm1050
    %v1052 = vsel %vm1051, %v1044, %v1048
    %v1053 = vand.u32 2147483647, %v846
    %vm1054 = vcmp.eq.f32.partialorder %v1053, 8.507059e+37
    %v1055 = vand.u32 %v846, 2147483648
    %v1056 = vor.u32 1.1754944e-38, %v1055
    %v1057 = vsel %vm1054, %v1056, %v1052
    %v1058 = vmul.f32 1.0, %v1057
    %v1059 = vrcp.pop %v847
    %v1060 = vmul.f32 %v847, %v1059
    %v1061 = vsub.f32 1.0, %v1060
    %v1062 = vmul.f32 %v1059, %v1061
    %v1063 = vadd.f32 %v1059, %v1062
    %vm1064 = vweird.f32 %v847
    %vm1065 = vweird.f32 %v1059
    %vm1066 = vmor %vm1064, %vm1065
    %v1067 = vsel %vm1066, %v1059, %v1063
    %v1068 = vand.u32 2147483647, %v847
    %vm1069 = vcmp.eq.f32.partialorder %v1068, 8.507059e+37
    %v1070 = vand.u32 %v847, 2147483648
    %v1071 = vor.u32 1.1754944e-38, %v1070
    %v1072 = vsel %vm1069, %v1071, %v1067
    %v1073 = vmul.f32 1.0, %v1072
    %v1074 = vrcp.pop %v848
    %v1075 = vmul.f32 %v848, %v1074
    %v1076 = vsub.f32 1.0, %v1075
    %v1077 = vmul.f32 %v1074, %v1076
    %v1078 = vadd.f32 %v1074, %v1077
    %vm1079 = vweird.f32 %v848
    %vm1080 = vweird.f32 %v1074
    %vm1081 = vmor %vm1079, %vm1080
    %v1082 = vsel %vm1081, %v1074, %v1078
    %v1083 = vand.u32 2147483647, %v848
    %vm1084 = vcmp.eq.f32.partialorder %v1083, 8.507059e+37
    %v1085 = vand.u32 %v848, 2147483648
    %v1086 = vor.u32 1.1754944e-38, %v1085
    %v1087 = vsel %vm1084, %v1086, %v1082
    %v1088 = vmul.f32 1.0, %v1087
    %v1089 = vmul.f32 %v679, %v863
    %v1090 = vmul.f32 %v708, %v878
    %v1091 = vmul.f32 %v737, %v893
    %v1092 = vmul.f32 %v766, %v908
    %v1093 = vmul.f32 %v681, %v923
    %v1094 = vmul.f32 %v710, %v938
    %v1095 = vmul.f32 %v739, %v953
    %v1096 = vmul.f32 %v768, %v968
    %v1097 = vmul.f32 %v684, %v983
    %v1098 = vmul.f32 %v713, %v998
    %v1099 = vmul.f32 %v742, %v1013
    %v1100 = vmul.f32 %v771, %v1028
    %v1101 = vmul.f32 %v686, %v1043
    %v1102 = vmul.f32 %v715, %v1058
    %v1103 = vmul.f32 %v744, %v1073
    %v1104 = vmul.f32 %v773, %v1088
    %1105 = vrot.lane.b32.xlu0 %v1089, 3
    %v1106 = vpop.permute.xlu0 %1105
    %1107 = vrot.lane.b32.xlu0 %v1093, 3
    %v1108 = vpop.permute.xlu0 %1107
    %1109 = vrot.lane.b32.xlu0 %v1097, 3
    %v1110 = vpop.permute.xlu0 %1109
    %1111 = vrot.lane.b32.xlu0 %v1101, 3
    %v1112 = vpop.permute.xlu0 %1111
    %1113 = vrot.lane.b32.xlu0 %v1090, 3
    %v1114 = vpop.permute.xlu0 %1113
    %1115 = vrot.lane.b32.xlu0 %v1094, 3
    %v1116 = vpop.permute.xlu0 %1115
    %1117 = vrot.lane.b32.xlu0 %v1098, 3
    %v1118 = vpop.permute.xlu0 %1117
    %1119 = vrot.lane.b32.xlu0 %v1102, 3
    %v1120 = vpop.permute.xlu0 %1119
    %1121 = vrot.lane.b32.xlu0 %v1091, 3
    %v1122 = vpop.permute.xlu0 %1121
    %1123 = vrot.lane.b32.xlu0 %v1095, 3
    %v1124 = vpop.permute.xlu0 %1123
    %1125 = vrot.lane.b32.xlu0 %v1099, 3
    %v1126 = vpop.permute.xlu0 %1125
    %1127 = vrot.lane.b32.xlu0 %v1103, 3
    %v1128 = vpop.permute.xlu0 %1127
    %1129 = vrot.lane.b32.xlu0 %v1092, 3
    %v1130 = vpop.permute.xlu0 %1129
    %1131 = vrot.lane.b32.xlu0 %v1096, 3
    %v1132 = vpop.permute.xlu0 %1131
    %1133 = vrot.lane.b32.xlu0 %v1100, 3
    %v1134 = vpop.permute.xlu0 %1133
    %1135 = vrot.lane.b32.xlu0 %v1104, 3
    %v1136 = vpop.permute.xlu0 %1135
    %v1137 = vsel %vm98, %v1122, %v1130
    %v1138 = vsel %vm98, %v1124, %v1132
    %v1139 = vsel %vm98, %v1126, %v1134
    %v1140 = vsel %vm98, %v1128, %v1136
    %v1141 = vsel %vm98, %v1114, %v1122
    %v1142 = vsel %vm98, %v1116, %v1124
    %v1143 = vsel %vm98, %v1118, %v1126
    %v1144 = vsel %vm98, %v1120, %v1128
    %v1145 = vsel %vm98, %v1106, %v1114
    %v1146 = vsel %vm98, %v1108, %v1116
    %v1147 = vsel %vm98, %v1110, %v1118
    %v1148 = vsel %vm98, %v1112, %v1120
    %v1149 = vsel %vm98, %v1130, %v1106
    %v1150 = vsel %vm98, %v1132, %v1108
    %v1151 = vsel %vm98, %v1134, %v1110
    %v1152 = vsel %vm98, %v1136, %v1112
    %v1153 = vsel %vm111, %v1149, 0.0
    %v1154 = vsel %vm112, %v1145, 0.0
    %v1155 = vsel %vm111, %v1141, 0.0
    %v1156 = vsel %vm112, %v1137, 0.0
    %v1157 = vsel %vm111, %v1150, 0.0
    %v1158 = vsel %vm112, %v1146, 0.0
    %v1159 = vsel %vm111, %v1142, 0.0
    %v1160 = vsel %vm112, %v1138, 0.0
    %v1161 = vsel %vm111, %v1151, 0.0
    %v1162 = vsel %vm112, %v1147, 0.0
    %v1163 = vsel %vm111, %v1143, 0.0
    %v1164 = vsel %vm112, %v1139, 0.0
    %v1165 = vsel %vm111, %v1152, 0.0
    %v1166 = vsel %vm112, %v1148, 0.0
    %v1167 = vsel %vm111, %v1144, 0.0
    %v1168 = vsel %vm112, %v1140, 0.0
    %v1169 = vpack.c.bf16 %v1154, %v1153
    %v1170 = vpack.c.bf16 %v1156, %v1155
    %v1171 = vpack.c.bf16 %v1158, %v1157
    %v1172 = vpack.c.bf16 %v1160, %v1159
    %v1173 = vpack.c.bf16 %v1162, %v1161
    %v1174 = vpack.c.bf16 %v1164, %v1163
    %v1175 = vpack.c.bf16 %v1166, %v1165
    %v1176 = vpack.c.bf16 %v1168, %v1167
    %1177 = vst [vmem:[#allocation3] sm:$0xff] %v1169
    %1178 = vst [vmem:[#allocation3 + $0x8] sm:$0xff] %v1170
    %1179 = vst [vmem:[#allocation3 + $0x10] sm:$0xff] %v1171
    %1180 = vst [vmem:[#allocation3 + $0x18] sm:$0xff] %v1172
    %1181 = vst [vmem:[#allocation3 + $0x20] sm:$0xff] %v1173
    %1182 = vst [vmem:[#allocation3 + $0x28] sm:$0xff] %v1174
    %1183 = vst [vmem:[#allocation3 + $0x30] sm:$0xff] %v1175
    %1184 = vst [vmem:[#allocation3 + $0x38] sm:$0xff] %v1176
    %1185 = vrot.lane.b32.xlu0 %v1089, 2
    %v1186 = vpop.permute.xlu0 %1185
    %1187 = vrot.lane.b32.xlu0 %v1093, 2
    %v1188 = vpop.permute.xlu0 %1187
    %1189 = vrot.lane.b32.xlu0 %v1097, 2
    %v1190 = vpop.permute.xlu0 %1189
    %1191 = vrot.lane.b32.xlu0 %v1101, 2
    %v1192 = vpop.permute.xlu0 %1191
    %1193 = vrot.lane.b32.xlu0 %v1090, 2
    %v1194 = vpop.permute.xlu0 %1193
    %1195 = vrot.lane.b32.xlu0 %v1094, 2
    %v1196 = vpop.permute.xlu0 %1195
    %1197 = vrot.lane.b32.xlu0 %v1098, 2
    %v1198 = vpop.permute.xlu0 %1197
    %1199 = vrot.lane.b32.xlu0 %v1102, 2
    %v1200 = vpop.permute.xlu0 %1199
    %1201 = vrot.lane.b32.xlu0 %v1091, 2
    %v1202 = vpop.permute.xlu0 %1201
    %1203 = vrot.lane.b32.xlu0 %v1095, 2
    %v1204 = vpop.permute.xlu0 %1203
    %1205 = vrot.lane.b32.xlu0 %v1099, 2
    %v1206 = vpop.permute.xlu0 %1205
    %1207 = vrot.lane.b32.xlu0 %v1103, 2
    %v1208 = vpop.permute.xlu0 %1207
    %1209 = vrot.lane.b32.xlu0 %v1092, 2
    %v1210 = vpop.permute.xlu0 %1209
    %1211 = vrot.lane.b32.xlu0 %v1096, 2
    %v1212 = vpop.permute.xlu0 %1211
    %1213 = vrot.lane.b32.xlu0 %v1100, 2
    %v1214 = vpop.permute.xlu0 %1213
    %1215 = vrot.lane.b32.xlu0 %v1104, 2
    %v1216 = vpop.permute.xlu0 %1215
    %v1217 = vsel %vm153, %v1202, %v1210
    %v1218 = vsel %vm153, %v1204, %v1212
    %v1219 = vsel %vm153, %v1206, %v1214
    %v1220 = vsel %vm153, %v1208, %v1216
    %v1221 = vsel %vm153, %v1194, %v1202
    %v1222 = vsel %vm153, %v1196, %v1204
    %v1223 = vsel %vm153, %v1198, %v1206
    %v1224 = vsel %vm153, %v1200, %v1208
    %v1225 = vsel %vm153, %v1186, %v1194
    %v1226 = vsel %vm153, %v1188, %v1196
    %v1227 = vsel %vm153, %v1190, %v1198
    %v1228 = vsel %vm153, %v1192, %v1200
    %v1229 = vsel %vm153, %v1210, %v1186
    %v1230 = vsel %vm153, %v1212, %v1188
    %v1231 = vsel %vm153, %v1214, %v1190
    %v1232 = vsel %vm153, %v1216, %v1192
    %v1233 = vsel %vm166, %v1229, 0.0
    %v1234 = vsel %vm167, %v1225, 0.0
    %v1235 = vsel %vm166, %v1221, 0.0
    %v1236 = vsel %vm167, %v1217, 0.0
    %v1237 = vsel %vm166, %v1230, 0.0
    %v1238 = vsel %vm167, %v1226, 0.0
    %v1239 = vsel %vm166, %v1222, 0.0
    %v1240 = vsel %vm167, %v1218, 0.0
    %v1241 = vsel %vm166, %v1231, 0.0
    %v1242 = vsel %vm167, %v1227, 0.0
    %v1243 = vsel %vm166, %v1223, 0.0
    %v1244 = vsel %vm167, %v1219, 0.0
    %v1245 = vsel %vm166, %v1232, 0.0
    %v1246 = vsel %vm167, %v1228, 0.0
    %v1247 = vsel %vm166, %v1224, 0.0
    %v1248 = vsel %vm167, %v1220, 0.0
    %v1249 = vpack.c.bf16 %v1234, %v1233
    %v1250 = vpack.c.bf16 %v1236, %v1235
    %v1251 = vpack.c.bf16 %v1238, %v1237
    %v1252 = vpack.c.bf16 %v1240, %v1239
    %v1253 = vpack.c.bf16 %v1242, %v1241
    %v1254 = vpack.c.bf16 %v1244, %v1243
    %v1255 = vpack.c.bf16 %v1246, %v1245
    %v1256 = vpack.c.bf16 %v1248, %v1247
    %1257 = vst [vmem:[#allocation3 + $0x40] sm:$0xff] %v1249
    %1258 = vst [vmem:[#allocation3 + $0x48] sm:$0xff] %v1250
    %1259 = vst [vmem:[#allocation3 + $0x50] sm:$0xff] %v1251
    %1260 = vst [vmem:[#allocation3 + $0x58] sm:$0xff] %v1252
    %1261 = vst [vmem:[#allocation3 + $0x60] sm:$0xff] %v1253
    %1262 = vst [vmem:[#allocation3 + $0x68] sm:$0xff] %v1254
    %1263 = vst [vmem:[#allocation3 + $0x70] sm:$0xff] %v1255
    %1264 = vst [vmem:[#allocation3 + $0x78] sm:$0xff] %v1256
    %1265 = vrot.lane.b32.xlu0 %v1089, 1
    %v1266 = vpop.permute.xlu0 %1265
    %1267 = vrot.lane.b32.xlu0 %v1093, 1
    %v1268 = vpop.permute.xlu0 %1267
    %1269 = vrot.lane.b32.xlu0 %v1097, 1
    %v1270 = vpop.permute.xlu0 %1269
    %1271 = vrot.lane.b32.xlu0 %v1101, 1
    %v1272 = vpop.permute.xlu0 %1271
    %1273 = vrot.lane.b32.xlu0 %v1090, 1
    %v1274 = vpop.permute.xlu0 %1273
    %1275 = vrot.lane.b32.xlu0 %v1094, 1
    %v1276 = vpop.permute.xlu0 %1275
    %1277 = vrot.lane.b32.xlu0 %v1098, 1
    %v1278 = vpop.permute.xlu0 %1277
    %1279 = vrot.lane.b32.xlu0 %v1102, 1
    %v1280 = vpop.permute.xlu0 %1279
    %1281 = vrot.lane.b32.xlu0 %v1091, 1
    %v1282 = vpop.permute.xlu0 %1281
    %1283 = vrot.lane.b32.xlu0 %v1095, 1
    %v1284 = vpop.permute.xlu0 %1283
    %1285 = vrot.lane.b32.xlu0 %v1099, 1
    %v1286 = vpop.permute.xlu0 %1285
    %1287 = vrot.lane.b32.xlu0 %v1103, 1
    %v1288 = vpop.permute.xlu0 %1287
    %1289 = vrot.lane.b32.xlu0 %v1092, 1
    %v1290 = vpop.permute.xlu0 %1289
    %1291 = vrot.lane.b32.xlu0 %v1096, 1
    %v1292 = vpop.permute.xlu0 %1291
    %1293 = vrot.lane.b32.xlu0 %v1100, 1
    %v1294 = vpop.permute.xlu0 %1293
    %1295 = vrot.lane.b32.xlu0 %v1104, 1
    %v1296 = vpop.permute.xlu0 %1295
    %v1297 = vsel %vm208, %v1282, %v1290
    %v1298 = vsel %vm208, %v1284, %v1292
    %v1299 = vsel %vm208, %v1286, %v1294
    %v1300 = vsel %vm208, %v1288, %v1296
    %v1301 = vsel %vm208, %v1274, %v1282
    %v1302 = vsel %vm208, %v1276, %v1284
    %v1303 = vsel %vm208, %v1278, %v1286
    %v1304 = vsel %vm208, %v1280, %v1288
    %v1305 = vsel %vm208, %v1266, %v1274
    %v1306 = vsel %vm208, %v1268, %v1276
    %v1307 = vsel %vm208, %v1270, %v1278
    %v1308 = vsel %vm208, %v1272, %v1280
    %v1309 = vsel %vm208, %v1290, %v1266
    %v1310 = vsel %vm208, %v1292, %v1268
    %v1311 = vsel %vm208, %v1294, %v1270
    %v1312 = vsel %vm208, %v1296, %v1272
    %v1313 = vsel %vm221, %v1309, 0.0
    %v1314 = vsel %vm222, %v1305, 0.0
    %v1315 = vsel %vm221, %v1301, 0.0
    %v1316 = vsel %vm222, %v1297, 0.0
    %v1317 = vsel %vm221, %v1310, 0.0
    %v1318 = vsel %vm222, %v1306, 0.0
    %v1319 = vsel %vm221, %v1302, 0.0
    %v1320 = vsel %vm222, %v1298, 0.0
    %v1321 = vsel %vm221, %v1311, 0.0
    %v1322 = vsel %vm222, %v1307, 0.0
    %v1323 = vsel %vm221, %v1303, 0.0
    %v1324 = vsel %vm222, %v1299, 0.0
    %v1325 = vsel %vm221, %v1312, 0.0
    %v1326 = vsel %vm222, %v1308, 0.0
    %v1327 = vsel %vm221, %v1304, 0.0
    %v1328 = vsel %vm222, %v1300, 0.0
    %v1329 = vpack.c.bf16 %v1314, %v1313
    %v1330 = vpack.c.bf16 %v1316, %v1315
    %v1331 = vpack.c.bf16 %v1318, %v1317
    %v1332 = vpack.c.bf16 %v1320, %v1319
    %v1333 = vpack.c.bf16 %v1322, %v1321
    %v1334 = vpack.c.bf16 %v1324, %v1323
    %v1335 = vpack.c.bf16 %v1326, %v1325
    %v1336 = vpack.c.bf16 %v1328, %v1327
    %1337 = vst [vmem:[#allocation3 + $0x80] sm:$0xff] %v1329
    %1338 = vst [vmem:[#allocation3 + $0x88] sm:$0xff] %v1330
    %1339 = vst [vmem:[#allocation3 + $0x90] sm:$0xff] %v1331
    %1340 = vst [vmem:[#allocation3 + $0x98] sm:$0xff] %v1332
    %1341 = vst [vmem:[#allocation3 + $0xa0] sm:$0xff] %v1333
    %1342 = vst [vmem:[#allocation3 + $0xa8] sm:$0xff] %v1334
    %1343 = vst [vmem:[#allocation3 + $0xb0] sm:$0xff] %v1335
    %1344 = vst [vmem:[#allocation3 + $0xb8] sm:$0xff] %v1336
    %v1345 = vpack.c.bf16 %v1090, %v1089
    %v1346 = vpack.c.bf16 %v1092, %v1091
    %v1347 = vpack.c.bf16 %v1094, %v1093
    %v1348 = vpack.c.bf16 %v1096, %v1095
    %v1349 = vpack.c.bf16 %v1098, %v1097
    %v1350 = vpack.c.bf16 %v1100, %v1099
    %v1351 = vpack.c.bf16 %v1102, %v1101
    %v1352 = vpack.c.bf16 %v1104, %v1103
    %1353 = vst [vmem:[#allocation3 + $0xc0] sm:$0xff] %v1345
    %1354 = vst [vmem:[#allocation3 + $0xc8] sm:$0xff] %v1346
    %1355 = vst [vmem:[#allocation3 + $0xd0] sm:$0xff] %v1347
    %1356 = vst [vmem:[#allocation3 + $0xd8] sm:$0xff] %v1348
    %1357 = vst [vmem:[#allocation3 + $0xe0] sm:$0xff] %v1349
    %1358 = vst [vmem:[#allocation3 + $0xe8] sm:$0xff] %v1350
    %1359 = vst [vmem:[#allocation3 + $0xf0] sm:$0xff] %v1351
    %1360 = vst [vmem:[#allocation3 + $0xf8] sm:$0xff] %v1352
    %1361 = vrot.lane.b32.xlu0 %v1089, 127
    %v1362 = vpop.permute.xlu0 %1361
    %1363 = vrot.lane.b32.xlu0 %v1093, 127
    %v1364 = vpop.permute.xlu0 %1363
    %1365 = vrot.lane.b32.xlu0 %v1097, 127
    %v1366 = vpop.permute.xlu0 %1365
    %1367 = vrot.lane.b32.xlu0 %v1101, 127
    %v1368 = vpop.permute.xlu0 %1367
    %1369 = vrot.lane.b32.xlu0 %v1090, 127
    %v1370 = vpop.permute.xlu0 %1369
    %1371 = vrot.lane.b32.xlu0 %v1094, 127
    %v1372 = vpop.permute.xlu0 %1371
    %1373 = vrot.lane.b32.xlu0 %v1098, 127
    %v1374 = vpop.permute.xlu0 %1373
    %1375 = vrot.lane.b32.xlu0 %v1102, 127
    %v1376 = vpop.permute.xlu0 %1375
    %1377 = vrot.lane.b32.xlu0 %v1091, 127
    %v1378 = vpop.permute.xlu0 %1377
    %1379 = vrot.lane.b32.xlu0 %v1095, 127
    %v1380 = vpop.permute.xlu0 %1379
    %1381 = vrot.lane.b32.xlu0 %v1099, 127
    %v1382 = vpop.permute.xlu0 %1381
    %1383 = vrot.lane.b32.xlu0 %v1103, 127
    %v1384 = vpop.permute.xlu0 %1383
    %1385 = vrot.lane.b32.xlu0 %v1092, 127
    %v1386 = vpop.permute.xlu0 %1385
    %1387 = vrot.lane.b32.xlu0 %v1096, 127
    %v1388 = vpop.permute.xlu0 %1387
    %1389 = vrot.lane.b32.xlu0 %v1100, 127
    %v1390 = vpop.permute.xlu0 %1389
    %1391 = vrot.lane.b32.xlu0 %v1104, 127
    %v1392 = vpop.permute.xlu0 %1391
    %v1393 = vsel %vm271, %v1378, %v1386
    %v1394 = vsel %vm271, %v1380, %v1388
    %v1395 = vsel %vm271, %v1382, %v1390
    %v1396 = vsel %vm271, %v1384, %v1392
    %v1397 = vsel %vm271, %v1370, %v1378
    %v1398 = vsel %vm271, %v1372, %v1380
    %v1399 = vsel %vm271, %v1374, %v1382
    %v1400 = vsel %vm271, %v1376, %v1384
    %v1401 = vsel %vm271, %v1362, %v1370
    %v1402 = vsel %vm271, %v1364, %v1372
    %v1403 = vsel %vm271, %v1366, %v1374
    %v1404 = vsel %vm271, %v1368, %v1376
    %v1405 = vsel %vm271, %v1386, %v1362
    %v1406 = vsel %vm271, %v1388, %v1364
    %v1407 = vsel %vm271, %v1390, %v1366
    %v1408 = vsel %vm271, %v1392, %v1368
    %v1409 = vsel %vm284, %v1401, 0.0
    %v1410 = vsel %vm285, %v1397, 0.0
    %v1411 = vsel %vm284, %v1393, 0.0
    %v1412 = vsel %vm285, %v1405, 0.0
    %v1413 = vsel %vm284, %v1402, 0.0
    %v1414 = vsel %vm285, %v1398, 0.0
    %v1415 = vsel %vm284, %v1394, 0.0
    %v1416 = vsel %vm285, %v1406, 0.0
    %v1417 = vsel %vm284, %v1403, 0.0
    %v1418 = vsel %vm285, %v1399, 0.0
    %v1419 = vsel %vm284, %v1395, 0.0
    %v1420 = vsel %vm285, %v1407, 0.0
    %v1421 = vsel %vm284, %v1404, 0.0
    %v1422 = vsel %vm285, %v1400, 0.0
    %v1423 = vsel %vm284, %v1396, 0.0
    %v1424 = vsel %vm285, %v1408, 0.0
    %v1425 = vpack.c.bf16 %v1410, %v1409
    %v1426 = vpack.c.bf16 %v1412, %v1411
    %v1427 = vpack.c.bf16 %v1414, %v1413
    %v1428 = vpack.c.bf16 %v1416, %v1415
    %v1429 = vpack.c.bf16 %v1418, %v1417
    %v1430 = vpack.c.bf16 %v1420, %v1419
    %v1431 = vpack.c.bf16 %v1422, %v1421
    %v1432 = vpack.c.bf16 %v1424, %v1423
    %1433 = vst [vmem:[#allocation3 + $0x100] sm:$0xff] %v1425
    %1434 = vst [vmem:[#allocation3 + $0x108] sm:$0xff] %v1426
    %1435 = vst [vmem:[#allocation3 + $0x110] sm:$0xff] %v1427
    %1436 = vst [vmem:[#allocation3 + $0x118] sm:$0xff] %v1428
    %1437 = vst [vmem:[#allocation3 + $0x120] sm:$0xff] %v1429
    %1438 = vst [vmem:[#allocation3 + $0x128] sm:$0xff] %v1430
    %1439 = vst [vmem:[#allocation3 + $0x130] sm:$0xff] %v1431
    %1440 = vst [vmem:[#allocation3 + $0x138] sm:$0xff] %v1432
    %1441 = vrot.lane.b32.xlu0 %v1089, 126
    %v1442 = vpop.permute.xlu0 %1441
    %1443 = vrot.lane.b32.xlu0 %v1093, 126
    %v1444 = vpop.permute.xlu0 %1443
    %1445 = vrot.lane.b32.xlu0 %v1097, 126
    %v1446 = vpop.permute.xlu0 %1445
    %1447 = vrot.lane.b32.xlu0 %v1101, 126
    %v1448 = vpop.permute.xlu0 %1447
    %1449 = vrot.lane.b32.xlu0 %v1090, 126
    %v1450 = vpop.permute.xlu0 %1449
    %1451 = vrot.lane.b32.xlu0 %v1094, 126
    %v1452 = vpop.permute.xlu0 %1451
    %1453 = vrot.lane.b32.xlu0 %v1098, 126
    %v1454 = vpop.permute.xlu0 %1453
    %1455 = vrot.lane.b32.xlu0 %v1102, 126
    %v1456 = vpop.permute.xlu0 %1455
    %1457 = vrot.lane.b32.xlu0 %v1091, 126
    %v1458 = vpop.permute.xlu0 %1457
    %1459 = vrot.lane.b32.xlu0 %v1095, 126
    %v1460 = vpop.permute.xlu0 %1459
    %1461 = vrot.lane.b32.xlu0 %v1099, 126
    %v1462 = vpop.permute.xlu0 %1461
    %1463 = vrot.lane.b32.xlu0 %v1103, 126
    %v1464 = vpop.permute.xlu0 %1463
    %1465 = vrot.lane.b32.xlu0 %v1092, 126
    %v1466 = vpop.permute.xlu0 %1465
    %1467 = vrot.lane.b32.xlu0 %v1096, 126
    %v1468 = vpop.permute.xlu0 %1467
    %1469 = vrot.lane.b32.xlu0 %v1100, 126
    %v1470 = vpop.permute.xlu0 %1469
    %1471 = vrot.lane.b32.xlu0 %v1104, 126
    %v1472 = vpop.permute.xlu0 %1471
    %v1473 = vsel %vm326, %v1458, %v1466
    %v1474 = vsel %vm326, %v1460, %v1468
    %v1475 = vsel %vm326, %v1462, %v1470
    %v1476 = vsel %vm326, %v1464, %v1472
    %v1477 = vsel %vm326, %v1450, %v1458
    %v1478 = vsel %vm326, %v1452, %v1460
    %v1479 = vsel %vm326, %v1454, %v1462
    %v1480 = vsel %vm326, %v1456, %v1464
    %v1481 = vsel %vm326, %v1442, %v1450
    %v1482 = vsel %vm326, %v1444, %v1452
    %v1483 = vsel %vm326, %v1446, %v1454
    %v1484 = vsel %vm326, %v1448, %v1456
    %v1485 = vsel %vm326, %v1466, %v1442
    %v1486 = vsel %vm326, %v1468, %v1444
    %v1487 = vsel %vm326, %v1470, %v1446
    %v1488 = vsel %vm326, %v1472, %v1448
    %v1489 = vsel %vm339, %v1481, 0.0
    %v1490 = vsel %vm340, %v1477, 0.0
    %v1491 = vsel %vm339, %v1473, 0.0
    %v1492 = vsel %vm340, %v1485, 0.0
    %v1493 = vsel %vm339, %v1482, 0.0
    %v1494 = vsel %vm340, %v1478, 0.0
    %v1495 = vsel %vm339, %v1474, 0.0
    %v1496 = vsel %vm340, %v1486, 0.0
    %v1497 = vsel %vm339, %v1483, 0.0
    %v1498 = vsel %vm340, %v1479, 0.0
    %v1499 = vsel %vm339, %v1475, 0.0
    %v1500 = vsel %vm340, %v1487, 0.0
    %v1501 = vsel %vm339, %v1484, 0.0
    %v1502 = vsel %vm340, %v1480, 0.0
    %v1503 = vsel %vm339, %v1476, 0.0
    %v1504 = vsel %vm340, %v1488, 0.0
    %v1505 = vpack.c.bf16 %v1490, %v1489
    %v1506 = vpack.c.bf16 %v1492, %v1491
    %v1507 = vpack.c.bf16 %v1494, %v1493
    %v1508 = vpack.c.bf16 %v1496, %v1495
    %v1509 = vpack.c.bf16 %v1498, %v1497
    %v1510 = vpack.c.bf16 %v1500, %v1499
    %v1511 = vpack.c.bf16 %v1502, %v1501
    %v1512 = vpack.c.bf16 %v1504, %v1503
    %1513 = vst [vmem:[#allocation3 + $0x140] sm:$0xff] %v1505
    %1514 = vst [vmem:[#allocation3 + $0x148] sm:$0xff] %v1506
    %1515 = vst [vmem:[#allocation3 + $0x150] sm:$0xff] %v1507
    %1516 = vst [vmem:[#allocation3 + $0x158] sm:$0xff] %v1508
    %1517 = vst [vmem:[#allocation3 + $0x160] sm:$0xff] %v1509
    %1518 = vst [vmem:[#allocation3 + $0x168] sm:$0xff] %v1510
    %1519 = vst [vmem:[#allocation3 + $0x170] sm:$0xff] %v1511
    %1520 = vst [vmem:[#allocation3 + $0x178] sm:$0xff] %v1512
    %1521 = vrot.lane.b32.xlu0 %v1089, 125
    %v1522 = vpop.permute.xlu0 %1521
    %1523 = vrot.lane.b32.xlu0 %v1093, 125
    %v1524 = vpop.permute.xlu0 %1523
    %1525 = vrot.lane.b32.xlu0 %v1097, 125
    %v1526 = vpop.permute.xlu0 %1525
    %1527 = vrot.lane.b32.xlu0 %v1101, 125
    %v1528 = vpop.permute.xlu0 %1527
    %1529 = vrot.lane.b32.xlu0 %v1090, 125
    %v1530 = vpop.permute.xlu0 %1529
    %1531 = vrot.lane.b32.xlu0 %v1094, 125
    %v1532 = vpop.permute.xlu0 %1531
    %1533 = vrot.lane.b32.xlu0 %v1098, 125
    %v1534 = vpop.permute.xlu0 %1533
    %1535 = vrot.lane.b32.xlu0 %v1102, 125
    %v1536 = vpop.permute.xlu0 %1535
    %1537 = vrot.lane.b32.xlu0 %v1091, 125
    %v1538 = vpop.permute.xlu0 %1537
    %1539 = vrot.lane.b32.xlu0 %v1095, 125
    %v1540 = vpop.permute.xlu0 %1539
    %1541 = vrot.lane.b32.xlu0 %v1099, 125
    %v1542 = vpop.permute.xlu0 %1541
    %1543 = vrot.lane.b32.xlu0 %v1103, 125
    %v1544 = vpop.permute.xlu0 %1543
    %1545 = vrot.lane.b32.xlu0 %v1092, 125
    %v1546 = vpop.permute.xlu0 %1545
    %1547 = vrot.lane.b32.xlu0 %v1096, 125
    %v1548 = vpop.permute.xlu0 %1547
    %1549 = vrot.lane.b32.xlu0 %v1100, 125
    %v1550 = vpop.permute.xlu0 %1549
    %1551 = vrot.lane.b32.xlu0 %v1104, 125
    %v1552 = vpop.permute.xlu0 %1551
    %v1553 = vsel %vm381, %v1538, %v1546
    %v1554 = vsel %vm381, %v1540, %v1548
    %v1555 = vsel %vm381, %v1542, %v1550
    %v1556 = vsel %vm381, %v1544, %v1552
    %v1557 = vsel %vm381, %v1530, %v1538
    %v1558 = vsel %vm381, %v1532, %v1540
    %v1559 = vsel %vm381, %v1534, %v1542
    %v1560 = vsel %vm381, %v1536, %v1544
    %v1561 = vsel %vm381, %v1522, %v1530
    %v1562 = vsel %vm381, %v1524, %v1532
    %v1563 = vsel %vm381, %v1526, %v1534
    %v1564 = vsel %vm381, %v1528, %v1536
    %v1565 = vsel %vm381, %v1546, %v1522
    %v1566 = vsel %vm381, %v1548, %v1524
    %v1567 = vsel %vm381, %v1550, %v1526
    %v1568 = vsel %vm381, %v1552, %v1528
    %v1569 = vsel %vm394, %v1561, 0.0
    %v1570 = vsel %vm395, %v1557, 0.0
    %v1571 = vsel %vm394, %v1553, 0.0
    %v1572 = vsel %vm395, %v1565, 0.0
    %v1573 = vsel %vm394, %v1562, 0.0
    %v1574 = vsel %vm395, %v1558, 0.0
    %v1575 = vsel %vm394, %v1554, 0.0
    %v1576 = vsel %vm395, %v1566, 0.0
    %v1577 = vsel %vm394, %v1563, 0.0
    %v1578 = vsel %vm395, %v1559, 0.0
    %v1579 = vsel %vm394, %v1555, 0.0
    %v1580 = vsel %vm395, %v1567, 0.0
    %v1581 = vsel %vm394, %v1564, 0.0
    %v1582 = vsel %vm395, %v1560, 0.0
    %v1583 = vsel %vm394, %v1556, 0.0
    %v1584 = vsel %vm395, %v1568, 0.0
    %v1585 = vpack.c.bf16 %v1570, %v1569
    %v1586 = vpack.c.bf16 %v1572, %v1571
    %v1587 = vpack.c.bf16 %v1574, %v1573
    %v1588 = vpack.c.bf16 %v1576, %v1575
    %v1589 = vpack.c.bf16 %v1578, %v1577
    %v1590 = vpack.c.bf16 %v1580, %v1579
    %v1591 = vpack.c.bf16 %v1582, %v1581
    %v1592 = vpack.c.bf16 %v1584, %v1583
    %1593 = vst [vmem:[#allocation3 + $0x180] sm:$0xff] %v1585
    %1594 = vst [vmem:[#allocation3 + $0x188] sm:$0xff] %v1586
    %1595 = vst [vmem:[#allocation3 + $0x190] sm:$0xff] %v1587
    %1596 = vst [vmem:[#allocation3 + $0x198] sm:$0xff] %v1588
    %1597 = vst [vmem:[#allocation3 + $0x1a0] sm:$0xff] %v1589
    %1598 = vst [vmem:[#allocation3 + $0x1a8] sm:$0xff] %v1590
    %1599 = vst [vmem:[#allocation3 + $0x1b0] sm:$0xff] %v1591
    %1600 = vst [vmem:[#allocation3 + $0x1b8] sm:$0xff] %v1592
    %v1601 = vld [vmem:[%s3] sm:$0xff]
    %v1602 = vld [vmem:[%s3 + $0x8] sm:$0xff]
    %v1603 = vld [vmem:[%s3 + $0x10] sm:$0xff]
    %v1604 = vld [vmem:[%s3 + $0x18] sm:$0xff]
    %v1605 = vld [vmem:[#allocation3] sm:$0xff]
    %v1606 = vld [vmem:[#allocation3 + $0x8] sm:$0xff]
    %v1607 = vld [vmem:[#allocation3 + $0x10] sm:$0xff]
    %v1608 = vld [vmem:[#allocation3 + $0x18] sm:$0xff]
    %v1609 = vld [vmem:[#allocation3 + $0x20] sm:$0xff]
    %v1610 = vld [vmem:[#allocation3 + $0x28] sm:$0xff]
    %v1611 = vld [vmem:[#allocation3 + $0x30] sm:$0xff]
    %v1612 = vld [vmem:[#allocation3 + $0x38] sm:$0xff]
    %v1613 = vld [vmem:[#allocation3 + $0x40] sm:$0xff]
    %v1614 = vld [vmem:[#allocation3 + $0x48] sm:$0xff]
    %v1615 = vld [vmem:[#allocation3 + $0x50] sm:$0xff]
    %v1616 = vld [vmem:[#allocation3 + $0x58] sm:$0xff]
    %v1617 = vld [vmem:[#allocation3 + $0x60] sm:$0xff]
    %v1618 = vld [vmem:[#allocation3 + $0x68] sm:$0xff]
    %v1619 = vld [vmem:[#allocation3 + $0x70] sm:$0xff]
    %v1620 = vld [vmem:[#allocation3 + $0x78] sm:$0xff]
    %v1621 = vld [vmem:[#allocation3 + $0x80] sm:$0xff]
    %v1622 = vld [vmem:[#allocation3 + $0x88] sm:$0xff]
    %v1623 = vld [vmem:[#allocation3 + $0x90] sm:$0xff]
    %v1624 = vld [vmem:[#allocation3 + $0x98] sm:$0xff]
    %v1625 = vld [vmem:[#allocation3 + $0xa0] sm:$0xff]
    %v1626 = vld [vmem:[#allocation3 + $0xa8] sm:$0xff]
    %v1627 = vld [vmem:[#allocation3 + $0xb0] sm:$0xff]
    %v1628 = vld [vmem:[#allocation3 + $0xb8] sm:$0xff]
    %v1629 = vld [vmem:[#allocation3 + $0xc0] sm:$0xff]
    %v1630 = vld [vmem:[#allocation3 + $0xc8] sm:$0xff]
    %v1631 = vld [vmem:[#allocation3 + $0xd0] sm:$0xff]
    %v1632 = vld [vmem:[#allocation3 + $0xd8] sm:$0xff]
    %v1633 = vld [vmem:[#allocation3 + $0xe0] sm:$0xff]
    %v1634 = vld [vmem:[#allocation3 + $0xe8] sm:$0xff]
    %v1635 = vld [vmem:[#allocation3 + $0xf0] sm:$0xff]
    %v1636 = vld [vmem:[#allocation3 + $0xf8] sm:$0xff]
    %v1637 = vld [vmem:[#allocation3 + $0x100] sm:$0xff]
    %v1638 = vld [vmem:[#allocation3 + $0x108] sm:$0xff]
    %v1639 = vld [vmem:[#allocation3 + $0x110] sm:$0xff]
    %v1640 = vld [vmem:[#allocation3 + $0x118] sm:$0xff]
    %v1641 = vld [vmem:[#allocation3 + $0x120] sm:$0xff]
    %v1642 = vld [vmem:[#allocation3 + $0x128] sm:$0xff]
    %v1643 = vld [vmem:[#allocation3 + $0x130] sm:$0xff]
    %v1644 = vld [vmem:[#allocation3 + $0x138] sm:$0xff]
    %v1645 = vld [vmem:[#allocation3 + $0x140] sm:$0xff]
    %v1646 = vld [vmem:[#allocation3 + $0x148] sm:$0xff]
    %v1647 = vld [vmem:[#allocation3 + $0x150] sm:$0xff]
    %v1648 = vld [vmem:[#allocation3 + $0x158] sm:$0xff]
    %v1649 = vld [vmem:[#allocation3 + $0x160] sm:$0xff]
    %v1650 = vld [vmem:[#allocation3 + $0x168] sm:$0xff]
    %v1651 = vld [vmem:[#allocation3 + $0x170] sm:$0xff]
    %v1652 = vld [vmem:[#allocation3 + $0x178] sm:$0xff]
    %v1653 = vld [vmem:[#allocation3 + $0x180] sm:$0xff]
    %v1654 = vld [vmem:[#allocation3 + $0x188] sm:$0xff]
    %v1655 = vld [vmem:[#allocation3 + $0x190] sm:$0xff]
    %v1656 = vld [vmem:[#allocation3 + $0x198] sm:$0xff]
    %v1657 = vld [vmem:[#allocation3 + $0x1a0] sm:$0xff]
    %v1658 = vld [vmem:[#allocation3 + $0x1a8] sm:$0xff]
    %v1659 = vld [vmem:[#allocation3 + $0x1b0] sm:$0xff]
    %v1660 = vld [vmem:[#allocation3 + $0x1b8] sm:$0xff]
    %v1661 = vld [vmem:[%s4] sm:$0xff]
    %v1662 = vld [vmem:[%s4 + $0x8] sm:$0xff]
    %v1663 = vld [vmem:[%s4 + $0x10] sm:$0xff]
    %v1664 = vld [vmem:[%s4 + $0x18] sm:$0xff]
    %1666 = vset.pattern.permute.xlu0 0
    %1667 = vperm.xlu0 %1666, %v1661
    %v1668 = vpop.permute.xlu0 %1667
    %1671 = vset.pattern.permute.xlu0 0
    %1672 = vperm.xlu0 %1671, %v1662
    %v1673 = vpop.permute.xlu0 %1672
    %1676 = vset.pattern.permute.xlu0 0
    %1677 = vperm.xlu0 %1676, %v1663
    %v1678 = vpop.permute.xlu0 %1677
    %1681 = vset.pattern.permute.xlu0 0
    %1682 = vperm.xlu0 %1681, %v1664
    %v1683 = vpop.permute.xlu0 %1682
    %v1689 = vunpack.c.l.b16 %v1601
    %v1690 = vunpack.c.h.b16 %v1601
    %v1691 = vunpack.c.l.b16 %v1602
    %v1692 = vunpack.c.h.b16 %v1602
    %v1693 = vunpack.c.l.b16 %v1603
    %v1694 = vunpack.c.h.b16 %v1603
    %v1695 = vunpack.c.l.b16 %v1604
    %v1696 = vunpack.c.h.b16 %v1604
    %v1697 = vpack.c.b16 %v1691, %v1689
    %v1698 = vpack.c.b16 %v1692, %v1690
    %v1699 = vpack.c.b16 %v1695, %v1693
    %v1700 = vpack.c.b16 %v1696, %v1694
    %v1759 = vunpack.c.l.b16 %v1605
    %v1760 = vunpack.c.h.b16 %v1605
    %v1761 = vunpack.c.l.b16 %v1606
    %v1762 = vunpack.c.h.b16 %v1606
    %v1763 = vunpack.c.l.b16 %v1607
    %v1764 = vunpack.c.h.b16 %v1607
    %v1765 = vunpack.c.l.b16 %v1608
    %v1766 = vunpack.c.h.b16 %v1608
    %v1767 = vunpack.c.l.b16 %v1609
    %v1768 = vunpack.c.h.b16 %v1609
    %v1769 = vunpack.c.l.b16 %v1610
    %v1770 = vunpack.c.h.b16 %v1610
    %v1771 = vunpack.c.l.b16 %v1611
    %v1772 = vunpack.c.h.b16 %v1611
    %v1773 = vunpack.c.l.b16 %v1612
    %v1774 = vunpack.c.h.b16 %v1612
    %v1775 = vunpack.c.l.b16 %v1613
    %v1776 = vunpack.c.h.b16 %v1613
    %v1777 = vunpack.c.l.b16 %v1614
    %v1778 = vunpack.c.h.b16 %v1614
    %v1779 = vunpack.c.l.b16 %v1615
    %v1780 = vunpack.c.h.b16 %v1615
    %v1781 = vunpack.c.l.b16 %v1616
    %v1782 = vunpack.c.h.b16 %v1616
    %v1783 = vunpack.c.l.b16 %v1617
    %v1784 = vunpack.c.h.b16 %v1617
    %v1785 = vunpack.c.l.b16 %v1618
    %v1786 = vunpack.c.h.b16 %v1618
    %v1787 = vunpack.c.l.b16 %v1619
    %v1788 = vunpack.c.h.b16 %v1619
    %v1789 = vunpack.c.l.b16 %v1620
    %v1790 = vunpack.c.h.b16 %v1620
    %v1791 = vunpack.c.l.b16 %v1621
    %v1792 = vunpack.c.h.b16 %v1621
    %v1793 = vunpack.c.l.b16 %v1622
    %v1794 = vunpack.c.h.b16 %v1622
    %v1795 = vunpack.c.l.b16 %v1623
    %v1796 = vunpack.c.h.b16 %v1623
    %v1797 = vunpack.c.l.b16 %v1624
    %v1798 = vunpack.c.h.b16 %v1624
    %v1799 = vunpack.c.l.b16 %v1625
    %v1800 = vunpack.c.h.b16 %v1625
    %v1801 = vunpack.c.l.b16 %v1626
    %v1802 = vunpack.c.h.b16 %v1626
    %v1803 = vunpack.c.l.b16 %v1627
    %v1804 = vunpack.c.h.b16 %v1627
    %v1805 = vunpack.c.l.b16 %v1628
    %v1806 = vunpack.c.h.b16 %v1628
    %v1807 = vunpack.c.l.b16 %v1629
    %v1808 = vunpack.c.h.b16 %v1629
    %v1809 = vunpack.c.l.b16 %v1630
    %v1810 = vunpack.c.h.b16 %v1630
    %v1811 = vunpack.c.l.b16 %v1631
    %v1812 = vunpack.c.h.b16 %v1631
    %v1813 = vunpack.c.l.b16 %v1632
    %v1814 = vunpack.c.h.b16 %v1632
    %v1815 = vunpack.c.l.b16 %v1633
    %v1816 = vunpack.c.h.b16 %v1633
    %v1817 = vunpack.c.l.b16 %v1634
    %v1818 = vunpack.c.h.b16 %v1634
    %v1819 = vunpack.c.l.b16 %v1635
    %v1820 = vunpack.c.h.b16 %v1635
    %v1821 = vunpack.c.l.b16 %v1636
    %v1822 = vunpack.c.h.b16 %v1636
    %v1823 = vunpack.c.l.b16 %v1637
    %v1824 = vunpack.c.h.b16 %v1637
    %v1825 = vunpack.c.l.b16 %v1638
    %v1826 = vunpack.c.h.b16 %v1638
    %v1827 = vunpack.c.l.b16 %v1639
    %v1828 = vunpack.c.h.b16 %v1639
    %v1829 = vunpack.c.l.b16 %v1640
    %v1830 = vunpack.c.h.b16 %v1640
    %v1831 = vunpack.c.l.b16 %v1641
    %v1832 = vunpack.c.h.b16 %v1641
    %v1833 = vunpack.c.l.b16 %v1642
    %v1834 = vunpack.c.h.b16 %v1642
    %v1835 = vunpack.c.l.b16 %v1643
    %v1836 = vunpack.c.h.b16 %v1643
    %v1837 = vunpack.c.l.b16 %v1644
    %v1838 = vunpack.c.h.b16 %v1644
    %v1839 = vunpack.c.l.b16 %v1645
    %v1840 = vunpack.c.h.b16 %v1645
    %v1841 = vunpack.c.l.b16 %v1646
    %v1842 = vunpack.c.h.b16 %v1646
    %v1843 = vunpack.c.l.b16 %v1647
    %v1844 = vunpack.c.h.b16 %v1647
    %v1845 = vunpack.c.l.b16 %v1648
    %v1846 = vunpack.c.h.b16 %v1648
    %v1847 = vunpack.c.l.b16 %v1649
    %v1848 = vunpack.c.h.b16 %v1649
    %v1849 = vunpack.c.l.b16 %v1650
    %v1850 = vunpack.c.h.b16 %v1650
    %v1851 = vunpack.c.l.b16 %v1651
    %v1852 = vunpack.c.h.b16 %v1651
    %v1853 = vunpack.c.l.b16 %v1652
    %v1854 = vunpack.c.h.b16 %v1652
    %v1855 = vunpack.c.l.b16 %v1653
    %v1856 = vunpack.c.h.b16 %v1653
    %v1857 = vunpack.c.l.b16 %v1654
    %v1858 = vunpack.c.h.b16 %v1654
    %v1859 = vunpack.c.l.b16 %v1655
    %v1860 = vunpack.c.h.b16 %v1655
    %v1861 = vunpack.c.l.b16 %v1656
    %v1862 = vunpack.c.h.b16 %v1656
    %v1863 = vunpack.c.l.b16 %v1657
    %v1864 = vunpack.c.h.b16 %v1657
    %v1865 = vunpack.c.l.b16 %v1658
    %v1866 = vunpack.c.h.b16 %v1658
    %v1867 = vunpack.c.l.b16 %v1659
    %v1868 = vunpack.c.h.b16 %v1659
    %v1869 = vunpack.c.l.b16 %v1660
    %v1870 = vunpack.c.h.b16 %v1660
    %v1871 = vpack.c.b16 %v1763, %v1759
    %v1872 = vpack.c.b16 %v1764, %v1760
    %v1873 = vpack.c.b16 %v1765, %v1761
    %v1874 = vpack.c.b16 %v1766, %v1762
    %v1875 = vpack.c.b16 %v1771, %v1767
    %v1876 = vpack.c.b16 %v1772, %v1768
    %v1877 = vpack.c.b16 %v1773, %v1769
    %v1878 = vpack.c.b16 %v1774, %v1770
    %v1879 = vpack.c.b16 %v1779, %v1775
    %v1880 = vpack.c.b16 %v1780, %v1776
    %v1881 = vpack.c.b16 %v1781, %v1777
    %v1882 = vpack.c.b16 %v1782, %v1778
    %v1883 = vpack.c.b16 %v1787, %v1783
    %v1884 = vpack.c.b16 %v1788, %v1784
    %v1885 = vpack.c.b16 %v1789, %v1785
    %v1886 = vpack.c.b16 %v1790, %v1786
    %v1887 = vpack.c.b16 %v1795, %v1791
    %v1888 = vpack.c.b16 %v1796, %v1792
    %v1889 = vpack.c.b16 %v1797, %v1793
    %v1890 = vpack.c.b16 %v1798, %v1794
    %v1891 = vpack.c.b16 %v1803, %v1799
    %v1892 = vpack.c.b16 %v1804, %v1800
    %v1893 = vpack.c.b16 %v1805, %v1801
    %v1894 = vpack.c.b16 %v1806, %v1802
    %v1895 = vpack.c.b16 %v1811, %v1807
    %v1896 = vpack.c.b16 %v1812, %v1808
    %v1897 = vpack.c.b16 %v1813, %v1809
    %v1898 = vpack.c.b16 %v1814, %v1810
    %v1899 = vpack.c.b16 %v1819, %v1815
    %v1900 = vpack.c.b16 %v1820, %v1816
    %v1901 = vpack.c.b16 %v1821, %v1817
    %v1902 = vpack.c.b16 %v1822, %v1818
    %v1903 = vpack.c.b16 %v1827, %v1823
    %v1904 = vpack.c.b16 %v1828, %v1824
    %v1905 = vpack.c.b16 %v1829, %v1825
    %v1906 = vpack.c.b16 %v1830, %v1826
    %v1907 = vpack.c.b16 %v1835, %v1831
    %v1908 = vpack.c.b16 %v1836, %v1832
    %v1909 = vpack.c.b16 %v1837, %v1833
    %v1910 = vpack.c.b16 %v1838, %v1834
    %v1911 = vpack.c.b16 %v1843, %v1839
    %v1912 = vpack.c.b16 %v1844, %v1840
    %v1913 = vpack.c.b16 %v1845, %v1841
    %v1914 = vpack.c.b16 %v1846, %v1842
    %v1915 = vpack.c.b16 %v1851, %v1847
    %v1916 = vpack.c.b16 %v1852, %v1848
    %v1917 = vpack.c.b16 %v1853, %v1849
    %v1918 = vpack.c.b16 %v1854, %v1850
    %v1919 = vpack.c.b16 %v1859, %v1855
    %v1920 = vpack.c.b16 %v1860, %v1856
    %v1921 = vpack.c.b16 %v1861, %v1857
    %v1922 = vpack.c.b16 %v1862, %v1858
    %v1923 = vpack.c.b16 %v1867, %v1863
    %v1924 = vpack.c.b16 %v1868, %v1864
    %v1925 = vpack.c.b16 %v1869, %v1865
    %v1926 = vpack.c.b16 %v1870, %v1866
    %vm1983 = vcmask 785408
    %v1985 = vsel %vm1983, %v1698, 0
    %v1988 = vsel %vm1983, %v1700, 0
    %1990 = vmatpush.bf16.msra.mxu0 %v1899
    %1991 = vmatpush.bf16.msra.mxu0 %v1895
    %1992 = vmatpush.bf16.msra.mxu0 %v1891
    %1993 = vmatpush.bf16.msra.mxu0 %v1887
    %1994 = vmatpush.bf16.msra.mxu0 %v1883
    %1995 = vmatpush.bf16.msra.mxu0 %v1879
    %1996 = vmatpush.bf16.msra.mxu0 %v1875
    %1997 = vmatpush.bf16.msra.mxu0 %v1871
    %1998 = vmatmul.bf16.gmra.mxu0 %v1697
    %v1999 = vpop.f32.mrf.mxu0
    %v2000 = vadd.f32 %v1668, %v1999
    %v2001 = vpop.f32.mrf.mxu0
    %v2002 = vadd.f32 %v1673, %v2001
    %2003 = vmatmul.bf16.gmra.mxu0 %v1699
    %v2004 = vpop.f32.mrf.mxu0
    %v2005 = vadd.f32 %v1678, %v2004
    %v2006 = vpop.f32.mrf.mxu0
    %v2007 = vadd.f32 %v1683, %v2006
    %2008 = vdwg.mxu0
    %2009 = vmatpush.bf16.msra.mxu0 0
    %2010 = vmatpush.bf16.msra.mxu0 0
    %2011 = vmatpush.bf16.msra.mxu0 %v1923
    %2012 = vmatpush.bf16.msra.mxu0 %v1919
    %2013 = vmatpush.bf16.msra.mxu0 %v1915
    %2014 = vmatpush.bf16.msra.mxu0 %v1911
    %2015 = vmatpush.bf16.msra.mxu0 %v1907
    %2016 = vmatpush.bf16.msra.mxu0 %v1903
    %2017 = vmatmul.bf16.gmra.mxu0 %v1985
    %v2018 = vpop.f32.mrf.mxu0
    %v2019 = vadd.f32 %v2000, %v2018
    %v2020 = vpop.f32.mrf.mxu0
    %v2021 = vadd.f32 %v2002, %v2020
    %2022 = vmatmul.bf16.gmra.mxu0 %v1988
    %v2023 = vpop.f32.mrf.mxu0
    %v2024 = vadd.f32 %v2005, %v2023
    %v2025 = vpop.f32.mrf.mxu0
    %v2026 = vadd.f32 %v2007, %v2025
    %2027 = vdwg.mxu0
    %2028 = vmatpush.bf16.msra.mxu0 %v1900
    %2029 = vmatpush.bf16.msra.mxu0 %v1896
    %2030 = vmatpush.bf16.msra.mxu0 %v1892
    %2031 = vmatpush.bf16.msra.mxu0 %v1888
    %2032 = vmatpush.bf16.msra.mxu0 %v1884
    %2033 = vmatpush.bf16.msra.mxu0 %v1880
    %2034 = vmatpush.bf16.msra.mxu0 %v1876
    %2035 = vmatpush.bf16.msra.mxu0 %v1872
    %2036 = vmatmul.bf16.gmra.mxu0 %v1697
    %v2037 = vpop.f32.mrf.mxu0
    %v2038 = vadd.f32 %v1668, %v2037
    %v2039 = vpop.f32.mrf.mxu0
    %v2040 = vadd.f32 %v1673, %v2039
    %2041 = vmatmul.bf16.gmra.mxu0 %v1699
    %v2042 = vpop.f32.mrf.mxu0
    %v2043 = vadd.f32 %v1678, %v2042
    %v2044 = vpop.f32.mrf.mxu0
    %v2045 = vadd.f32 %v1683, %v2044
    %2046 = vdwg.mxu0
    %2047 = vmatpush.bf16.msra.mxu0 0
    %2048 = vmatpush.bf16.msra.mxu0 0
    %2049 = vmatpush.bf16.msra.mxu0 %v1924
    %2050 = vmatpush.bf16.msra.mxu0 %v1920
    %2051 = vmatpush.bf16.msra.mxu0 %v1916
    %2052 = vmatpush.bf16.msra.mxu0 %v1912
    %2053 = vmatpush.bf16.msra.mxu0 %v1908
    %2054 = vmatpush.bf16.msra.mxu0 %v1904
    %2055 = vmatmul.bf16.gmra.mxu0 %v1985
    %v2056 = vpop.f32.mrf.mxu0
    %v2057 = vadd.f32 %v2038, %v2056
    %v2058 = vpop.f32.mrf.mxu0
    %v2059 = vadd.f32 %v2040, %v2058
    %2060 = vmatmul.bf16.gmra.mxu0 %v1988
    %v2061 = vpop.f32.mrf.mxu0
    %v2062 = vadd.f32 %v2043, %v2061
    %v2063 = vpop.f32.mrf.mxu0
    %v2064 = vadd.f32 %v2045, %v2063
    %2065 = vdwg.mxu0
    %2066 = vmatpush.bf16.msra.mxu0 %v1901
    %2067 = vmatpush.bf16.msra.mxu0 %v1897
    %2068 = vmatpush.bf16.msra.mxu0 %v1893
    %2069 = vmatpush.bf16.msra.mxu0 %v1889
    %2070 = vmatpush.bf16.msra.mxu0 %v1885
    %2071 = vmatpush.bf16.msra.mxu0 %v1881
    %2072 = vmatpush.bf16.msra.mxu0 %v1877
    %2073 = vmatpush.bf16.msra.mxu0 %v1873
    %2074 = vmatmul.bf16.gmra.mxu0 %v1697
    %v2075 = vpop.f32.mrf.mxu0
    %v2076 = vadd.f32 %v1668, %v2075
    %v2077 = vpop.f32.mrf.mxu0
    %v2078 = vadd.f32 %v1673, %v2077
    %2079 = vmatmul.bf16.gmra.mxu0 %v1699
    %v2080 = vpop.f32.mrf.mxu0
    %v2081 = vadd.f32 %v1678, %v2080
    %v2082 = vpop.f32.mrf.mxu0
    %v2083 = vadd.f32 %v1683, %v2082
    %2084 = vdwg.mxu0
    %2085 = vmatpush.bf16.msra.mxu0 0
    %2086 = vmatpush.bf16.msra.mxu0 0
    %2087 = vmatpush.bf16.msra.mxu0 %v1925
    %2088 = vmatpush.bf16.msra.mxu0 %v1921
    %2089 = vmatpush.bf16.msra.mxu0 %v1917
    %2090 = vmatpush.bf16.msra.mxu0 %v1913
    %2091 = vmatpush.bf16.msra.mxu0 %v1909
    %2092 = vmatpush.bf16.msra.mxu0 %v1905
    %2093 = vmatmul.bf16.gmra.mxu0 %v1985
    %v2094 = vpop.f32.mrf.mxu0
    %v2095 = vadd.f32 %v2076, %v2094
    %v2096 = vpop.f32.mrf.mxu0
    %v2097 = vadd.f32 %v2078, %v2096
    %2098 = vmatmul.bf16.gmra.mxu0 %v1988
    %v2099 = vpop.f32.mrf.mxu0
    %v2100 = vadd.f32 %v2081, %v2099
    %v2101 = vpop.f32.mrf.mxu0
    %v2102 = vadd.f32 %v2083, %v2101
    %2103 = vdwg.mxu0
    %2104 = vmatpush.bf16.msra.mxu0 %v1902
    %2105 = vmatpush.bf16.msra.mxu0 %v1898
    %2106 = vmatpush.bf16.msra.mxu0 %v1894
    %2107 = vmatpush.bf16.msra.mxu0 %v1890
    %2108 = vmatpush.bf16.msra.mxu0 %v1886
    %2109 = vmatpush.bf16.msra.mxu0 %v1882
    %2110 = vmatpush.bf16.msra.mxu0 %v1878
    %2111 = vmatpush.bf16.msra.mxu0 %v1874
    %2112 = vmatmul.bf16.gmra.mxu0 %v1697
    %v2113 = vpop.f32.mrf.mxu0
    %v2114 = vadd.f32 %v1668, %v2113
    %v2115 = vpop.f32.mrf.mxu0
    %v2116 = vadd.f32 %v1673, %v2115
    %2117 = vmatmul.bf16.gmra.mxu0 %v1699
    %v2118 = vpop.f32.mrf.mxu0
    %v2119 = vadd.f32 %v1678, %v2118
    %v2120 = vpop.f32.mrf.mxu0
    %v2121 = vadd.f32 %v1683, %v2120
    %2122 = vdwg.mxu0
    %2123 = vmatpush.bf16.msra.mxu0 0
    %2124 = vmatpush.bf16.msra.mxu0 0
    %2125 = vmatpush.bf16.msra.mxu0 %v1926
    %2126 = vmatpush.bf16.msra.mxu0 %v1922
    %2127 = vmatpush.bf16.msra.mxu0 %v1918
    %2128 = vmatpush.bf16.msra.mxu0 %v1914
    %2129 = vmatpush.bf16.msra.mxu0 %v1910
    %2130 = vmatpush.bf16.msra.mxu0 %v1906
    %2131 = vmatmul.bf16.gmra.mxu0 %v1985
    %v2132 = vpop.f32.mrf.mxu0
    %v2133 = vadd.f32 %v2114, %v2132
    %v2134 = vpop.f32.mrf.mxu0
    %v2135 = vadd.f32 %v2116, %v2134
    %2136 = vmatmul.bf16.gmra.mxu0 %v1988
    %v2137 = vpop.f32.mrf.mxu0
    %v2138 = vadd.f32 %v2119, %v2137
    %v2139 = vpop.f32.mrf.mxu0
    %v2140 = vadd.f32 %v2121, %v2139
    %2141 = vdwg.mxu0
    %v2142 = vadd.f32 %v2019, %v2057
    %2143 = vadd.xlane.f32.xlu0 %v2142
    %v2144 = vpop.xlane.xlu0 %2143
    %v2145 = vadd.f32 %v2021, %v2059
    %2146 = vadd.xlane.f32.xlu0 %v2145
    %v2147 = vpop.xlane.xlu0 %2146
    %v2148 = vadd.f32 %v2024, %v2062
    %2149 = vadd.xlane.f32.xlu0 %v2148
    %v2150 = vpop.xlane.xlu0 %2149
    %v2151 = vadd.f32 %v2026, %v2064
    %2152 = vadd.xlane.f32.xlu0 %v2151
    %v2153 = vpop.xlane.xlu0 %2152
    %v2154 = vrcp.pop 256.0
    %v2155 = vmul.f32 256.0, %v2154
    %v2156 = vsub.f32 1.0, %v2155
    %v2157 = vmul.f32 %v2154, %v2156
    %v2158 = vadd.f32 %v2154, %v2157
    %vm2159 = vweird.f32 %v2154
    %v2160 = vsel %vm2159, %v2154, %v2158
    %v2161 = vmul.f32 %v2144, %v2160
    %v2162 = vmul.f32 %v2147, %v2160
    %v2163 = vmul.f32 %v2150, %v2160
    %v2164 = vmul.f32 %v2153, %v2160
    %v2165 = vadd.f32 %v2095, %v2133
    %2166 = vadd.xlane.f32.xlu0 %v2165
    %v2167 = vpop.xlane.xlu0 %2166
    %v2168 = vadd.f32 %v2097, %v2135
    %2169 = vadd.xlane.f32.xlu0 %v2168
    %v2170 = vpop.xlane.xlu0 %2169
    %v2171 = vadd.f32 %v2100, %v2138
    %2172 = vadd.xlane.f32.xlu0 %v2171
    %v2173 = vpop.xlane.xlu0 %2172
    %v2174 = vadd.f32 %v2102, %v2140
    %2175 = vadd.xlane.f32.xlu0 %v2174
    %v2176 = vpop.xlane.xlu0 %2175
    %v2177 = vmul.f32 %v2167, %v2160
    %v2178 = vmul.f32 %v2170, %v2160
    %v2179 = vmul.f32 %v2173, %v2160
    %v2180 = vmul.f32 %v2176, %v2160
    %vm2181 = vcmask 7168
    %v2182 = vsel %vm2181, %v2161, %v2177
    %v2183 = vsel %vm2181, %v2162, %v2178
    %v2184 = vsel %vm2181, %v2163, %v2179
    %v2185 = vsel %vm2181, %v2164, %v2180
    %v2186 = vld [vmem:[%s5] sm:$0xff]
    %vm2187 = vcmask 261120
    %v2189 = vsel %vm2187, %v2186, 0
    %2191 = vmatpush.msra.mxu0 0.0
    %2192 = vmatpush.msra.mxu0 0.0
    %2193 = vmatpush.msra.mxu0 0.0
    %2194 = vmatpush.msra.mxu0 0.0
    %2195 = vmatpush.msra.mxu0 0.0
    %2196 = vmatpush.msra.mxu0 0.0
    %2197 = vmatpush.msra.mxu0 0.0
    %2198 = vmatpush.msra.mxu0 0.0
    %2199 = vmatpush.msra.mxu0 0.0
    %2200 = vmatpush.msra.mxu0 0.0
    %2201 = vmatpush.msra.mxu0 0.0
    %2202 = vmatpush.msra.mxu0 0.0
    %2203 = vmatpush.msra.mxu0 %v2185
    %2204 = vmatpush.msra.mxu0 %v2184
    %2205 = vmatpush.msra.mxu0 %v2183
    %2206 = vmatpush.msra.mxu0 %v2182
    %2207 = vmatmul.f32.gmra.mxu0 %v2189
    %v2208 = vpop.f32.mrf.mxu0
    %v2209 = vadd.f32 0.0, %v2208
    %2210 = vdwg.mxu0
    %v2211 = vsub.f32 0.0, %v2209
    %v2212 = vmul.f32 %v2211, 1.442695
    %v2213 = vpow.pop %v2212
    %v2214 = vadd.f32 %v2213, 1.0
    %v2215 = vrcp.pop %v2214
    %v2216 = vmul.f32 %v2214, %v2215
    %v2217 = vsub.f32 1.0, %v2216
    %v2218 = vmul.f32 %v2215, %v2217
    %v2219 = vadd.f32 %v2215, %v2218
    %vm2220 = vweird.f32 %v2214
    %vm2221 = vweird.f32 %v2215
    %vm2222 = vmor %vm2220, %vm2221
    %v2223 = vsel %vm2222, %v2215, %v2219
    %v2224 = vand.u32 2147483647, %v2214
    %vm2225 = vcmp.eq.f32.partialorder %v2224, 8.507059e+37
    %v2226 = vand.u32 %v2214, 2147483648
    %v2227 = vor.u32 1.1754944e-38, %v2226
    %v2228 = vsel %vm2225, %v2227, %v2223
    %v2229 = vmul.f32 1.0, %v2228
    %v2230 = vmul.f32 %v2209, %v2229
    %v2231 = vld [vmem:[%s6] sm:$0xff]
    %v2232 = vld [vmem:[%s6 + $0x8] sm:$0xff]
    %v2233 = vld [vmem:[%s6 + $0x10] sm:$0xff]
    %v2234 = vld [vmem:[%s6 + $0x18] sm:$0xff]
    %vm2235 = vcmask 64512
    %v2237 = vsel %vm2235, %v2231, 0
    %v2240 = vsel %vm2235, %v2232, 0
    %v2243 = vsel %vm2235, %v2233, 0
    %v2246 = vsel %vm2235, %v2234, 0
    %2248 = vmatpush.msra.mxu0 0.0
    %2249 = vmatpush.msra.mxu0 0.0
    %2250 = vmatpush.msra.mxu0 0.0
    %2251 = vmatpush.msra.mxu0 0.0
    %2252 = vmatpush.msra.mxu0 0.0
    %2253 = vmatpush.msra.mxu0 0.0
    %2254 = vmatpush.msra.mxu0 0.0
    %2255 = vmatpush.msra.mxu0 0.0
    %2256 = vmatpush.msra.mxu0 0.0
    %2257 = vmatpush.msra.mxu0 0.0
    %2258 = vmatpush.msra.mxu0 0.0
    %2259 = vmatpush.msra.mxu0 0.0
    %2260 = vmatpush.msra.mxu0 0.0
    %2261 = vmatpush.msra.mxu0 0.0
    %2262 = vmatpush.msra.mxu0 0.0
    %2263 = vmatpush.msra.mxu0 %v2230
    %2264 = vmatmul.f32.gmra.mxu0 %v2237
    %v2265 = vpop.f32.mrf.mxu0
    %v2266 = vadd.f32 0.0, %v2265
    %2267 = vmatmul.f32.gmra.mxu0 %v2240
    %v2268 = vpop.f32.mrf.mxu0
    %v2269 = vadd.f32 0.0, %v2268
    %2270 = vmatmul.f32.gmra.mxu0 %v2243
    %v2271 = vpop.f32.mrf.mxu0
    %v2272 = vadd.f32 0.0, %v2271
    %2273 = vmatmul.f32.gmra.mxu0 %v2246
    %v2274 = vpop.f32.mrf.mxu0
    %v2275 = vadd.f32 0.0, %v2274
    %2276 = vdwg.mxu0
    %v2277 = vsub.f32 0.0, %v2266
    %v2278 = vsub.f32 0.0, %v2269
    %v2279 = vsub.f32 0.0, %v2272
    %v2280 = vsub.f32 0.0, %v2275
    %v2281 = vmul.f32 %v2277, 1.442695
    %v2282 = vpow.pop %v2281
    %v2283 = vmul.f32 %v2278, 1.442695
    %v2284 = vpow.pop %v2283
    %v2285 = vmul.f32 %v2279, 1.442695
    %v2286 = vpow.pop %v2285
    %v2287 = vmul.f32 %v2280, 1.442695
    %v2288 = vpow.pop %v2287
    %v2289 = vadd.f32 %v2282, 1.0
    %v2290 = vadd.f32 %v2284, 1.0
    %v2291 = vadd.f32 %v2286, 1.0
    %v2292 = vadd.f32 %v2288, 1.0
    %v2293 = vrcp.pop %v2289
    %v2294 = vmul.f32 %v2289, %v2293
    %v2295 = vsub.f32 1.0, %v2294
    %v2296 = vmul.f32 %v2293, %v2295
    %v2297 = vadd.f32 %v2293, %v2296
    %vm2298 = vweird.f32 %v2289
    %vm2299 = vweird.f32 %v2293
    %vm2300 = vmor %vm2298, %vm2299
    %v2301 = vsel %vm2300, %v2293, %v2297
    %v2302 = vand.u32 2147483647, %v2289
    %vm2303 = vcmp.eq.f32.partialorder %v2302, 8.507059e+37
    %v2304 = vand.u32 %v2289, 2147483648
    %v2305 = vor.u32 1.1754944e-38, %v2304
    %v2306 = vsel %vm2303, %v2305, %v2301
    %v2307 = vmul.f32 1.0, %v2306
    %v2308 = vrcp.pop %v2290
    %v2309 = vmul.f32 %v2290, %v2308
    %v2310 = vsub.f32 1.0, %v2309
    %v2311 = vmul.f32 %v2308, %v2310
    %v2312 = vadd.f32 %v2308, %v2311
    %vm2313 = vweird.f32 %v2290
    %vm2314 = vweird.f32 %v2308
    %vm2315 = vmor %vm2313, %vm2314
    %v2316 = vsel %vm2315, %v2308, %v2312
    %v2317 = vand.u32 2147483647, %v2290
    %vm2318 = vcmp.eq.f32.partialorder %v2317, 8.507059e+37
    %v2319 = vand.u32 %v2290, 2147483648
    %v2320 = vor.u32 1.1754944e-38, %v2319
    %v2321 = vsel %vm2318, %v2320, %v2316
    %v2322 = vmul.f32 1.0, %v2321
    %v2323 = vrcp.pop %v2291
    %v2324 = vmul.f32 %v2291, %v2323
    %v2325 = vsub.f32 1.0, %v2324
    %v2326 = vmul.f32 %v2323, %v2325
    %v2327 = vadd.f32 %v2323, %v2326
    %vm2328 = vweird.f32 %v2291
    %vm2329 = vweird.f32 %v2323
    %vm2330 = vmor %vm2328, %vm2329
    %v2331 = vsel %vm2330, %v2323, %v2327
    %v2332 = vand.u32 2147483647, %v2291
    %vm2333 = vcmp.eq.f32.partialorder %v2332, 8.507059e+37
    %v2334 = vand.u32 %v2291, 2147483648
    %v2335 = vor.u32 1.1754944e-38, %v2334
    %v2336 = vsel %vm2333, %v2335, %v2331
    %v2337 = vmul.f32 1.0, %v2336
    %v2338 = vrcp.pop %v2292
    %v2339 = vmul.f32 %v2292, %v2338
    %v2340 = vsub.f32 1.0, %v2339
    %v2341 = vmul.f32 %v2338, %v2340
    %v2342 = vadd.f32 %v2338, %v2341
    %vm2343 = vweird.f32 %v2292
    %vm2344 = vweird.f32 %v2338
    %vm2345 = vmor %vm2343, %vm2344
    %v2346 = vsel %vm2345, %v2338, %v2342
    %v2347 = vand.u32 2147483647, %v2292
    %vm2348 = vcmp.eq.f32.partialorder %v2347, 8.507059e+37
    %v2349 = vand.u32 %v2292, 2147483648
    %v2350 = vor.u32 1.1754944e-38, %v2349
    %v2351 = vsel %vm2348, %v2350, %v2346
    %v2352 = vmul.f32 1.0, %v2351
    %v2353 = vperm.slane 0, 0
    %v2354 = vperm.slane 1, 0
    %vm2355 = vcmp.eq.s32.totalorder %v2353, 1
    %vm2356 = vcmp.eq.s32.totalorder %v2354, 1
    %2358 = vset.pattern.permute.xlu0 1
    %2359 = vperm.xlu0 %2358, %v2307
    %v2360 = vpop.permute.xlu0 %2359
    %2363 = vset.pattern.permute.xlu0 1
    %2364 = vperm.xlu0 %2363, %v2322
    %v2365 = vpop.permute.xlu0 %2364
    %2368 = vset.pattern.permute.xlu0 1
    %2369 = vperm.xlu0 %2368, %v2337
    %v2370 = vpop.permute.xlu0 %2369
    %2373 = vset.pattern.permute.xlu0 1
    %2374 = vperm.xlu0 %2373, %v2352
    %v2375 = vpop.permute.xlu0 %2374
    %2377 = vset.pattern.permute.xlu0 0
    %2378 = vperm.xlu0 %2377, %v2307
    %v2379 = vpop.permute.xlu0 %2378
    %2381 = vset.pattern.permute.xlu0 0
    %2382 = vperm.xlu0 %2381, %v2322
    %v2383 = vpop.permute.xlu0 %2382
    %2385 = vset.pattern.permute.xlu0 0
    %2386 = vperm.xlu0 %2385, %v2337
    %v2387 = vpop.permute.xlu0 %2386
    %2389 = vset.pattern.permute.xlu0 0
    %2390 = vperm.xlu0 %2389, %v2352
    %v2391 = vpop.permute.xlu0 %2390
    %v2393 = vsel %vm2355, %v2360, %v2379
    %v2394 = vsel %vm2356, %v2360, %v2379
    %v2395 = vsel %vm2355, %v2365, %v2383
    %v2396 = vsel %vm2356, %v2365, %v2383
    %v2397 = vsel %vm2355, %v2370, %v2387
    %v2398 = vsel %vm2356, %v2370, %v2387
    %v2399 = vsel %vm2355, %v2375, %v2391
    %v2400 = vsel %vm2356, %v2375, %v2391
    %v2401 = vmul.f32 %v2019, %v2393
    %v2402 = vmul.f32 %v2057, %v2393
    %v2403 = vmul.f32 %v2095, %v2394
    %v2404 = vmul.f32 %v2133, %v2394
    %v2405 = vmul.f32 %v2021, %v2395
    %v2406 = vmul.f32 %v2059, %v2395
    %v2407 = vmul.f32 %v2097, %v2396
    %v2408 = vmul.f32 %v2135, %v2396
    %v2409 = vmul.f32 %v2024, %v2397
    %v2410 = vmul.f32 %v2062, %v2397
    %v2411 = vmul.f32 %v2100, %v2398
    %v2412 = vmul.f32 %v2138, %v2398
    %v2413 = vmul.f32 %v2026, %v2399
    %v2414 = vmul.f32 %v2064, %v2399
    %v2415 = vmul.f32 %v2102, %v2400
    %v2416 = vmul.f32 %v2140, %v2400
    %v2417 = vmax.f32 %v2401, %v2405
    %v2418 = vmax.f32 %v2417, %v2409
    %v2419 = vmax.f32 %v2418, %v2413
    %v2420 = vrot.slane %v2419, 4
    %v2421 = vmax.f32 %v2419, %v2420
    %v2422 = vrot.slane %v2421, 2
    %v2423 = vmax.f32 %v2421, %v2422
    %v2424 = vrot.slane %v2423, 1
    %v2425 = vmax.f32 %v2423, %v2424
    %v2426 = vmax.f32 %v2402, %v2406
    %v2427 = vmax.f32 %v2426, %v2410
    %v2428 = vmax.f32 %v2427, %v2414
    %v2429 = vrot.slane %v2428, 4
    %v2430 = vmax.f32 %v2428, %v2429
    %v2431 = vrot.slane %v2430, 2
    %v2432 = vmax.f32 %v2430, %v2431
    %v2433 = vrot.slane %v2432, 1
    %v2434 = vmax.f32 %v2432, %v2433
    %v2435 = vmax.f32 %v2403, %v2407
    %v2436 = vmax.f32 %v2435, %v2411
    %v2437 = vmax.f32 %v2436, %v2415
    %v2438 = vrot.slane %v2437, 4
    %v2439 = vmax.f32 %v2437, %v2438
    %v2440 = vrot.slane %v2439, 2
    %v2441 = vmax.f32 %v2439, %v2440
    %v2442 = vrot.slane %v2441, 1
    %v2443 = vmax.f32 %v2441, %v2442
    %v2444 = vmax.f32 %v2404, %v2408
    %v2445 = vmax.f32 %v2444, %v2412
    %v2446 = vmax.f32 %v2445, %v2416
    %v2447 = vrot.slane %v2446, 4
    %v2448 = vmax.f32 %v2446, %v2447
    %v2449 = vrot.slane %v2448, 2
    %v2450 = vmax.f32 %v2448, %v2449
    %v2451 = vrot.slane %v2450, 1
    %v2452 = vmax.f32 %v2450, %v2451
    %v2453 = vadd.f32 %v2401, %v2405
    %v2454 = vadd.f32 %v2453, %v2409
    %v2455 = vadd.f32 %v2454, %v2413
    %v2456 = vrot.slane %v2455, 4
    %v2457 = vadd.f32 %v2455, %v2456
    %v2458 = vrot.slane %v2457, 2
    %v2459 = vadd.f32 %v2457, %v2458
    %v2460 = vrot.slane %v2459, 1
    %v2461 = vadd.f32 %v2459, %v2460
    %v2462 = vadd.f32 %v2402, %v2406
    %v2463 = vadd.f32 %v2462, %v2410
    %v2464 = vadd.f32 %v2463, %v2414
    %v2465 = vrot.slane %v2464, 4
    %v2466 = vadd.f32 %v2464, %v2465
    %v2467 = vrot.slane %v2466, 2
    %v2468 = vadd.f32 %v2466, %v2467
    %v2469 = vrot.slane %v2468, 1
    %v2470 = vadd.f32 %v2468, %v2469
    %v2471 = vadd.f32 %v2403, %v2407
    %v2472 = vadd.f32 %v2471, %v2411
    %v2473 = vadd.f32 %v2472, %v2415
    %v2474 = vrot.slane %v2473, 4
    %v2475 = vadd.f32 %v2473, %v2474
    %v2476 = vrot.slane %v2475, 2
    %v2477 = vadd.f32 %v2475, %v2476
    %v2478 = vrot.slane %v2477, 1
    %v2479 = vadd.f32 %v2477, %v2478
    %v2480 = vadd.f32 %v2404, %v2408
    %v2481 = vadd.f32 %v2480, %v2412
    %v2482 = vadd.f32 %v2481, %v2416
    %v2483 = vrot.slane %v2482, 4
    %v2484 = vadd.f32 %v2482, %v2483
    %v2485 = vrot.slane %v2484, 2
    %v2486 = vadd.f32 %v2484, %v2485
    %v2487 = vrot.slane %v2486, 1
    %v2488 = vadd.f32 %v2486, %v2487
    %v2489 = vrcp.pop 32.0
    %v2490 = vmul.f32 32.0, %v2489
    %v2491 = vsub.f32 1.0, %v2490
    %v2492 = vmul.f32 %v2489, %v2491
    %v2493 = vadd.f32 %v2489, %v2492
    %vm2494 = vweird.f32 %v2489
    %v2495 = vsel %vm2494, %v2489, %v2493
    %v2496 = vmul.f32 %v2461, %v2495
    %v2497 = vmul.f32 %v2470, %v2495
    %v2498 = vmul.f32 %v2479, %v2495
    %v2499 = vmul.f32 %v2488, %v2495
    %s2500 = sld [smem:[#allocation4]]
    %v2501 = vadd.s32 %v63, 4294967289
    %v2502 = vadd.s32 %v64, 4294967289
    %vm2503 = vcmp.ge.s32.totalorder %v2501, 0
    %vm2504 = vcmp.ge.s32.totalorder %v2502, 0
    %vm2505 = vcmp.lt.s32.totalorder %v2501, 256
    %vm2506 = vcmp.lt.s32.totalorder %v2502, 256
    %vm2507 = vmand %vm2503, %vm2505
    %vm2508 = vmand %vm2504, %vm2506
    %2509 = vrot.lane.b32.xlu0 %v2425, 7
    %v2510 = vpop.permute.xlu0 %2509
    %2511 = vrot.lane.b32.xlu0 %v2434, 7
    %v2512 = vpop.permute.xlu0 %2511
    %2513 = vrot.lane.b32.xlu0 %v2443, 7
    %v2514 = vpop.permute.xlu0 %2513
    %2515 = vrot.lane.b32.xlu0 %v2452, 7
    %v2516 = vpop.permute.xlu0 %2515
    %vm2517 = vcmp.lt.s32.totalorder %v63, 7
    %v2518 = vsel %vm2517, %v2514, %v2516
    %v2519 = vsel %vm2517, %v2512, %v2514
    %v2520 = vsel %vm2517, %v2510, %v2512
    %v2521 = vsel %vm2517, %v2516, %v2510
    %v2522 = vsel %vm2507, %v2521, 0.0
    %v2523 = vsel %vm2508, %v2520, 0.0
    %v2524 = vsel %vm2507, %v2519, 0.0
    %v2525 = vsel %vm2508, %v2518, 0.0
    %v2526 = vstv %s2500
    %v2527 = vmul.f32 %v2526, %v2522
    %v2528 = vmul.f32 %v2526, %v2523
    %v2529 = vmul.f32 %v2526, %v2524
    %v2530 = vmul.f32 %v2526, %v2525
    %v2531 = vadd.f32 %v2527, 0.0
    %v2532 = vadd.f32 %v2528, 0.0
    %v2533 = vadd.f32 %v2529, 0.0
    %v2534 = vadd.f32 %v2530, 0.0
    %s2535 = sld [smem:[#allocation4 + $0xf]]
    %2536 = vrot.lane.b32.xlu0 %v2496, 7
    %v2537 = vpop.permute.xlu0 %2536
    %2538 = vrot.lane.b32.xlu0 %v2497, 7
    %v2539 = vpop.permute.xlu0 %2538
    %2540 = vrot.lane.b32.xlu0 %v2498, 7
    %v2541 = vpop.permute.xlu0 %2540
    %2542 = vrot.lane.b32.xlu0 %v2499, 7
    %v2543 = vpop.permute.xlu0 %2542
    %v2544 = vsel %vm2517, %v2541, %v2543
    %v2545 = vsel %vm2517, %v2539, %v2541
    %v2546 = vsel %vm2517, %v2537, %v2539
    %v2547 = vsel %vm2517, %v2543, %v2537
    %v2548 = vsel %vm2507, %v2547, 0.0
    %v2549 = vsel %vm2508, %v2546, 0.0
    %v2550 = vsel %vm2507, %v2545, 0.0
    %v2551 = vsel %vm2508, %v2544, 0.0
    %v2552 = vstv %s2535
    %v2553 = vmul.f32 %v2552, %v2548
    %v2554 = vmul.f32 %v2552, %v2549
    %v2555 = vmul.f32 %v2552, %v2550
    %v2556 = vmul.f32 %v2552, %v2551
    %v2557 = vadd.f32 %v2531, %v2553
    %v2558 = vadd.f32 %v2532, %v2554
    %v2559 = vadd.f32 %v2533, %v2555
    %v2560 = vadd.f32 %v2534, %v2556
    %s2561 = sld [smem:[#allocation4 + $0x1]]
    %v2562 = vadd.s32 %v63, 4294967290
    %v2563 = vadd.s32 %v64, 4294967290
    %vm2564 = vcmp.ge.s32.totalorder %v2562, 0
    %vm2565 = vcmp.ge.s32.totalorder %v2563, 0
    %vm2566 = vcmp.lt.s32.totalorder %v2562, 256
    %vm2567 = vcmp.lt.s32.totalorder %v2563, 256
    %vm2568 = vmand %vm2564, %vm2566
    %vm2569 = vmand %vm2565, %vm2567
    %2570 = vrot.lane.b32.xlu0 %v2425, 6
    %v2571 = vpop.permute.xlu0 %2570
    %2572 = vrot.lane.b32.xlu0 %v2434, 6
    %v2573 = vpop.permute.xlu0 %2572
    %2574 = vrot.lane.b32.xlu0 %v2443, 6
    %v2575 = vpop.permute.xlu0 %2574
    %2576 = vrot.lane.b32.xlu0 %v2452, 6
    %v2577 = vpop.permute.xlu0 %2576
    %vm2578 = vcmp.lt.s32.totalorder %v63, 6
    %v2579 = vsel %vm2578, %v2575, %v2577
    %v2580 = vsel %vm2578, %v2573, %v2575
    %v2581 = vsel %vm2578, %v2571, %v2573
    %v2582 = vsel %vm2578, %v2577, %v2571
    %v2583 = vsel %vm2568, %v2582, 0.0
    %v2584 = vsel %vm2569, %v2581, 0.0
    %v2585 = vsel %vm2568, %v2580, 0.0
    %v2586 = vsel %vm2569, %v2579, 0.0
    %v2587 = vstv %s2561
    %v2588 = vmul.f32 %v2587, %v2583
    %v2589 = vmul.f32 %v2587, %v2584
    %v2590 = vmul.f32 %v2587, %v2585
    %v2591 = vmul.f32 %v2587, %v2586
    %v2592 = vadd.f32 %v2557, %v2588
    %v2593 = vadd.f32 %v2558, %v2589
    %v2594 = vadd.f32 %v2559, %v2590
    %v2595 = vadd.f32 %v2560, %v2591
    %s2596 = sld [smem:[#allocation4 + $0x10]]
    %2597 = vrot.lane.b32.xlu0 %v2496, 6
    %v2598 = vpop.permute.xlu0 %2597
    %2599 = vrot.lane.b32.xlu0 %v2497, 6
    %v2600 = vpop.permute.xlu0 %2599
    %2601 = vrot.lane.b32.xlu0 %v2498, 6
    %v2602 = vpop.permute.xlu0 %2601
    %2603 = vrot.lane.b32.xlu0 %v2499, 6
    %v2604 = vpop.permute.xlu0 %2603
    %v2605 = vsel %vm2578, %v2602, %v2604
    %v2606 = vsel %vm2578, %v2600, %v2602
    %v2607 = vsel %vm2578, %v2598, %v2600
    %v2608 = vsel %vm2578, %v2604, %v2598
    %v2609 = vsel %vm2568, %v2608, 0.0
    %v2610 = vsel %vm2569, %v2607, 0.0
    %v2611 = vsel %vm2568, %v2606, 0.0
    %v2612 = vsel %vm2569, %v2605, 0.0
    %v2613 = vstv %s2596
    %v2614 = vmul.f32 %v2613, %v2609
    %v2615 = vmul.f32 %v2613, %v2610
    %v2616 = vmul.f32 %v2613, %v2611
    %v2617 = vmul.f32 %v2613, %v2612
    %v2618 = vadd.f32 %v2592, %v2614
    %v2619 = vadd.f32 %v2593, %v2615
    %v2620 = vadd.f32 %v2594, %v2616
    %v2621 = vadd.f32 %v2595, %v2617
    %s2622 = sld [smem:[#allocation4 + $0x2]]
    %v2623 = vadd.s32 %v63, 4294967291
    %v2624 = vadd.s32 %v64, 4294967291
    %vm2625 = vcmp.ge.s32.totalorder %v2623, 0
    %vm2626 = vcmp.ge.s32.totalorder %v2624, 0
    %vm2627 = vcmp.lt.s32.totalorder %v2623, 256
    %vm2628 = vcmp.lt.s32.totalorder %v2624, 256
    %vm2629 = vmand %vm2625, %vm2627
    %vm2630 = vmand %vm2626, %vm2628
    %2631 = vrot.lane.b32.xlu0 %v2425, 5
    %v2632 = vpop.permute.xlu0 %2631
    %2633 = vrot.lane.b32.xlu0 %v2434, 5
    %v2634 = vpop.permute.xlu0 %2633
    %2635 = vrot.lane.b32.xlu0 %v2443, 5
    %v2636 = vpop.permute.xlu0 %2635
    %2637 = vrot.lane.b32.xlu0 %v2452, 5
    %v2638 = vpop.permute.xlu0 %2637
    %vm2639 = vcmp.lt.s32.totalorder %v63, 5
    %v2640 = vsel %vm2639, %v2636, %v2638
    %v2641 = vsel %vm2639, %v2634, %v2636
    %v2642 = vsel %vm2639, %v2632, %v2634
    %v2643 = vsel %vm2639, %v2638, %v2632
    %v2644 = vsel %vm2629, %v2643, 0.0
    %v2645 = vsel %vm2630, %v2642, 0.0
    %v2646 = vsel %vm2629, %v2641, 0.0
    %v2647 = vsel %vm2630, %v2640, 0.0
    %v2648 = vstv %s2622
    %v2649 = vmul.f32 %v2648, %v2644
    %v2650 = vmul.f32 %v2648, %v2645
    %v2651 = vmul.f32 %v2648, %v2646
    %v2652 = vmul.f32 %v2648, %v2647
    %v2653 = vadd.f32 %v2618, %v2649
    %v2654 = vadd.f32 %v2619, %v2650
    %v2655 = vadd.f32 %v2620, %v2651
    %v2656 = vadd.f32 %v2621, %v2652
    %s2657 = sld [smem:[#allocation4 + $0x11]]
    %2658 = vrot.lane.b32.xlu0 %v2496, 5
    %v2659 = vpop.permute.xlu0 %2658
    %2660 = vrot.lane.b32.xlu0 %v2497, 5
    %v2661 = vpop.permute.xlu0 %2660
    %2662 = vrot.lane.b32.xlu0 %v2498, 5
    %v2663 = vpop.permute.xlu0 %2662
    %2664 = vrot.lane.b32.xlu0 %v2499, 5
    %v2665 = vpop.permute.xlu0 %2664
    %v2666 = vsel %vm2639, %v2663, %v2665
    %v2667 = vsel %vm2639, %v2661, %v2663
    %v2668 = vsel %vm2639, %v2659, %v2661
    %v2669 = vsel %vm2639, %v2665, %v2659
    %v2670 = vsel %vm2629, %v2669, 0.0
    %v2671 = vsel %vm2630, %v2668, 0.0
    %v2672 = vsel %vm2629, %v2667, 0.0
    %v2673 = vsel %vm2630, %v2666, 0.0
    %v2674 = vstv %s2657
    %v2675 = vmul.f32 %v2674, %v2670
    %v2676 = vmul.f32 %v2674, %v2671
    %v2677 = vmul.f32 %v2674, %v2672
    %v2678 = vmul.f32 %v2674, %v2673
    %v2679 = vadd.f32 %v2653, %v2675
    %v2680 = vadd.f32 %v2654, %v2676
    %v2681 = vadd.f32 %v2655, %v2677
    %v2682 = vadd.f32 %v2656, %v2678
    %s2683 = sld [smem:[#allocation4 + $0x3]]
    %v2684 = vadd.s32 %v63, 4294967292
    %v2685 = vadd.s32 %v64, 4294967292
    %vm2686 = vcmp.ge.s32.totalorder %v2684, 0
    %vm2687 = vcmp.ge.s32.totalorder %v2685, 0
    %vm2688 = vcmp.lt.s32.totalorder %v2684, 256
    %vm2689 = vcmp.lt.s32.totalorder %v2685, 256
    %vm2690 = vmand %vm2686, %vm2688
    %vm2691 = vmand %vm2687, %vm2689
    %2692 = vrot.lane.b32.xlu0 %v2425, 4
    %v2693 = vpop.permute.xlu0 %2692
    %2694 = vrot.lane.b32.xlu0 %v2434, 4
    %v2695 = vpop.permute.xlu0 %2694
    %2696 = vrot.lane.b32.xlu0 %v2443, 4
    %v2697 = vpop.permute.xlu0 %2696
    %2698 = vrot.lane.b32.xlu0 %v2452, 4
    %v2699 = vpop.permute.xlu0 %2698
    %vm2700 = vcmp.lt.s32.totalorder %v63, 4
    %v2701 = vsel %vm2700, %v2697, %v2699
    %v2702 = vsel %vm2700, %v2695, %v2697
    %v2703 = vsel %vm2700, %v2693, %v2695
    %v2704 = vsel %vm2700, %v2699, %v2693
    %v2705 = vsel %vm2690, %v2704, 0.0
    %v2706 = vsel %vm2691, %v2703, 0.0
    %v2707 = vsel %vm2690, %v2702, 0.0
    %v2708 = vsel %vm2691, %v2701, 0.0
    %v2709 = vstv %s2683
    %v2710 = vmul.f32 %v2709, %v2705
    %v2711 = vmul.f32 %v2709, %v2706
    %v2712 = vmul.f32 %v2709, %v2707
    %v2713 = vmul.f32 %v2709, %v2708
    %v2714 = vadd.f32 %v2679, %v2710
    %v2715 = vadd.f32 %v2680, %v2711
    %v2716 = vadd.f32 %v2681, %v2712
    %v2717 = vadd.f32 %v2682, %v2713
    %s2718 = sld [smem:[#allocation4 + $0x12]]
    %2719 = vrot.lane.b32.xlu0 %v2496, 4
    %v2720 = vpop.permute.xlu0 %2719
    %2721 = vrot.lane.b32.xlu0 %v2497, 4
    %v2722 = vpop.permute.xlu0 %2721
    %2723 = vrot.lane.b32.xlu0 %v2498, 4
    %v2724 = vpop.permute.xlu0 %2723
    %2725 = vrot.lane.b32.xlu0 %v2499, 4
    %v2726 = vpop.permute.xlu0 %2725
    %v2727 = vsel %vm2700, %v2724, %v2726
    %v2728 = vsel %vm2700, %v2722, %v2724
    %v2729 = vsel %vm2700, %v2720, %v2722
    %v2730 = vsel %vm2700, %v2726, %v2720
    %v2731 = vsel %vm2690, %v2730, 0.0
    %v2732 = vsel %vm2691, %v2729, 0.0
    %v2733 = vsel %vm2690, %v2728, 0.0
    %v2734 = vsel %vm2691, %v2727, 0.0
    %v2735 = vstv %s2718
    %v2736 = vmul.f32 %v2735, %v2731
    %v2737 = vmul.f32 %v2735, %v2732
    %v2738 = vmul.f32 %v2735, %v2733
    %v2739 = vmul.f32 %v2735, %v2734
    %v2740 = vadd.f32 %v2714, %v2736
    %v2741 = vadd.f32 %v2715, %v2737
    %v2742 = vadd.f32 %v2716, %v2738
    %v2743 = vadd.f32 %v2717, %v2739
    %s2744 = sld [smem:[#allocation4 + $0x4]]
    %2745 = vrot.lane.b32.xlu0 %v2425, 3
    %v2746 = vpop.permute.xlu0 %2745
    %2747 = vrot.lane.b32.xlu0 %v2434, 3
    %v2748 = vpop.permute.xlu0 %2747
    %2749 = vrot.lane.b32.xlu0 %v2443, 3
    %v2750 = vpop.permute.xlu0 %2749
    %2751 = vrot.lane.b32.xlu0 %v2452, 3
    %v2752 = vpop.permute.xlu0 %2751
    %v2753 = vsel %vm98, %v2750, %v2752
    %v2754 = vsel %vm98, %v2748, %v2750
    %v2755 = vsel %vm98, %v2746, %v2748
    %v2756 = vsel %vm98, %v2752, %v2746
    %v2757 = vsel %vm80, %v2756, 0.0
    %v2758 = vsel %vm81, %v2755, 0.0
    %v2759 = vsel %vm80, %v2754, 0.0
    %v2760 = vsel %vm81, %v2753, 0.0
    %v2761 = vstv %s2744
    %v2762 = vmul.f32 %v2761, %v2757
    %v2763 = vmul.f32 %v2761, %v2758
    %v2764 = vmul.f32 %v2761, %v2759
    %v2765 = vmul.f32 %v2761, %v2760
    %v2766 = vadd.f32 %v2740, %v2762
    %v2767 = vadd.f32 %v2741, %v2763
    %v2768 = vadd.f32 %v2742, %v2764
    %v2769 = vadd.f32 %v2743, %v2765
    %s2770 = sld [smem:[#allocation4 + $0x13]]
    %2771 = vrot.lane.b32.xlu0 %v2496, 3
    %v2772 = vpop.permute.xlu0 %2771
    %2773 = vrot.lane.b32.xlu0 %v2497, 3
    %v2774 = vpop.permute.xlu0 %2773
    %2775 = vrot.lane.b32.xlu0 %v2498, 3
    %v2776 = vpop.permute.xlu0 %2775
    %2777 = vrot.lane.b32.xlu0 %v2499, 3
    %v2778 = vpop.permute.xlu0 %2777
    %v2779 = vsel %vm98, %v2776, %v2778
    %v2780 = vsel %vm98, %v2774, %v2776
    %v2781 = vsel %vm98, %v2772, %v2774
    %v2782 = vsel %vm98, %v2778, %v2772
    %v2783 = vsel %vm80, %v2782, 0.0
    %v2784 = vsel %vm81, %v2781, 0.0
    %v2785 = vsel %vm80, %v2780, 0.0
    %v2786 = vsel %vm81, %v2779, 0.0
    %v2787 = vstv %s2770
    %v2788 = vmul.f32 %v2787, %v2783
    %v2789 = vmul.f32 %v2787, %v2784
    %v2790 = vmul.f32 %v2787, %v2785
    %v2791 = vmul.f32 %v2787, %v2786
    %v2792 = vadd.f32 %v2766, %v2788
    %v2793 = vadd.f32 %v2767, %v2789
    %v2794 = vadd.f32 %v2768, %v2790
    %v2795 = vadd.f32 %v2769, %v2791
    %s2796 = sld [smem:[#allocation4 + $0x5]]
    %2797 = vrot.lane.b32.xlu0 %v2425, 2
    %v2798 = vpop.permute.xlu0 %2797
    %2799 = vrot.lane.b32.xlu0 %v2434, 2
    %v2800 = vpop.permute.xlu0 %2799
    %2801 = vrot.lane.b32.xlu0 %v2443, 2
    %v2802 = vpop.permute.xlu0 %2801
    %2803 = vrot.lane.b32.xlu0 %v2452, 2
    %v2804 = vpop.permute.xlu0 %2803
    %v2805 = vsel %vm153, %v2802, %v2804
    %v2806 = vsel %vm153, %v2800, %v2802
    %v2807 = vsel %vm153, %v2798, %v2800
    %v2808 = vsel %vm153, %v2804, %v2798
    %v2809 = vsel %vm135, %v2808, 0.0
    %v2810 = vsel %vm136, %v2807, 0.0
    %v2811 = vsel %vm135, %v2806, 0.0
    %v2812 = vsel %vm136, %v2805, 0.0
    %v2813 = vstv %s2796
    %v2814 = vmul.f32 %v2813, %v2809
    %v2815 = vmul.f32 %v2813, %v2810
    %v2816 = vmul.f32 %v2813, %v2811
    %v2817 = vmul.f32 %v2813, %v2812
    %v2818 = vadd.f32 %v2792, %v2814
    %v2819 = vadd.f32 %v2793, %v2815
    %v2820 = vadd.f32 %v2794, %v2816
    %v2821 = vadd.f32 %v2795, %v2817
    %s2822 = sld [smem:[#allocation4 + $0x14]]
    %2823 = vrot.lane.b32.xlu0 %v2496, 2
    %v2824 = vpop.permute.xlu0 %2823
    %2825 = vrot.lane.b32.xlu0 %v2497, 2
    %v2826 = vpop.permute.xlu0 %2825
    %2827 = vrot.lane.b32.xlu0 %v2498, 2
    %v2828 = vpop.permute.xlu0 %2827
    %2829 = vrot.lane.b32.xlu0 %v2499, 2
    %v2830 = vpop.permute.xlu0 %2829
    %v2831 = vsel %vm153, %v2828, %v2830
    %v2832 = vsel %vm153, %v2826, %v2828
    %v2833 = vsel %vm153, %v2824, %v2826
    %v2834 = vsel %vm153, %v2830, %v2824
    %v2835 = vsel %vm135, %v2834, 0.0
    %v2836 = vsel %vm136, %v2833, 0.0
    %v2837 = vsel %vm135, %v2832, 0.0
    %v2838 = vsel %vm136, %v2831, 0.0
    %v2839 = vstv %s2822
    %v2840 = vmul.f32 %v2839, %v2835
    %v2841 = vmul.f32 %v2839, %v2836
    %v2842 = vmul.f32 %v2839, %v2837
    %v2843 = vmul.f32 %v2839, %v2838
    %v2844 = vadd.f32 %v2818, %v2840
    %v2845 = vadd.f32 %v2819, %v2841
    %v2846 = vadd.f32 %v2820, %v2842
    %v2847 = vadd.f32 %v2821, %v2843
    %s2848 = sld [smem:[#allocation4 + $0x6]]
    %2849 = vrot.lane.b32.xlu0 %v2425, 1
    %v2850 = vpop.permute.xlu0 %2849
    %2851 = vrot.lane.b32.xlu0 %v2434, 1
    %v2852 = vpop.permute.xlu0 %2851
    %2853 = vrot.lane.b32.xlu0 %v2443, 1
    %v2854 = vpop.permute.xlu0 %2853
    %2855 = vrot.lane.b32.xlu0 %v2452, 1
    %v2856 = vpop.permute.xlu0 %2855
    %v2857 = vsel %vm208, %v2854, %v2856
    %v2858 = vsel %vm208, %v2852, %v2854
    %v2859 = vsel %vm208, %v2850, %v2852
    %v2860 = vsel %vm208, %v2856, %v2850
    %v2861 = vsel %vm190, %v2860, 0.0
    %v2862 = vsel %vm191, %v2859, 0.0
    %v2863 = vsel %vm190, %v2858, 0.0
    %v2864 = vsel %vm191, %v2857, 0.0
    %v2865 = vstv %s2848
    %v2866 = vmul.f32 %v2865, %v2861
    %v2867 = vmul.f32 %v2865, %v2862
    %v2868 = vmul.f32 %v2865, %v2863
    %v2869 = vmul.f32 %v2865, %v2864
    %v2870 = vadd.f32 %v2844, %v2866
    %v2871 = vadd.f32 %v2845, %v2867
    %v2872 = vadd.f32 %v2846, %v2868
    %v2873 = vadd.f32 %v2847, %v2869
    %s2874 = sld [smem:[#allocation4 + $0x15]]
    %2875 = vrot.lane.b32.xlu0 %v2496, 1
    %v2876 = vpop.permute.xlu0 %2875
    %2877 = vrot.lane.b32.xlu0 %v2497, 1
    %v2878 = vpop.permute.xlu0 %2877
    %2879 = vrot.lane.b32.xlu0 %v2498, 1
    %v2880 = vpop.permute.xlu0 %2879
    %2881 = vrot.lane.b32.xlu0 %v2499, 1
    %v2882 = vpop.permute.xlu0 %2881
    %v2883 = vsel %vm208, %v2880, %v2882
    %v2884 = vsel %vm208, %v2878, %v2880
    %v2885 = vsel %vm208, %v2876, %v2878
    %v2886 = vsel %vm208, %v2882, %v2876
    %v2887 = vsel %vm190, %v2886, 0.0
    %v2888 = vsel %vm191, %v2885, 0.0
    %v2889 = vsel %vm190, %v2884, 0.0
    %v2890 = vsel %vm191, %v2883, 0.0
    %v2891 = vstv %s2874
    %v2892 = vmul.f32 %v2891, %v2887
    %v2893 = vmul.f32 %v2891, %v2888
    %v2894 = vmul.f32 %v2891, %v2889
    %v2895 = vmul.f32 %v2891, %v2890
    %v2896 = vadd.f32 %v2870, %v2892
    %v2897 = vadd.f32 %v2871, %v2893
    %v2898 = vadd.f32 %v2872, %v2894
    %v2899 = vadd.f32 %v2873, %v2895
    %s2900 = sld [smem:[#allocation4 + $0x7]]
    %v2901 = vstv %s2900
    %v2902 = vmul.f32 %v2901, %v2425
    %v2903 = vmul.f32 %v2901, %v2434
    %v2904 = vmul.f32 %v2901, %v2443
    %v2905 = vmul.f32 %v2901, %v2452
    %v2906 = vadd.f32 %v2896, %v2902
    %v2907 = vadd.f32 %v2897, %v2903
    %v2908 = vadd.f32 %v2898, %v2904
    %v2909 = vadd.f32 %v2899, %v2905
    %s2910 = sld [smem:[#allocation4 + $0x16]]
    %v2911 = vstv %s2910
    %v2912 = vmul.f32 %v2911, %v2496
    %v2913 = vmul.f32 %v2911, %v2497
    %v2914 = vmul.f32 %v2911, %v2498
    %v2915 = vmul.f32 %v2911, %v2499
    %v2916 = vadd.f32 %v2906, %v2912
    %v2917 = vadd.f32 %v2907, %v2913
    %v2918 = vadd.f32 %v2908, %v2914
    %v2919 = vadd.f32 %v2909, %v2915
    %s2920 = sld [smem:[#allocation4 + $0x8]]
    %2921 = vrot.lane.b32.xlu0 %v2425, 127
    %v2922 = vpop.permute.xlu0 %2921
    %2923 = vrot.lane.b32.xlu0 %v2434, 127
    %v2924 = vpop.permute.xlu0 %2923
    %2925 = vrot.lane.b32.xlu0 %v2443, 127
    %v2926 = vpop.permute.xlu0 %2925
    %2927 = vrot.lane.b32.xlu0 %v2452, 127
    %v2928 = vpop.permute.xlu0 %2927
    %v2929 = vsel %vm271, %v2926, %v2928
    %v2930 = vsel %vm271, %v2924, %v2926
    %v2931 = vsel %vm271, %v2922, %v2924
    %v2932 = vsel %vm271, %v2928, %v2922
    %v2933 = vsel %vm253, %v2931, 0.0
    %v2934 = vsel %vm254, %v2930, 0.0
    %v2935 = vsel %vm253, %v2929, 0.0
    %v2936 = vsel %vm254, %v2932, 0.0
    %v2937 = vstv %s2920
    %v2938 = vmul.f32 %v2937, %v2933
    %v2939 = vmul.f32 %v2937, %v2934
    %v2940 = vmul.f32 %v2937, %v2935
    %v2941 = vmul.f32 %v2937, %v2936
    %v2942 = vadd.f32 %v2916, %v2938
    %v2943 = vadd.f32 %v2917, %v2939
    %v2944 = vadd.f32 %v2918, %v2940
    %v2945 = vadd.f32 %v2919, %v2941
    %s2946 = sld [smem:[#allocation4 + $0x17]]
    %2947 = vrot.lane.b32.xlu0 %v2496, 127
    %v2948 = vpop.permute.xlu0 %2947
    %2949 = vrot.lane.b32.xlu0 %v2497, 127
    %v2950 = vpop.permute.xlu0 %2949
    %2951 = vrot.lane.b32.xlu0 %v2498, 127
    %v2952 = vpop.permute.xlu0 %2951
    %2953 = vrot.lane.b32.xlu0 %v2499, 127
    %v2954 = vpop.permute.xlu0 %2953
    %v2955 = vsel %vm271, %v2952, %v2954
    %v2956 = vsel %vm271, %v2950, %v2952
    %v2957 = vsel %vm271, %v2948, %v2950
    %v2958 = vsel %vm271, %v2954, %v2948
    %v2959 = vsel %vm253, %v2957, 0.0
    %v2960 = vsel %vm254, %v2956, 0.0
    %v2961 = vsel %vm253, %v2955, 0.0
    %v2962 = vsel %vm254, %v2958, 0.0
    %v2963 = vstv %s2946
    %v2964 = vmul.f32 %v2963, %v2959
    %v2965 = vmul.f32 %v2963, %v2960
    %v2966 = vmul.f32 %v2963, %v2961
    %v2967 = vmul.f32 %v2963, %v2962
    %v2968 = vadd.f32 %v2942, %v2964
    %v2969 = vadd.f32 %v2943, %v2965
    %v2970 = vadd.f32 %v2944, %v2966
    %v2971 = vadd.f32 %v2945, %v2967
    %s2972 = sld [smem:[#allocation4 + $0x9]]
    %2973 = vrot.lane.b32.xlu0 %v2425, 126
    %v2974 = vpop.permute.xlu0 %2973
    %2975 = vrot.lane.b32.xlu0 %v2434, 126
    %v2976 = vpop.permute.xlu0 %2975
    %2977 = vrot.lane.b32.xlu0 %v2443, 126
    %v2978 = vpop.permute.xlu0 %2977
    %2979 = vrot.lane.b32.xlu0 %v2452, 126
    %v2980 = vpop.permute.xlu0 %2979
    %v2981 = vsel %vm326, %v2978, %v2980
    %v2982 = vsel %vm326, %v2976, %v2978
    %v2983 = vsel %vm326, %v2974, %v2976
    %v2984 = vsel %vm326, %v2980, %v2974
    %v2985 = vsel %vm308, %v2983, 0.0
    %v2986 = vsel %vm309, %v2982, 0.0
    %v2987 = vsel %vm308, %v2981, 0.0
    %v2988 = vsel %vm309, %v2984, 0.0
    %v2989 = vstv %s2972
    %v2990 = vmul.f32 %v2989, %v2985
    %v2991 = vmul.f32 %v2989, %v2986
    %v2992 = vmul.f32 %v2989, %v2987
    %v2993 = vmul.f32 %v2989, %v2988
    %v2994 = vadd.f32 %v2968, %v2990
    %v2995 = vadd.f32 %v2969, %v2991
    %v2996 = vadd.f32 %v2970, %v2992
    %v2997 = vadd.f32 %v2971, %v2993
    %s2998 = sld [smem:[#allocation4 + $0x18]]
    %2999 = vrot.lane.b32.xlu0 %v2496, 126
    %v3000 = vpop.permute.xlu0 %2999
    %3001 = vrot.lane.b32.xlu0 %v2497, 126
    %v3002 = vpop.permute.xlu0 %3001
    %3003 = vrot.lane.b32.xlu0 %v2498, 126
    %v3004 = vpop.permute.xlu0 %3003
    %3005 = vrot.lane.b32.xlu0 %v2499, 126
    %v3006 = vpop.permute.xlu0 %3005
    %v3007 = vsel %vm326, %v3004, %v3006
    %v3008 = vsel %vm326, %v3002, %v3004
    %v3009 = vsel %vm326, %v3000, %v3002
    %v3010 = vsel %vm326, %v3006, %v3000
    %v3011 = vsel %vm308, %v3009, 0.0
    %v3012 = vsel %vm309, %v3008, 0.0
    %v3013 = vsel %vm308, %v3007, 0.0
    %v3014 = vsel %vm309, %v3010, 0.0
    %v3015 = vstv %s2998
    %v3016 = vmul.f32 %v3015, %v3011
    %v3017 = vmul.f32 %v3015, %v3012
    %v3018 = vmul.f32 %v3015, %v3013
    %v3019 = vmul.f32 %v3015, %v3014
    %v3020 = vadd.f32 %v2994, %v3016
    %v3021 = vadd.f32 %v2995, %v3017
    %v3022 = vadd.f32 %v2996, %v3018
    %v3023 = vadd.f32 %v2997, %v3019
    %s3024 = sld [smem:[#allocation4 + $0xa]]
    %3025 = vrot.lane.b32.xlu0 %v2425, 125
    %v3026 = vpop.permute.xlu0 %3025
    %3027 = vrot.lane.b32.xlu0 %v2434, 125
    %v3028 = vpop.permute.xlu0 %3027
    %3029 = vrot.lane.b32.xlu0 %v2443, 125
    %v3030 = vpop.permute.xlu0 %3029
    %3031 = vrot.lane.b32.xlu0 %v2452, 125
    %v3032 = vpop.permute.xlu0 %3031
    %v3033 = vsel %vm381, %v3030, %v3032
    %v3034 = vsel %vm381, %v3028, %v3030
    %v3035 = vsel %vm381, %v3026, %v3028
    %v3036 = vsel %vm381, %v3032, %v3026
    %v3037 = vsel %vm363, %v3035, 0.0
    %v3038 = vsel %vm364, %v3034, 0.0
    %v3039 = vsel %vm363, %v3033, 0.0
    %v3040 = vsel %vm364, %v3036, 0.0
    %v3041 = vstv %s3024
    %v3042 = vmul.f32 %v3041, %v3037
    %v3043 = vmul.f32 %v3041, %v3038
    %v3044 = vmul.f32 %v3041, %v3039
    %v3045 = vmul.f32 %v3041, %v3040
    %v3046 = vadd.f32 %v3020, %v3042
    %v3047 = vadd.f32 %v3021, %v3043
    %v3048 = vadd.f32 %v3022, %v3044
    %v3049 = vadd.f32 %v3023, %v3045
    %s3050 = sld [smem:[#allocation4 + $0x19]]
    %3051 = vrot.lane.b32.xlu0 %v2496, 125
    %v3052 = vpop.permute.xlu0 %3051
    %3053 = vrot.lane.b32.xlu0 %v2497, 125
    %v3054 = vpop.permute.xlu0 %3053
    %3055 = vrot.lane.b32.xlu0 %v2498, 125
    %v3056 = vpop.permute.xlu0 %3055
    %3057 = vrot.lane.b32.xlu0 %v2499, 125
    %v3058 = vpop.permute.xlu0 %3057
    %v3059 = vsel %vm381, %v3056, %v3058
    %v3060 = vsel %vm381, %v3054, %v3056
    %v3061 = vsel %vm381, %v3052, %v3054
    %v3062 = vsel %vm381, %v3058, %v3052
    %v3063 = vsel %vm363, %v3061, 0.0
    %v3064 = vsel %vm364, %v3060, 0.0
    %v3065 = vsel %vm363, %v3059, 0.0
    %v3066 = vsel %vm364, %v3062, 0.0
    %v3067 = vstv %s3050
    %v3068 = vmul.f32 %v3067, %v3063
    %v3069 = vmul.f32 %v3067, %v3064
    %v3070 = vmul.f32 %v3067, %v3065
    %v3071 = vmul.f32 %v3067, %v3066
    %v3072 = vadd.f32 %v3046, %v3068
    %v3073 = vadd.f32 %v3047, %v3069
    %v3074 = vadd.f32 %v3048, %v3070
    %v3075 = vadd.f32 %v3049, %v3071
    %s3076 = sld [smem:[#allocation4 + $0xb]]
    %v3077 = vadd.s32 %v63, 4
    %v3078 = vadd.s32 %v64, 4
    %vm3079 = vcmp.ge.s32.totalorder %v3077, 0
    %vm3080 = vcmp.ge.s32.totalorder %v3078, 0
    %vm3081 = vcmp.lt.s32.totalorder %v3077, 256
    %vm3082 = vcmp.lt.s32.totalorder %v3078, 256
    %vm3083 = vmand %vm3079, %vm3081
    %vm3084 = vmand %vm3080, %vm3082
    %3085 = vrot.lane.b32.xlu0 %v2425, 124
    %v3086 = vpop.permute.xlu0 %3085
    %3087 = vrot.lane.b32.xlu0 %v2434, 124
    %v3088 = vpop.permute.xlu0 %3087
    %3089 = vrot.lane.b32.xlu0 %v2443, 124
    %v3090 = vpop.permute.xlu0 %3089
    %3091 = vrot.lane.b32.xlu0 %v2452, 124
    %v3092 = vpop.permute.xlu0 %3091
    %vm3093 = vcmp.lt.s32.totalorder %v63, 124
    %v3094 = vsel %vm3093, %v3090, %v3092
    %v3095 = vsel %vm3093, %v3088, %v3090
    %v3096 = vsel %vm3093, %v3086, %v3088
    %v3097 = vsel %vm3093, %v3092, %v3086
    %v3098 = vsel %vm3083, %v3096, 0.0
    %v3099 = vsel %vm3084, %v3095, 0.0
    %v3100 = vsel %vm3083, %v3094, 0.0
    %v3101 = vsel %vm3084, %v3097, 0.0
    %v3102 = vstv %s3076
    %v3103 = vmul.f32 %v3102, %v3098
    %v3104 = vmul.f32 %v3102, %v3099
    %v3105 = vmul.f32 %v3102, %v3100
    %v3106 = vmul.f32 %v3102, %v3101
    %v3107 = vadd.f32 %v3072, %v3103
    %v3108 = vadd.f32 %v3073, %v3104
    %v3109 = vadd.f32 %v3074, %v3105
    %v3110 = vadd.f32 %v3075, %v3106
    %s3111 = sld [smem:[#allocation4 + $0x1a]]
    %3112 = vrot.lane.b32.xlu0 %v2496, 124
    %v3113 = vpop.permute.xlu0 %3112
    %3114 = vrot.lane.b32.xlu0 %v2497, 124
    %v3115 = vpop.permute.xlu0 %3114
    %3116 = vrot.lane.b32.xlu0 %v2498, 124
    %v3117 = vpop.permute.xlu0 %3116
    %3118 = vrot.lane.b32.xlu0 %v2499, 124
    %v3119 = vpop.permute.xlu0 %3118
    %v3120 = vsel %vm3093, %v3117, %v3119
    %v3121 = vsel %vm3093, %v3115, %v3117
    %v3122 = vsel %vm3093, %v3113, %v3115
    %v3123 = vsel %vm3093, %v3119, %v3113
    %v3124 = vsel %vm3083, %v3122, 0.0
    %v3125 = vsel %vm3084, %v3121, 0.0
    %v3126 = vsel %vm3083, %v3120, 0.0
    %v3127 = vsel %vm3084, %v3123, 0.0
    %v3128 = vstv %s3111
    %v3129 = vmul.f32 %v3128, %v3124
    %v3130 = vmul.f32 %v3128, %v3125
    %v3131 = vmul.f32 %v3128, %v3126
    %v3132 = vmul.f32 %v3128, %v3127
    %v3133 = vadd.f32 %v3107, %v3129
    %v3134 = vadd.f32 %v3108, %v3130
    %v3135 = vadd.f32 %v3109, %v3131
    %v3136 = vadd.f32 %v3110, %v3132
    %s3137 = sld [smem:[#allocation4 + $0xc]]
    %v3138 = vadd.s32 %v63, 5
    %v3139 = vadd.s32 %v64, 5
    %vm3140 = vcmp.ge.s32.totalorder %v3138, 0
    %vm3141 = vcmp.ge.s32.totalorder %v3139, 0
    %vm3142 = vcmp.lt.s32.totalorder %v3138, 256
    %vm3143 = vcmp.lt.s32.totalorder %v3139, 256
    %vm3144 = vmand %vm3140, %vm3142
    %vm3145 = vmand %vm3141, %vm3143
    %3146 = vrot.lane.b32.xlu0 %v2425, 123
    %v3147 = vpop.permute.xlu0 %3146
    %3148 = vrot.lane.b32.xlu0 %v2434, 123
    %v3149 = vpop.permute.xlu0 %3148
    %3150 = vrot.lane.b32.xlu0 %v2443, 123
    %v3151 = vpop.permute.xlu0 %3150
    %3152 = vrot.lane.b32.xlu0 %v2452, 123
    %v3153 = vpop.permute.xlu0 %3152
    %vm3154 = vcmp.lt.s32.totalorder %v63, 123
    %v3155 = vsel %vm3154, %v3151, %v3153
    %v3156 = vsel %vm3154, %v3149, %v3151
    %v3157 = vsel %vm3154, %v3147, %v3149
    %v3158 = vsel %vm3154, %v3153, %v3147
    %v3159 = vsel %vm3144, %v3157, 0.0
    %v3160 = vsel %vm3145, %v3156, 0.0
    %v3161 = vsel %vm3144, %v3155, 0.0
    %v3162 = vsel %vm3145, %v3158, 0.0
    %v3163 = vstv %s3137
    %v3164 = vmul.f32 %v3163, %v3159
    %v3165 = vmul.f32 %v3163, %v3160
    %v3166 = vmul.f32 %v3163, %v3161
    %v3167 = vmul.f32 %v3163, %v3162
    %v3168 = vadd.f32 %v3133, %v3164
    %v3169 = vadd.f32 %v3134, %v3165
    %v3170 = vadd.f32 %v3135, %v3166
    %v3171 = vadd.f32 %v3136, %v3167
    %s3172 = sld [smem:[#allocation4 + $0x1b]]
    %3173 = vrot.lane.b32.xlu0 %v2496, 123
    %v3174 = vpop.permute.xlu0 %3173
    %3175 = vrot.lane.b32.xlu0 %v2497, 123
    %v3176 = vpop.permute.xlu0 %3175
    %3177 = vrot.lane.b32.xlu0 %v2498, 123
    %v3178 = vpop.permute.xlu0 %3177
    %3179 = vrot.lane.b32.xlu0 %v2499, 123
    %v3180 = vpop.permute.xlu0 %3179
    %v3181 = vsel %vm3154, %v3178, %v3180
    %v3182 = vsel %vm3154, %v3176, %v3178
    %v3183 = vsel %vm3154, %v3174, %v3176
    %v3184 = vsel %vm3154, %v3180, %v3174
    %v3185 = vsel %vm3144, %v3183, 0.0
    %v3186 = vsel %vm3145, %v3182, 0.0
    %v3187 = vsel %vm3144, %v3181, 0.0
    %v3188 = vsel %vm3145, %v3184, 0.0
    %v3189 = vstv %s3172
    %v3190 = vmul.f32 %v3189, %v3185
    %v3191 = vmul.f32 %v3189, %v3186
    %v3192 = vmul.f32 %v3189, %v3187
    %v3193 = vmul.f32 %v3189, %v3188
    %v3194 = vadd.f32 %v3168, %v3190
    %v3195 = vadd.f32 %v3169, %v3191
    %v3196 = vadd.f32 %v3170, %v3192
    %v3197 = vadd.f32 %v3171, %v3193
    %s3198 = sld [smem:[#allocation4 + $0xd]]
    %v3199 = vadd.s32 %v63, 6
    %v3200 = vadd.s32 %v64, 6
    %vm3201 = vcmp.ge.s32.totalorder %v3199, 0
    %vm3202 = vcmp.ge.s32.totalorder %v3200, 0
    %vm3203 = vcmp.lt.s32.totalorder %v3199, 256
    %vm3204 = vcmp.lt.s32.totalorder %v3200, 256
    %vm3205 = vmand %vm3201, %vm3203
    %vm3206 = vmand %vm3202, %vm3204
    %3207 = vrot.lane.b32.xlu0 %v2425, 122
    %v3208 = vpop.permute.xlu0 %3207
    %3209 = vrot.lane.b32.xlu0 %v2434, 122
    %v3210 = vpop.permute.xlu0 %3209
    %3211 = vrot.lane.b32.xlu0 %v2443, 122
    %v3212 = vpop.permute.xlu0 %3211
    %3213 = vrot.lane.b32.xlu0 %v2452, 122
    %v3214 = vpop.permute.xlu0 %3213
    %vm3215 = vcmp.lt.s32.totalorder %v63, 122
    %v3216 = vsel %vm3215, %v3212, %v3214
    %v3217 = vsel %vm3215, %v3210, %v3212
    %v3218 = vsel %vm3215, %v3208, %v3210
    %v3219 = vsel %vm3215, %v3214, %v3208
    %v3220 = vsel %vm3205, %v3218, 0.0
    %v3221 = vsel %vm3206, %v3217, 0.0
    %v3222 = vsel %vm3205, %v3216, 0.0
    %v3223 = vsel %vm3206, %v3219, 0.0
    %v3224 = vstv %s3198
    %v3225 = vmul.f32 %v3224, %v3220
    %v3226 = vmul.f32 %v3224, %v3221
    %v3227 = vmul.f32 %v3224, %v3222
    %v3228 = vmul.f32 %v3224, %v3223
    %v3229 = vadd.f32 %v3194, %v3225
    %v3230 = vadd.f32 %v3195, %v3226
    %v3231 = vadd.f32 %v3196, %v3227
    %v3232 = vadd.f32 %v3197, %v3228
    %s3233 = sld [smem:[#allocation4 + $0x1c]]
    %3234 = vrot.lane.b32.xlu0 %v2496, 122
    %v3235 = vpop.permute.xlu0 %3234
    %3236 = vrot.lane.b32.xlu0 %v2497, 122
    %v3237 = vpop.permute.xlu0 %3236
    %3238 = vrot.lane.b32.xlu0 %v2498, 122
    %v3239 = vpop.permute.xlu0 %3238
    %3240 = vrot.lane.b32.xlu0 %v2499, 122
    %v3241 = vpop.permute.xlu0 %3240
    %v3242 = vsel %vm3215, %v3239, %v3241
    %v3243 = vsel %vm3215, %v3237, %v3239
    %v3244 = vsel %vm3215, %v3235, %v3237
    %v3245 = vsel %vm3215, %v3241, %v3235
    %v3246 = vsel %vm3205, %v3244, 0.0
    %v3247 = vsel %vm3206, %v3243, 0.0
    %v3248 = vsel %vm3205, %v3242, 0.0
    %v3249 = vsel %vm3206, %v3245, 0.0
    %v3250 = vstv %s3233
    %v3251 = vmul.f32 %v3250, %v3246
    %v3252 = vmul.f32 %v3250, %v3247
    %v3253 = vmul.f32 %v3250, %v3248
    %v3254 = vmul.f32 %v3250, %v3249
    %v3255 = vadd.f32 %v3229, %v3251
    %v3256 = vadd.f32 %v3230, %v3252
    %v3257 = vadd.f32 %v3231, %v3253
    %v3258 = vadd.f32 %v3232, %v3254
    %s3259 = sld [smem:[#allocation4 + $0xe]]
    %v3260 = vadd.s32 %v63, 7
    %v3261 = vadd.s32 %v64, 7
    %vm3262 = vcmp.ge.s32.totalorder %v3260, 0
    %vm3263 = vcmp.ge.s32.totalorder %v3261, 0
    %vm3264 = vcmp.lt.s32.totalorder %v3260, 256
    %vm3265 = vcmp.lt.s32.totalorder %v3261, 256
    %vm3266 = vmand %vm3262, %vm3264
    %vm3267 = vmand %vm3263, %vm3265
    %3268 = vrot.lane.b32.xlu0 %v2425, 121
    %v3269 = vpop.permute.xlu0 %3268
    %3270 = vrot.lane.b32.xlu0 %v2434, 121
    %v3271 = vpop.permute.xlu0 %3270
    %3272 = vrot.lane.b32.xlu0 %v2443, 121
    %v3273 = vpop.permute.xlu0 %3272
    %3274 = vrot.lane.b32.xlu0 %v2452, 121
    %v3275 = vpop.permute.xlu0 %3274
    %vm3276 = vcmp.lt.s32.totalorder %v63, 121
    %v3277 = vsel %vm3276, %v3273, %v3275
    %v3278 = vsel %vm3276, %v3271, %v3273
    %v3279 = vsel %vm3276, %v3269, %v3271
    %v3280 = vsel %vm3276, %v3275, %v3269
    %v3281 = vsel %vm3266, %v3279, 0.0
    %v3282 = vsel %vm3267, %v3278, 0.0
    %v3283 = vsel %vm3266, %v3277, 0.0
    %v3284 = vsel %vm3267, %v3280, 0.0
    %v3285 = vstv %s3259
    %v3286 = vmul.f32 %v3285, %v3281
    %v3287 = vmul.f32 %v3285, %v3282
    %v3288 = vmul.f32 %v3285, %v3283
    %v3289 = vmul.f32 %v3285, %v3284
    %v3290 = vadd.f32 %v3255, %v3286
    %v3291 = vadd.f32 %v3256, %v3287
    %v3292 = vadd.f32 %v3257, %v3288
    %v3293 = vadd.f32 %v3258, %v3289
    %s3294 = sld [smem:[#allocation4 + $0x1d]]
    %3295 = vrot.lane.b32.xlu0 %v2496, 121
    %v3296 = vpop.permute.xlu0 %3295
    %3297 = vrot.lane.b32.xlu0 %v2497, 121
    %v3298 = vpop.permute.xlu0 %3297
    %3299 = vrot.lane.b32.xlu0 %v2498, 121
    %v3300 = vpop.permute.xlu0 %3299
    %3301 = vrot.lane.b32.xlu0 %v2499, 121
    %v3302 = vpop.permute.xlu0 %3301
    %v3303 = vsel %vm3276, %v3300, %v3302
    %v3304 = vsel %vm3276, %v3298, %v3300
    %v3305 = vsel %vm3276, %v3296, %v3298
    %v3306 = vsel %vm3276, %v3302, %v3296
    %v3307 = vsel %vm3266, %v3305, 0.0
    %v3308 = vsel %vm3267, %v3304, 0.0
    %v3309 = vsel %vm3266, %v3303, 0.0
    %v3310 = vsel %vm3267, %v3306, 0.0
    %v3311 = vstv %s3294
    %v3312 = vmul.f32 %v3311, %v3307
    %v3313 = vmul.f32 %v3311, %v3308
    %v3314 = vmul.f32 %v3311, %v3309
    %v3315 = vmul.f32 %v3311, %v3310
    %v3316 = vadd.f32 %v3290, %v3312
    %v3317 = vadd.f32 %v3291, %v3313
    %v3318 = vadd.f32 %v3292, %v3314
    %v3319 = vadd.f32 %v3293, %v3315
    %s3320 = sld [smem:[#allocation7 + $0x2]]
    %v3321 = vstv %s3320
    %v3322 = vadd.f32 %v3316, %v3321
    %v3323 = vadd.f32 %v3317, %v3321
    %v3324 = vadd.f32 %v3318, %v3321
    %v3325 = vadd.f32 %v3319, %v3321
    %v3326 = vsub.f32 0.0, %v3322
    %v3327 = vsub.f32 0.0, %v3323
    %v3328 = vsub.f32 0.0, %v3324
    %v3329 = vsub.f32 0.0, %v3325
    %v3330 = vmul.f32 %v3326, 1.442695
    %v3331 = vpow.pop %v3330
    %v3332 = vmul.f32 %v3327, 1.442695
    %v3333 = vpow.pop %v3332
    %v3334 = vmul.f32 %v3328, 1.442695
    %v3335 = vpow.pop %v3334
    %v3336 = vmul.f32 %v3329, 1.442695
    %v3337 = vpow.pop %v3336
    %v3338 = vadd.f32 %v3331, 1.0
    %v3339 = vadd.f32 %v3333, 1.0
    %v3340 = vadd.f32 %v3335, 1.0
    %v3341 = vadd.f32 %v3337, 1.0
    %v3342 = vrcp.pop %v3338
    %v3343 = vmul.f32 %v3338, %v3342
    %v3344 = vsub.f32 1.0, %v3343
    %v3345 = vmul.f32 %v3342, %v3344
    %v3346 = vadd.f32 %v3342, %v3345
    %vm3347 = vweird.f32 %v3338
    %vm3348 = vweird.f32 %v3342
    %vm3349 = vmor %vm3347, %vm3348
    %v3350 = vsel %vm3349, %v3342, %v3346
    %v3351 = vand.u32 2147483647, %v3338
    %vm3352 = vcmp.eq.f32.partialorder %v3351, 8.507059e+37
    %v3353 = vand.u32 %v3338, 2147483648
    %v3354 = vor.u32 1.1754944e-38, %v3353
    %v3355 = vsel %vm3352, %v3354, %v3350
    %v3356 = vmul.f32 1.0, %v3355
    %v3357 = vrcp.pop %v3339
    %v3358 = vmul.f32 %v3339, %v3357
    %v3359 = vsub.f32 1.0, %v3358
    %v3360 = vmul.f32 %v3357, %v3359
    %v3361 = vadd.f32 %v3357, %v3360
    %vm3362 = vweird.f32 %v3339
    %vm3363 = vweird.f32 %v3357
    %vm3364 = vmor %vm3362, %vm3363
    %v3365 = vsel %vm3364, %v3357, %v3361
    %v3366 = vand.u32 2147483647, %v3339
    %vm3367 = vcmp.eq.f32.partialorder %v3366, 8.507059e+37
    %v3368 = vand.u32 %v3339, 2147483648
    %v3369 = vor.u32 1.1754944e-38, %v3368
    %v3370 = vsel %vm3367, %v3369, %v3365
    %v3371 = vmul.f32 1.0, %v3370
    %v3372 = vrcp.pop %v3340
    %v3373 = vmul.f32 %v3340, %v3372
    %v3374 = vsub.f32 1.0, %v3373
    %v3375 = vmul.f32 %v3372, %v3374
    %v3376 = vadd.f32 %v3372, %v3375
    %vm3377 = vweird.f32 %v3340
    %vm3378 = vweird.f32 %v3372
    %vm3379 = vmor %vm3377, %vm3378
    %v3380 = vsel %vm3379, %v3372, %v3376
    %v3381 = vand.u32 2147483647, %v3340
    %vm3382 = vcmp.eq.f32.partialorder %v3381, 8.507059e+37
    %v3383 = vand.u32 %v3340, 2147483648
    %v3384 = vor.u32 1.1754944e-38, %v3383
    %v3385 = vsel %vm3382, %v3384, %v3380
    %v3386 = vmul.f32 1.0, %v3385
    %v3387 = vrcp.pop %v3341
    %v3388 = vmul.f32 %v3341, %v3387
    %v3389 = vsub.f32 1.0, %v3388
    %v3390 = vmul.f32 %v3387, %v3389
    %v3391 = vadd.f32 %v3387, %v3390
    %vm3392 = vweird.f32 %v3341
    %vm3393 = vweird.f32 %v3387
    %vm3394 = vmor %vm3392, %vm3393
    %v3395 = vsel %vm3394, %v3387, %v3391
    %v3396 = vand.u32 2147483647, %v3341
    %vm3397 = vcmp.eq.f32.partialorder %v3396, 8.507059e+37
    %v3398 = vand.u32 %v3341, 2147483648
    %v3399 = vor.u32 1.1754944e-38, %v3398
    %v3400 = vsel %vm3397, %v3399, %v3395
    %v3401 = vmul.f32 1.0, %v3400
    %v3402 = vmul.f32 %v3322, %v3356
    %v3403 = vmul.f32 %v3323, %v3371
    %v3404 = vmul.f32 %v3324, %v3386
    %v3405 = vmul.f32 %v3325, %v3401
    %v3406 = vsub.f32 0.0, %v3402
    %v3407 = vsub.f32 0.0, %v3403
    %v3408 = vsub.f32 0.0, %v3404
    %v3409 = vsub.f32 0.0, %v3405
    %v3410 = vmul.f32 %v3406, 1.442695
    %v3411 = vpow.pop %v3410
    %v3412 = vmul.f32 %v3407, 1.442695
    %v3413 = vpow.pop %v3412
    %v3414 = vmul.f32 %v3408, 1.442695
    %v3415 = vpow.pop %v3414
    %v3416 = vmul.f32 %v3409, 1.442695
    %v3417 = vpow.pop %v3416
    %v3418 = vadd.f32 %v3411, 1.0
    %v3419 = vadd.f32 %v3413, 1.0
    %v3420 = vadd.f32 %v3415, 1.0
    %v3421 = vadd.f32 %v3417, 1.0
    %v3422 = vrcp.pop %v3418
    %v3423 = vmul.f32 %v3418, %v3422
    %v3424 = vsub.f32 1.0, %v3423
    %v3425 = vmul.f32 %v3422, %v3424
    %v3426 = vadd.f32 %v3422, %v3425
    %vm3427 = vweird.f32 %v3418
    %vm3428 = vweird.f32 %v3422
    %vm3429 = vmor %vm3427, %vm3428
    %v3430 = vsel %vm3429, %v3422, %v3426
    %v3431 = vand.u32 2147483647, %v3418
    %vm3432 = vcmp.eq.f32.partialorder %v3431, 8.507059e+37
    %v3433 = vand.u32 %v3418, 2147483648
    %v3434 = vor.u32 1.1754944e-38, %v3433
    %v3435 = vsel %vm3432, %v3434, %v3430
    %v3436 = vmul.f32 1.0, %v3435
    %v3437 = vrcp.pop %v3419
    %v3438 = vmul.f32 %v3419, %v3437
    %v3439 = vsub.f32 1.0, %v3438
    %v3440 = vmul.f32 %v3437, %v3439
    %v3441 = vadd.f32 %v3437, %v3440
    %vm3442 = vweird.f32 %v3419
    %vm3443 = vweird.f32 %v3437
    %vm3444 = vmor %vm3442, %vm3443
    %v3445 = vsel %vm3444, %v3437, %v3441
    %v3446 = vand.u32 2147483647, %v3419
    %vm3447 = vcmp.eq.f32.partialorder %v3446, 8.507059e+37
    %v3448 = vand.u32 %v3419, 2147483648
    %v3449 = vor.u32 1.1754944e-38, %v3448
    %v3450 = vsel %vm3447, %v3449, %v3445
    %v3451 = vmul.f32 1.0, %v3450
    %v3452 = vrcp.pop %v3420
    %v3453 = vmul.f32 %v3420, %v3452
    %v3454 = vsub.f32 1.0, %v3453
    %v3455 = vmul.f32 %v3452, %v3454
    %v3456 = vadd.f32 %v3452, %v3455
    %vm3457 = vweird.f32 %v3420
    %vm3458 = vweird.f32 %v3452
    %vm3459 = vmor %vm3457, %vm3458
    %v3460 = vsel %vm3459, %v3452, %v3456
    %v3461 = vand.u32 2147483647, %v3420
    %vm3462 = vcmp.eq.f32.partialorder %v3461, 8.507059e+37
    %v3463 = vand.u32 %v3420, 2147483648
    %v3464 = vor.u32 1.1754944e-38, %v3463
    %v3465 = vsel %vm3462, %v3464, %v3460
    %v3466 = vmul.f32 1.0, %v3465
    %v3467 = vrcp.pop %v3421
    %v3468 = vmul.f32 %v3421, %v3467
    %v3469 = vsub.f32 1.0, %v3468
    %v3470 = vmul.f32 %v3467, %v3469
    %v3471 = vadd.f32 %v3467, %v3470
    %vm3472 = vweird.f32 %v3421
    %vm3473 = vweird.f32 %v3467
    %vm3474 = vmor %vm3472, %vm3473
    %v3475 = vsel %vm3474, %v3467, %v3471
    %v3476 = vand.u32 2147483647, %v3421
    %vm3477 = vcmp.eq.f32.partialorder %v3476, 8.507059e+37
    %v3478 = vand.u32 %v3421, 2147483648
    %v3479 = vor.u32 1.1754944e-38, %v3478
    %v3480 = vsel %vm3477, %v3479, %v3475
    %v3481 = vmul.f32 1.0, %v3480
    %v3482 = vperm.slane %v3436, 0
    %v3483 = vperm.slane %v3451, 0
    %v3484 = vperm.slane %v3466, 0
    %v3485 = vperm.slane %v3481, 0
    %v3486 = vmul.f32 %v2401, %v3482
    %v3487 = vmul.f32 %v2402, %v3483
    %v3488 = vmul.f32 %v2403, %v3484
    %v3489 = vmul.f32 %v2404, %v3485
    %v3490 = vmul.f32 %v2405, %v3482
    %v3491 = vmul.f32 %v2406, %v3483
    %v3492 = vmul.f32 %v2407, %v3484
    %v3493 = vmul.f32 %v2408, %v3485
    %v3494 = vmul.f32 %v2409, %v3482
    %v3495 = vmul.f32 %v2410, %v3483
    %v3496 = vmul.f32 %v2411, %v3484
    %v3497 = vmul.f32 %v2412, %v3485
    %v3498 = vmul.f32 %v2413, %v3482
    %v3499 = vmul.f32 %v2414, %v3483
    %v3500 = vmul.f32 %v2415, %v3484
    %v3501 = vmul.f32 %v2416, %v3485
    %s3502 = sld [smem:[#allocation7]]
    %s3503 = sld [smem:[#allocation7 + $0x1]]
    %v3504 = vlaneseq
    %v3505 = vshrl.u32 %v3504, 7
    %v3506 = vadd.s32 %v3505, 8
    %v3507 = vadd.s32 %v3505, 16
    %v3508 = vadd.s32 %v3505, 24
    %v3509 = vadd.s32 %v3505, 32
    %v3510 = vadd.s32 %v3505, 40
    %v3511 = vadd.s32 %v3505, 48
    %v3512 = vadd.s32 %v3505, 56
    %vm3513 = vcmp.lt.s32.totalorder %v3505, 32
    %vm3514 = vcmp.lt.s32.totalorder %v3506, 32
    %vm3515 = vcmp.lt.s32.totalorder %v3507, 32
    %vm3516 = vcmp.lt.s32.totalorder %v3508, 32
    %vm3517 = vcmp.lt.s32.totalorder %v3509, 32
    %vm3518 = vcmp.lt.s32.totalorder %v3510, 32
    %vm3519 = vcmp.lt.s32.totalorder %v3511, 32
    %vm3520 = vcmp.lt.s32.totalorder %v3512, 32
    %v3521 = vstv %s3502
    %v3522 = vstv %s3503
    %v3523 = vsel %vm3513, %v3521, %v3522
    %v3524 = vsel %vm3514, %v3521, %v3522
    %v3525 = vsel %vm3515, %v3521, %v3522
    %v3526 = vsel %vm3516, %v3521, %v3522
    %v3527 = vsel %vm3517, %v3521, %v3522
    %v3528 = vsel %vm3518, %v3521, %v3522
    %v3529 = vsel %vm3519, %v3521, %v3522
    %v3530 = vsel %vm3520, %v3521, %v3522
    %v3531 = vmax.f32 %v3486, 1e-06
    %v3532 = vmax.f32 %v3487, 1e-06
    %v3533 = vmax.f32 %v3488, 1e-06
    %v3534 = vmax.f32 %v3489, 1e-06
    %v3535 = vmax.f32 %v3490, 1e-06
    %v3536 = vmax.f32 %v3491, 1e-06
    %v3537 = vmax.f32 %v3492, 1e-06
    %v3538 = vmax.f32 %v3493, 1e-06
    %v3539 = vmax.f32 %v3494, 1e-06
    %v3540 = vmax.f32 %v3495, 1e-06
    %v3541 = vmax.f32 %v3496, 1e-06
    %v3542 = vmax.f32 %v3497, 1e-06
    %v3543 = vmax.f32 %v3498, 1e-06
    %v3544 = vmax.f32 %v3499, 1e-06
    %v3545 = vmax.f32 %v3500, 1e-06
    %v3546 = vmax.f32 %v3501, 1e-06
    %v3547 = vmax.f32 %v689, 1e-06
    %v3548 = vmax.f32 %v718, 1e-06
    %v3549 = vmax.f32 %v747, 1e-06
    %v3550 = vmax.f32 %v776, 1e-06
    %v3551 = vmax.f32 %v691, 1e-06
    %v3552 = vmax.f32 %v720, 1e-06
    %v3553 = vmax.f32 %v749, 1e-06
    %v3554 = vmax.f32 %v778, 1e-06
    %v3555 = vmax.f32 %v694, 1e-06
    %v3556 = vmax.f32 %v723, 1e-06
    %v3557 = vmax.f32 %v752, 1e-06
    %v3558 = vmax.f32 %v781, 1e-06
    %v3559 = vmax.f32 %v696, 1e-06
    %v3560 = vmax.f32 %v725, 1e-06
    %v3561 = vmax.f32 %v754, 1e-06
    %v3562 = vmax.f32 %v783, 1e-06
    %v3563 = vlog2.pop %v3531
    %v3564 = vmul.f32 %v3563, 0.6931472
    %v3565 = vlog2.pop %v3532
    %v3566 = vmul.f32 %v3565, 0.6931472
    %v3567 = vlog2.pop %v3533
    %v3568 = vmul.f32 %v3567, 0.6931472
    %v3569 = vlog2.pop %v3534
    %v3570 = vmul.f32 %v3569, 0.6931472
    %v3571 = vlog2.pop %v3535
    %v3572 = vmul.f32 %v3571, 0.6931472
    %v3573 = vlog2.pop %v3536
    %v3574 = vmul.f32 %v3573, 0.6931472
    %v3575 = vlog2.pop %v3537
    %v3576 = vmul.f32 %v3575, 0.6931472
    %v3577 = vlog2.pop %v3538
    %v3578 = vmul.f32 %v3577, 0.6931472
    %v3579 = vlog2.pop %v3539
    %v3580 = vmul.f32 %v3579, 0.6931472
    %v3581 = vlog2.pop %v3540
    %v3582 = vmul.f32 %v3581, 0.6931472
    %v3583 = vlog2.pop %v3541
    %v3584 = vmul.f32 %v3583, 0.6931472
    %v3585 = vlog2.pop %v3542
    %v3586 = vmul.f32 %v3585, 0.6931472
    %v3587 = vlog2.pop %v3543
    %v3588 = vmul.f32 %v3587, 0.6931472
    %v3589 = vlog2.pop %v3544
    %v3590 = vmul.f32 %v3589, 0.6931472
    %v3591 = vlog2.pop %v3545
    %v3592 = vmul.f32 %v3591, 0.6931472
    %v3593 = vlog2.pop %v3546
    %v3594 = vmul.f32 %v3593, 0.6931472
    %v3595 = vlog2.pop %v3547
    %v3596 = vmul.f32 %v3595, 0.6931472
    %v3597 = vlog2.pop %v3548
    %v3598 = vmul.f32 %v3597, 0.6931472
    %v3599 = vlog2.pop %v3549
    %v3600 = vmul.f32 %v3599, 0.6931472
    %v3601 = vlog2.pop %v3550
    %v3602 = vmul.f32 %v3601, 0.6931472
    %v3603 = vlog2.pop %v3551
    %v3604 = vmul.f32 %v3603, 0.6931472
    %v3605 = vlog2.pop %v3552
    %v3606 = vmul.f32 %v3605, 0.6931472
    %v3607 = vlog2.pop %v3553
    %v3608 = vmul.f32 %v3607, 0.6931472
    %v3609 = vlog2.pop %v3554
    %v3610 = vmul.f32 %v3609, 0.6931472
    %v3611 = vlog2.pop %v3555
    %v3612 = vmul.f32 %v3611, 0.6931472
    %v3613 = vlog2.pop %v3556
    %v3614 = vmul.f32 %v3613, 0.6931472
    %v3615 = vlog2.pop %v3557
    %v3616 = vmul.f32 %v3615, 0.6931472
    %v3617 = vlog2.pop %v3558
    %v3618 = vmul.f32 %v3617, 0.6931472
    %v3619 = vlog2.pop %v3559
    %v3620 = vmul.f32 %v3619, 0.6931472
    %v3621 = vlog2.pop %v3560
    %v3622 = vmul.f32 %v3621, 0.6931472
    %v3623 = vlog2.pop %v3561
    %v3624 = vmul.f32 %v3623, 0.6931472
    %v3625 = vlog2.pop %v3562
    %v3626 = vmul.f32 %v3625, 0.6931472
    %v3627 = vmul.f32 %v3564, %v3523
    %v3628 = vmul.f32 %v3566, %v3523
    %v3629 = vmul.f32 %v3568, %v3523
    %v3630 = vmul.f32 %v3570, %v3523
    %v3631 = vmul.f32 %v3572, %v3524
    %v3632 = vmul.f32 %v3574, %v3524
    %v3633 = vmul.f32 %v3576, %v3524
    %v3634 = vmul.f32 %v3578, %v3524
    %v3635 = vmul.f32 %v3580, %v3525
    %v3636 = vmul.f32 %v3582, %v3525
    %v3637 = vmul.f32 %v3584, %v3525
    %v3638 = vmul.f32 %v3586, %v3525
    %v3639 = vmul.f32 %v3588, %v3526
    %v3640 = vmul.f32 %v3590, %v3526
    %v3641 = vmul.f32 %v3592, %v3526
    %v3642 = vmul.f32 %v3594, %v3526
    %v3643 = vmul.f32 %v3596, %v3527
    %v3644 = vmul.f32 %v3598, %v3527
    %v3645 = vmul.f32 %v3600, %v3527
    %v3646 = vmul.f32 %v3602, %v3527
    %v3647 = vmul.f32 %v3604, %v3528
    %v3648 = vmul.f32 %v3606, %v3528
    %v3649 = vmul.f32 %v3608, %v3528
    %v3650 = vmul.f32 %v3610, %v3528
    %v3651 = vmul.f32 %v3612, %v3529
    %v3652 = vmul.f32 %v3614, %v3529
    %v3653 = vmul.f32 %v3616, %v3529
    %v3654 = vmul.f32 %v3618, %v3529
    %v3655 = vmul.f32 %v3620, %v3530
    %v3656 = vmul.f32 %v3622, %v3530
    %v3657 = vmul.f32 %v3624, %v3530
    %v3658 = vmul.f32 %v3626, %v3530
    %v3659 = vmul.f32 %v3627, 1.442695
    %v3660 = vpow.pop %v3659
    %v3661 = vmul.f32 %v3628, 1.442695
    %v3662 = vpow.pop %v3661
    %v3663 = vmul.f32 %v3629, 1.442695
    %v3664 = vpow.pop %v3663
    %v3665 = vmul.f32 %v3630, 1.442695
    %v3666 = vpow.pop %v3665
    %v3667 = vmul.f32 %v3631, 1.442695
    %v3668 = vpow.pop %v3667
    %v3669 = vmul.f32 %v3632, 1.442695
    %v3670 = vpow.pop %v3669
    %v3671 = vmul.f32 %v3633, 1.442695
    %v3672 = vpow.pop %v3671
    %v3673 = vmul.f32 %v3634, 1.442695
    %v3674 = vpow.pop %v3673
    %v3675 = vmul.f32 %v3635, 1.442695
    %v3676 = vpow.pop %v3675
    %v3677 = vmul.f32 %v3636, 1.442695
    %v3678 = vpow.pop %v3677
    %v3679 = vmul.f32 %v3637, 1.442695
    %v3680 = vpow.pop %v3679
    %v3681 = vmul.f32 %v3638, 1.442695
    %v3682 = vpow.pop %v3681
    %v3683 = vmul.f32 %v3639, 1.442695
    %v3684 = vpow.pop %v3683
    %v3685 = vmul.f32 %v3640, 1.442695
    %v3686 = vpow.pop %v3685
    %v3687 = vmul.f32 %v3641, 1.442695
    %v3688 = vpow.pop %v3687
    %v3689 = vmul.f32 %v3642, 1.442695
    %v3690 = vpow.pop %v3689
    %v3691 = vmul.f32 %v3643, 1.442695
    %v3692 = vpow.pop %v3691
    %v3693 = vmul.f32 %v3644, 1.442695
    %v3694 = vpow.pop %v3693
    %v3695 = vmul.f32 %v3645, 1.442695
    %v3696 = vpow.pop %v3695
    %v3697 = vmul.f32 %v3646, 1.442695
    %v3698 = vpow.pop %v3697
    %v3699 = vmul.f32 %v3647, 1.442695
    %v3700 = vpow.pop %v3699
    %v3701 = vmul.f32 %v3648, 1.442695
    %v3702 = vpow.pop %v3701
    %v3703 = vmul.f32 %v3649, 1.442695
    %v3704 = vpow.pop %v3703
    %v3705 = vmul.f32 %v3650, 1.442695
    %v3706 = vpow.pop %v3705
    %v3707 = vmul.f32 %v3651, 1.442695
    %v3708 = vpow.pop %v3707
    %v3709 = vmul.f32 %v3652, 1.442695
    %v3710 = vpow.pop %v3709
    %v3711 = vmul.f32 %v3653, 1.442695
    %v3712 = vpow.pop %v3711
    %v3713 = vmul.f32 %v3654, 1.442695
    %v3714 = vpow.pop %v3713
    %v3715 = vmul.f32 %v3655, 1.442695
    %v3716 = vpow.pop %v3715
    %v3717 = vmul.f32 %v3656, 1.442695
    %v3718 = vpow.pop %v3717
    %v3719 = vmul.f32 %v3657, 1.442695
    %v3720 = vpow.pop %v3719
    %v3721 = vmul.f32 %v3658, 1.442695
    %v3722 = vpow.pop %v3721
    %v3723 = vld [vmem:[%s9] sm:$0xff]
    %v3724 = vld [vmem:[%s9 + $0x8] sm:$0xff]
    %v3725 = vld [vmem:[%s9 + $0x10] sm:$0xff]
    %v3726 = vld [vmem:[%s9 + $0x18] sm:$0xff]
    %v3727 = vld [vmem:[%s9 + $0x20] sm:$0xff]
    %v3728 = vld [vmem:[%s9 + $0x28] sm:$0xff]
    %v3729 = vld [vmem:[%s9 + $0x30] sm:$0xff]
    %v3730 = vld [vmem:[%s9 + $0x38] sm:$0xff]
    %v3731 = vld [vmem:[%s9 + $0x40] sm:$0xff]
    %v3732 = vld [vmem:[%s9 + $0x48] sm:$0xff]
    %v3733 = vld [vmem:[%s9 + $0x50] sm:$0xff]
    %v3734 = vld [vmem:[%s9 + $0x58] sm:$0xff]
    %v3735 = vld [vmem:[%s9 + $0x60] sm:$0xff]
    %v3736 = vld [vmem:[%s9 + $0x68] sm:$0xff]
    %v3737 = vld [vmem:[%s9 + $0x70] sm:$0xff]
    %v3738 = vld [vmem:[%s9 + $0x78] sm:$0xff]
    %v3739 = vld [vmem:[%s9 + $0x80] sm:$0xff]
    %v3740 = vld [vmem:[%s9 + $0x88] sm:$0xff]
    %v3741 = vld [vmem:[%s9 + $0x90] sm:$0xff]
    %v3742 = vld [vmem:[%s9 + $0x98] sm:$0xff]
    %v3743 = vld [vmem:[%s9 + $0xa0] sm:$0xff]
    %v3744 = vld [vmem:[%s9 + $0xa8] sm:$0xff]
    %v3745 = vld [vmem:[%s9 + $0xb0] sm:$0xff]
    %v3746 = vld [vmem:[%s9 + $0xb8] sm:$0xff]
    %v3747 = vld [vmem:[%s9 + $0xc0] sm:$0xff]
    %v3748 = vld [vmem:[%s9 + $0xc8] sm:$0xff]
    %v3749 = vld [vmem:[%s9 + $0xd0] sm:$0xff]
    %v3750 = vld [vmem:[%s9 + $0xd8] sm:$0xff]
    %v3751 = vld [vmem:[%s9 + $0xe0] sm:$0xff]
    %v3752 = vld [vmem:[%s9 + $0xe8] sm:$0xff]
    %v3753 = vld [vmem:[%s9 + $0xf0] sm:$0xff]
    %v3754 = vld [vmem:[%s9 + $0xf8] sm:$0xff]
    %v3755 = vld [vmem:[%s9 + $0x100] sm:$0xff]
    %v3756 = vld [vmem:[%s9 + $0x108] sm:$0xff]
    %v3757 = vld [vmem:[%s9 + $0x110] sm:$0xff]
    %v3758 = vld [vmem:[%s9 + $0x118] sm:$0xff]
    %v3759 = vld [vmem:[%s9 + $0x120] sm:$0xff]
    %v3760 = vld [vmem:[%s9 + $0x128] sm:$0xff]
    %v3761 = vld [vmem:[%s9 + $0x130] sm:$0xff]
    %v3762 = vld [vmem:[%s9 + $0x138] sm:$0xff]
    %v3763 = vld [vmem:[%s9 + $0x140] sm:$0xff]
    %v3764 = vld [vmem:[%s9 + $0x148] sm:$0xff]
    %v3765 = vld [vmem:[%s9 + $0x150] sm:$0xff]
    %v3766 = vld [vmem:[%s9 + $0x158] sm:$0xff]
    %v3767 = vld [vmem:[%s9 + $0x160] sm:$0xff]
    %v3768 = vld [vmem:[%s9 + $0x168] sm:$0xff]
    %v3769 = vld [vmem:[%s9 + $0x170] sm:$0xff]
    %v3770 = vld [vmem:[%s9 + $0x178] sm:$0xff]
    %v3771 = vld [vmem:[%s9 + $0x180] sm:$0xff]
    %v3772 = vld [vmem:[%s9 + $0x188] sm:$0xff]
    %v3773 = vld [vmem:[%s9 + $0x190] sm:$0xff]
    %v3774 = vld [vmem:[%s9 + $0x198] sm:$0xff]
    %v3775 = vld [vmem:[%s9 + $0x1a0] sm:$0xff]
    %v3776 = vld [vmem:[%s9 + $0x1a8] sm:$0xff]
    %v3777 = vld [vmem:[%s9 + $0x1b0] sm:$0xff]
    %v3778 = vld [vmem:[%s9 + $0x1b8] sm:$0xff]
    %v3779 = vld [vmem:[%s9 + $0x1c0] sm:$0xff]
    %v3780 = vld [vmem:[%s9 + $0x1c8] sm:$0xff]
    %v3781 = vld [vmem:[%s9 + $0x1d0] sm:$0xff]
    %v3782 = vld [vmem:[%s9 + $0x1d8] sm:$0xff]
    %v3783 = vld [vmem:[%s9 + $0x1e0] sm:$0xff]
    %v3784 = vld [vmem:[%s9 + $0x1e8] sm:$0xff]
    %v3785 = vld [vmem:[%s9 + $0x1f0] sm:$0xff]
    %v3786 = vld [vmem:[%s9 + $0x1f8] sm:$0xff]
    %v3787 = vld [vmem:[%s9 + $0x200] sm:$0xff]
    %v3788 = vld [vmem:[%s9 + $0x208] sm:$0xff]
    %v3789 = vld [vmem:[%s9 + $0x210] sm:$0xff]
    %v3790 = vld [vmem:[%s9 + $0x218] sm:$0xff]
    %v3791 = vld [vmem:[%s9 + $0x220] sm:$0xff]
    %v3792 = vld [vmem:[%s9 + $0x228] sm:$0xff]
    %v3793 = vld [vmem:[%s9 + $0x230] sm:$0xff]
    %v3794 = vld [vmem:[%s9 + $0x238] sm:$0xff]
    %v3795 = vld [vmem:[%s9 + $0x240] sm:$0xff]
    %v3796 = vld [vmem:[%s9 + $0x248] sm:$0xff]
    %v3797 = vld [vmem:[%s9 + $0x250] sm:$0xff]
    %v3798 = vld [vmem:[%s9 + $0x258] sm:$0xff]
    %v3799 = vld [vmem:[%s9 + $0x260] sm:$0xff]
    %v3800 = vld [vmem:[%s9 + $0x268] sm:$0xff]
    %v3801 = vld [vmem:[%s9 + $0x270] sm:$0xff]
    %v3802 = vld [vmem:[%s9 + $0x278] sm:$0xff]
    %v3803 = vld [vmem:[%s9 + $0x280] sm:$0xff]
    %v3804 = vld [vmem:[%s9 + $0x288] sm:$0xff]
    %v3805 = vld [vmem:[%s9 + $0x290] sm:$0xff]
    %v3806 = vld [vmem:[%s9 + $0x298] sm:$0xff]
    %v3807 = vld [vmem:[%s9 + $0x2a0] sm:$0xff]
    %v3808 = vld [vmem:[%s9 + $0x2a8] sm:$0xff]
    %v3809 = vld [vmem:[%s9 + $0x2b0] sm:$0xff]
    %v3810 = vld [vmem:[%s9 + $0x2b8] sm:$0xff]
    %v3811 = vld [vmem:[%s9 + $0x2c0] sm:$0xff]
    %v3812 = vld [vmem:[%s9 + $0x2c8] sm:$0xff]
    %v3813 = vld [vmem:[%s9 + $0x2d0] sm:$0xff]
    %v3814 = vld [vmem:[%s9 + $0x2d8] sm:$0xff]
    %v3815 = vld [vmem:[%s9 + $0x2e0] sm:$0xff]
    %v3816 = vld [vmem:[%s9 + $0x2e8] sm:$0xff]
    %v3817 = vld [vmem:[%s9 + $0x2f0] sm:$0xff]
    %v3818 = vld [vmem:[%s9 + $0x2f8] sm:$0xff]
    %v3819 = vld [vmem:[%s9 + $0x300] sm:$0xff]
    %v3820 = vld [vmem:[%s9 + $0x308] sm:$0xff]
    %v3821 = vld [vmem:[%s9 + $0x310] sm:$0xff]
    %v3822 = vld [vmem:[%s9 + $0x318] sm:$0xff]
    %v3823 = vld [vmem:[%s9 + $0x320] sm:$0xff]
    %v3824 = vld [vmem:[%s9 + $0x328] sm:$0xff]
    %v3825 = vld [vmem:[%s9 + $0x330] sm:$0xff]
    %v3826 = vld [vmem:[%s9 + $0x338] sm:$0xff]
    %v3827 = vld [vmem:[%s9 + $0x340] sm:$0xff]
    %v3828 = vld [vmem:[%s9 + $0x348] sm:$0xff]
    %v3829 = vld [vmem:[%s9 + $0x350] sm:$0xff]
    %v3830 = vld [vmem:[%s9 + $0x358] sm:$0xff]
    %v3831 = vld [vmem:[%s9 + $0x360] sm:$0xff]
    %v3832 = vld [vmem:[%s9 + $0x368] sm:$0xff]
    %v3833 = vld [vmem:[%s9 + $0x370] sm:$0xff]
    %v3834 = vld [vmem:[%s9 + $0x378] sm:$0xff]
    %v3835 = vld [vmem:[%s9 + $0x380] sm:$0xff]
    %v3836 = vld [vmem:[%s9 + $0x388] sm:$0xff]
    %v3837 = vld [vmem:[%s9 + $0x390] sm:$0xff]
    %v3838 = vld [vmem:[%s9 + $0x398] sm:$0xff]
    %v3839 = vld [vmem:[%s9 + $0x3a0] sm:$0xff]
    %v3840 = vld [vmem:[%s9 + $0x3a8] sm:$0xff]
    %v3841 = vld [vmem:[%s9 + $0x3b0] sm:$0xff]
    %v3842 = vld [vmem:[%s9 + $0x3b8] sm:$0xff]
    %v3843 = vld [vmem:[%s9 + $0x3c0] sm:$0xff]
    %v3844 = vld [vmem:[%s9 + $0x3c8] sm:$0xff]
    %v3845 = vld [vmem:[%s9 + $0x3d0] sm:$0xff]
    %v3846 = vld [vmem:[%s9 + $0x3d8] sm:$0xff]
    %v3847 = vld [vmem:[%s9 + $0x3e0] sm:$0xff]
    %v3848 = vld [vmem:[%s9 + $0x3e8] sm:$0xff]
    %v3849 = vld [vmem:[%s9 + $0x3f0] sm:$0xff]
    %v3850 = vld [vmem:[%s9 + $0x3f8] sm:$0xff]
    %3851 = vmatpush.msra.mxu0 %v3753
    %3852 = vmatpush.msra.mxu0 %v3751
    %3853 = vmatpush.msra.mxu0 %v3749
    %3854 = vmatpush.msra.mxu0 %v3747
    %3855 = vmatpush.msra.mxu0 %v3745
    %3856 = vmatpush.msra.mxu0 %v3743
    %3857 = vmatpush.msra.mxu0 %v3741
    %3858 = vmatpush.msra.mxu0 %v3739
    %3859 = vmatpush.msra.mxu0 %v3737
    %3860 = vmatpush.msra.mxu0 %v3735
    %3861 = vmatpush.msra.mxu0 %v3733
    %3862 = vmatpush.msra.mxu0 %v3731
    %3863 = vmatpush.msra.mxu0 %v3729
    %3864 = vmatpush.msra.mxu0 %v3727
    %3865 = vmatpush.msra.mxu0 %v3725
    %3866 = vmatpush.msra.mxu0 %v3723
    %3867 = vmatmul.f32.gmra.mxu0 %v3660
    %v3868 = vpop.f32.mrf.mxu0
    %v3869 = vadd.f32 0.0, %v3868
    %3870 = vmatmul.f32.gmra.mxu0 %v3668
    %v3871 = vpop.f32.mrf.mxu0
    %v3872 = vadd.f32 0.0, %v3871
    %3873 = vmatmul.f32.gmra.mxu0 %v3676
    %v3874 = vpop.f32.mrf.mxu0
    %v3875 = vadd.f32 0.0, %v3874
    %3876 = vmatmul.f32.gmra.mxu0 %v3684
    %v3877 = vpop.f32.mrf.mxu0
    %v3878 = vadd.f32 0.0, %v3877
    %3879 = vmatmul.f32.gmra.mxu0 %v3692
    %v3880 = vpop.f32.mrf.mxu0
    %v3881 = vadd.f32 0.0, %v3880
    %3882 = vmatmul.f32.gmra.mxu0 %v3700
    %v3883 = vpop.f32.mrf.mxu0
    %v3884 = vadd.f32 0.0, %v3883
    %3885 = vmatmul.f32.gmra.mxu0 %v3708
    %v3886 = vpop.f32.mrf.mxu0
    %v3887 = vadd.f32 0.0, %v3886
    %3888 = vmatmul.f32.gmra.mxu0 %v3716
    %v3889 = vpop.f32.mrf.mxu0
    %v3890 = vadd.f32 0.0, %v3889
    %3891 = vdwg.mxu0
    %3892 = vmatpush.msra.mxu0 %v3785
    %3893 = vmatpush.msra.mxu0 %v3783
    %3894 = vmatpush.msra.mxu0 %v3781
    %3895 = vmatpush.msra.mxu0 %v3779
    %3896 = vmatpush.msra.mxu0 %v3777
    %3897 = vmatpush.msra.mxu0 %v3775
    %3898 = vmatpush.msra.mxu0 %v3773
    %3899 = vmatpush.msra.mxu0 %v3771
    %3900 = vmatpush.msra.mxu0 %v3769
    %3901 = vmatpush.msra.mxu0 %v3767
    %3902 = vmatpush.msra.mxu0 %v3765
    %3903 = vmatpush.msra.mxu0 %v3763
    %3904 = vmatpush.msra.mxu0 %v3761
    %3905 = vmatpush.msra.mxu0 %v3759
    %3906 = vmatpush.msra.mxu0 %v3757
    %3907 = vmatpush.msra.mxu0 %v3755
    %3908 = vmatmul.f32.gmra.mxu0 %v3662
    %v3909 = vpop.f32.mrf.mxu0
    %v3910 = vadd.f32 %v3869, %v3909
    %3911 = vmatmul.f32.gmra.mxu0 %v3670
    %v3912 = vpop.f32.mrf.mxu0
    %v3913 = vadd.f32 %v3872, %v3912
    %3914 = vmatmul.f32.gmra.mxu0 %v3678
    %v3915 = vpop.f32.mrf.mxu0
    %v3916 = vadd.f32 %v3875, %v3915
    %3917 = vmatmul.f32.gmra.mxu0 %v3686
    %v3918 = vpop.f32.mrf.mxu0
    %v3919 = vadd.f32 %v3878, %v3918
    %3920 = vmatmul.f32.gmra.mxu0 %v3694
    %v3921 = vpop.f32.mrf.mxu0
    %v3922 = vadd.f32 %v3881, %v3921
    %3923 = vmatmul.f32.gmra.mxu0 %v3702
    %v3924 = vpop.f32.mrf.mxu0
    %v3925 = vadd.f32 %v3884, %v3924
    %3926 = vmatmul.f32.gmra.mxu0 %v3710
    %v3927 = vpop.f32.mrf.mxu0
    %v3928 = vadd.f32 %v3887, %v3927
    %3929 = vmatmul.f32.gmra.mxu0 %v3718
    %v3930 = vpop.f32.mrf.mxu0
    %v3931 = vadd.f32 %v3890, %v3930
    %3932 = vdwg.mxu0
    %3933 = vmatpush.msra.mxu0 %v3817
    %3934 = vmatpush.msra.mxu0 %v3815
    %3935 = vmatpush.msra.mxu0 %v3813
    %3936 = vmatpush.msra.mxu0 %v3811
    %3937 = vmatpush.msra.mxu0 %v3809
    %3938 = vmatpush.msra.mxu0 %v3807
    %3939 = vmatpush.msra.mxu0 %v3805
    %3940 = vmatpush.msra.mxu0 %v3803
    %3941 = vmatpush.msra.mxu0 %v3801
    %3942 = vmatpush.msra.mxu0 %v3799
    %3943 = vmatpush.msra.mxu0 %v3797
    %3944 = vmatpush.msra.mxu0 %v3795
    %3945 = vmatpush.msra.mxu0 %v3793
    %3946 = vmatpush.msra.mxu0 %v3791
    %3947 = vmatpush.msra.mxu0 %v3789
    %3948 = vmatpush.msra.mxu0 %v3787
    %3949 = vmatmul.f32.gmra.mxu0 %v3664
    %v3950 = vpop.f32.mrf.mxu0
    %v3951 = vadd.f32 %v3910, %v3950
    %3952 = vmatmul.f32.gmra.mxu0 %v3672
    %v3953 = vpop.f32.mrf.mxu0
    %v3954 = vadd.f32 %v3913, %v3953
    %3955 = vmatmul.f32.gmra.mxu0 %v3680
    %v3956 = vpop.f32.mrf.mxu0
    %v3957 = vadd.f32 %v3916, %v3956
    %3958 = vmatmul.f32.gmra.mxu0 %v3688
    %v3959 = vpop.f32.mrf.mxu0
    %v3960 = vadd.f32 %v3919, %v3959
    %3961 = vmatmul.f32.gmra.mxu0 %v3696
    %v3962 = vpop.f32.mrf.mxu0
    %v3963 = vadd.f32 %v3922, %v3962
    %3964 = vmatmul.f32.gmra.mxu0 %v3704
    %v3965 = vpop.f32.mrf.mxu0
    %v3966 = vadd.f32 %v3925, %v3965
    %3967 = vmatmul.f32.gmra.mxu0 %v3712
    %v3968 = vpop.f32.mrf.mxu0
    %v3969 = vadd.f32 %v3928, %v3968
    %3970 = vmatmul.f32.gmra.mxu0 %v3720
    %v3971 = vpop.f32.mrf.mxu0
    %v3972 = vadd.f32 %v3931, %v3971
    %3973 = vdwg.mxu0
    %3974 = vmatpush.msra.mxu0 %v3849
    %3975 = vmatpush.msra.mxu0 %v3847
    %3976 = vmatpush.msra.mxu0 %v3845
    %3977 = vmatpush.msra.mxu0 %v3843
    %3978 = vmatpush.msra.mxu0 %v3841
    %3979 = vmatpush.msra.mxu0 %v3839
    %3980 = vmatpush.msra.mxu0 %v3837
    %3981 = vmatpush.msra.mxu0 %v3835
    %3982 = vmatpush.msra.mxu0 %v3833
    %3983 = vmatpush.msra.mxu0 %v3831
    %3984 = vmatpush.msra.mxu0 %v3829
    %3985 = vmatpush.msra.mxu0 %v3827
    %3986 = vmatpush.msra.mxu0 %v3825
    %3987 = vmatpush.msra.mxu0 %v3823
    %3988 = vmatpush.msra.mxu0 %v3821
    %3989 = vmatpush.msra.mxu0 %v3819
    %3990 = vmatmul.f32.gmra.mxu0 %v3666
    %v3991 = vpop.f32.mrf.mxu0
    %v3992 = vadd.f32 %v3951, %v3991
    %3993 = vmatmul.f32.gmra.mxu0 %v3674
    %v3994 = vpop.f32.mrf.mxu0
    %v3995 = vadd.f32 %v3954, %v3994
    %3996 = vmatmul.f32.gmra.mxu0 %v3682
    %v3997 = vpop.f32.mrf.mxu0
    %v3998 = vadd.f32 %v3957, %v3997
    %3999 = vmatmul.f32.gmra.mxu0 %v3690
    %v4000 = vpop.f32.mrf.mxu0
    %v4001 = vadd.f32 %v3960, %v4000
    %4002 = vmatmul.f32.gmra.mxu0 %v3698
    %v4003 = vpop.f32.mrf.mxu0
    %v4004 = vadd.f32 %v3963, %v4003
    %4005 = vmatmul.f32.gmra.mxu0 %v3706
    %v4006 = vpop.f32.mrf.mxu0
    %v4007 = vadd.f32 %v3966, %v4006
    %4008 = vmatmul.f32.gmra.mxu0 %v3714
    %v4009 = vpop.f32.mrf.mxu0
    %v4010 = vadd.f32 %v3969, %v4009
    %4011 = vmatmul.f32.gmra.mxu0 %v3722
    %v4012 = vpop.f32.mrf.mxu0
    %v4013 = vadd.f32 %v3972, %v4012
    %4014 = vdwg.mxu0
    %4015 = vmatpush.msra.mxu0 %v3754
    %4016 = vmatpush.msra.mxu0 %v3752
    %4017 = vmatpush.msra.mxu0 %v3750
    %4018 = vmatpush.msra.mxu0 %v3748
    %4019 = vmatpush.msra.mxu0 %v3746
    %4020 = vmatpush.msra.mxu0 %v3744
    %4021 = vmatpush.msra.mxu0 %v3742
    %4022 = vmatpush.msra.mxu0 %v3740
    %4023 = vmatpush.msra.mxu0 %v3738
    %4024 = vmatpush.msra.mxu0 %v3736
    %4025 = vmatpush.msra.mxu0 %v3734
    %4026 = vmatpush.msra.mxu0 %v3732
    %4027 = vmatpush.msra.mxu0 %v3730
    %4028 = vmatpush.msra.mxu0 %v3728
    %4029 = vmatpush.msra.mxu0 %v3726
    %4030 = vmatpush.msra.mxu0 %v3724
    %4031 = vmatmul.f32.gmra.mxu0 %v3660
    %v4032 = vpop.f32.mrf.mxu0
    %v4033 = vadd.f32 0.0, %v4032
    %4034 = vmatmul.f32.gmra.mxu0 %v3668
    %v4035 = vpop.f32.mrf.mxu0
    %v4036 = vadd.f32 0.0, %v4035
    %4037 = vmatmul.f32.gmra.mxu0 %v3676
    %v4038 = vpop.f32.mrf.mxu0
    %v4039 = vadd.f32 0.0, %v4038
    %4040 = vmatmul.f32.gmra.mxu0 %v3684
    %v4041 = vpop.f32.mrf.mxu0
    %v4042 = vadd.f32 0.0, %v4041
    %4043 = vmatmul.f32.gmra.mxu0 %v3692
    %v4044 = vpop.f32.mrf.mxu0
    %v4045 = vadd.f32 0.0, %v4044
    %4046 = vmatmul.f32.gmra.mxu0 %v3700
    %v4047 = vpop.f32.mrf.mxu0
    %v4048 = vadd.f32 0.0, %v4047
    %4049 = vmatmul.f32.gmra.mxu0 %v3708
    %v4050 = vpop.f32.mrf.mxu0
    %v4051 = vadd.f32 0.0, %v4050
    %4052 = vmatmul.f32.gmra.mxu0 %v3716
    %v4053 = vpop.f32.mrf.mxu0
    %v4054 = vadd.f32 0.0, %v4053
    %4055 = vdwg.mxu0
    %4056 = vmatpush.msra.mxu0 %v3786
    %4057 = vmatpush.msra.mxu0 %v3784
    %4058 = vmatpush.msra.mxu0 %v3782
    %4059 = vmatpush.msra.mxu0 %v3780
    %4060 = vmatpush.msra.mxu0 %v3778
    %4061 = vmatpush.msra.mxu0 %v3776
    %4062 = vmatpush.msra.mxu0 %v3774
    %4063 = vmatpush.msra.mxu0 %v3772
    %4064 = vmatpush.msra.mxu0 %v3770
    %4065 = vmatpush.msra.mxu0 %v3768
    %4066 = vmatpush.msra.mxu0 %v3766
    %4067 = vmatpush.msra.mxu0 %v3764
    %4068 = vmatpush.msra.mxu0 %v3762
    %4069 = vmatpush.msra.mxu0 %v3760
    %4070 = vmatpush.msra.mxu0 %v3758
    %4071 = vmatpush.msra.mxu0 %v3756
    %4072 = vmatmul.f32.gmra.mxu0 %v3662
    %v4073 = vpop.f32.mrf.mxu0
    %v4074 = vadd.f32 %v4033, %v4073
    %4075 = vmatmul.f32.gmra.mxu0 %v3670
    %v4076 = vpop.f32.mrf.mxu0
    %v4077 = vadd.f32 %v4036, %v4076
    %4078 = vmatmul.f32.gmra.mxu0 %v3678
    %v4079 = vpop.f32.mrf.mxu0
    %v4080 = vadd.f32 %v4039, %v4079
    %4081 = vmatmul.f32.gmra.mxu0 %v3686
    %v4082 = vpop.f32.mrf.mxu0
    %v4083 = vadd.f32 %v4042, %v4082
    %4084 = vmatmul.f32.gmra.mxu0 %v3694
    %v4085 = vpop.f32.mrf.mxu0
    %v4086 = vadd.f32 %v4045, %v4085
    %4087 = vmatmul.f32.gmra.mxu0 %v3702
    %v4088 = vpop.f32.mrf.mxu0
    %v4089 = vadd.f32 %v4048, %v4088
    %4090 = vmatmul.f32.gmra.mxu0 %v3710
    %v4091 = vpop.f32.mrf.mxu0
    %v4092 = vadd.f32 %v4051, %v4091
    %4093 = vmatmul.f32.gmra.mxu0 %v3718
    %v4094 = vpop.f32.mrf.mxu0
    %v4095 = vadd.f32 %v4054, %v4094
    %4096 = vdwg.mxu0
    %4097 = vmatpush.msra.mxu0 %v3818
    %4098 = vmatpush.msra.mxu0 %v3816
    %4099 = vmatpush.msra.mxu0 %v3814
    %4100 = vmatpush.msra.mxu0 %v3812
    %4101 = vmatpush.msra.mxu0 %v3810
    %4102 = vmatpush.msra.mxu0 %v3808
    %4103 = vmatpush.msra.mxu0 %v3806
    %4104 = vmatpush.msra.mxu0 %v3804
    %4105 = vmatpush.msra.mxu0 %v3802
    %4106 = vmatpush.msra.mxu0 %v3800
    %4107 = vmatpush.msra.mxu0 %v3798
    %4108 = vmatpush.msra.mxu0 %v3796
    %4109 = vmatpush.msra.mxu0 %v3794
    %4110 = vmatpush.msra.mxu0 %v3792
    %4111 = vmatpush.msra.mxu0 %v3790
    %4112 = vmatpush.msra.mxu0 %v3788
    %4113 = vmatmul.f32.gmra.mxu0 %v3664
    %v4114 = vpop.f32.mrf.mxu0
    %v4115 = vadd.f32 %v4074, %v4114
    %4116 = vmatmul.f32.gmra.mxu0 %v3672
    %v4117 = vpop.f32.mrf.mxu0
    %v4118 = vadd.f32 %v4077, %v4117
    %4119 = vmatmul.f32.gmra.mxu0 %v3680
    %v4120 = vpop.f32.mrf.mxu0
    %v4121 = vadd.f32 %v4080, %v4120
    %4122 = vmatmul.f32.gmra.mxu0 %v3688
    %v4123 = vpop.f32.mrf.mxu0
    %v4124 = vadd.f32 %v4083, %v4123
    %4125 = vmatmul.f32.gmra.mxu0 %v3696
    %v4126 = vpop.f32.mrf.mxu0
    %v4127 = vadd.f32 %v4086, %v4126
    %4128 = vmatmul.f32.gmra.mxu0 %v3704
    %v4129 = vpop.f32.mrf.mxu0
    %v4130 = vadd.f32 %v4089, %v4129
    %4131 = vmatmul.f32.gmra.mxu0 %v3712
    %v4132 = vpop.f32.mrf.mxu0
    %v4133 = vadd.f32 %v4092, %v4132
    %4134 = vmatmul.f32.gmra.mxu0 %v3720
    %v4135 = vpop.f32.mrf.mxu0
    %v4136 = vadd.f32 %v4095, %v4135
    %4137 = vdwg.mxu0
    %4138 = vmatpush.msra.mxu0 %v3850
    %4139 = vmatpush.msra.mxu0 %v3848
    %4140 = vmatpush.msra.mxu0 %v3846
    %4141 = vmatpush.msra.mxu0 %v3844
    %4142 = vmatpush.msra.mxu0 %v3842
    %4143 = vmatpush.msra.mxu0 %v3840
    %4144 = vmatpush.msra.mxu0 %v3838
    %4145 = vmatpush.msra.mxu0 %v3836
    %4146 = vmatpush.msra.mxu0 %v3834
    %4147 = vmatpush.msra.mxu0 %v3832
    %4148 = vmatpush.msra.mxu0 %v3830
    %4149 = vmatpush.msra.mxu0 %v3828
    %4150 = vmatpush.msra.mxu0 %v3826
    %4151 = vmatpush.msra.mxu0 %v3824
    %4152 = vmatpush.msra.mxu0 %v3822
    %4153 = vmatpush.msra.mxu0 %v3820
    %4154 = vmatmul.f32.gmra.mxu0 %v3666
    %v4155 = vpop.f32.mrf.mxu0
    %v4156 = vadd.f32 %v4115, %v4155
    %4157 = vmatmul.f32.gmra.mxu0 %v3674
    %v4158 = vpop.f32.mrf.mxu0
    %v4159 = vadd.f32 %v4118, %v4158
    %4160 = vmatmul.f32.gmra.mxu0 %v3682
    %v4161 = vpop.f32.mrf.mxu0
    %v4162 = vadd.f32 %v4121, %v4161
    %4163 = vmatmul.f32.gmra.mxu0 %v3690
    %v4164 = vpop.f32.mrf.mxu0
    %v4165 = vadd.f32 %v4124, %v4164
    %4166 = vmatmul.f32.gmra.mxu0 %v3698
    %v4167 = vpop.f32.mrf.mxu0
    %v4168 = vadd.f32 %v4127, %v4167
    %4169 = vmatmul.f32.gmra.mxu0 %v3706
    %v4170 = vpop.f32.mrf.mxu0
    %v4171 = vadd.f32 %v4130, %v4170
    %4172 = vmatmul.f32.gmra.mxu0 %v3714
    %v4173 = vpop.f32.mrf.mxu0
    %v4174 = vadd.f32 %v4133, %v4173
    %4175 = vmatmul.f32.gmra.mxu0 %v3722
    %v4176 = vpop.f32.mrf.mxu0
    %v4177 = vadd.f32 %v4136, %v4176
    %4178 = vdwg.mxu0
    %v4179 = vlog2.pop %v3992
    %v4180 = vmul.f32 %v4179, 0.6931472
    %v4181 = vlog2.pop %v4156
    %v4182 = vmul.f32 %v4181, 0.6931472
    %v4183 = vlog2.pop %v3995
    %v4184 = vmul.f32 %v4183, 0.6931472
    %v4185 = vlog2.pop %v4159
    %v4186 = vmul.f32 %v4185, 0.6931472
    %v4187 = vlog2.pop %v3998
    %v4188 = vmul.f32 %v4187, 0.6931472
    %v4189 = vlog2.pop %v4162
    %v4190 = vmul.f32 %v4189, 0.6931472
    %v4191 = vlog2.pop %v4001
    %v4192 = vmul.f32 %v4191, 0.6931472
    %v4193 = vlog2.pop %v4165
    %v4194 = vmul.f32 %v4193, 0.6931472
    %v4195 = vlog2.pop %v4004
    %v4196 = vmul.f32 %v4195, 0.6931472
    %v4197 = vlog2.pop %v4168
    %v4198 = vmul.f32 %v4197, 0.6931472
    %v4199 = vlog2.pop %v4007
    %v4200 = vmul.f32 %v4199, 0.6931472
    %v4201 = vlog2.pop %v4171
    %v4202 = vmul.f32 %v4201, 0.6931472
    %v4203 = vlog2.pop %v4010
    %v4204 = vmul.f32 %v4203, 0.6931472
    %v4205 = vlog2.pop %v4174
    %v4206 = vmul.f32 %v4205, 0.6931472
    %v4207 = vlog2.pop %v4013
    %v4208 = vmul.f32 %v4207, 0.6931472
    %v4209 = vlog2.pop %v4177
    %v4210 = vmul.f32 %v4209, 0.6931472
    %v4211 = vrcp.pop %v3523
    %v4212 = vmul.f32 %v3523, %v4211
    %v4213 = vsub.f32 1.0, %v4212
    %v4214 = vmul.f32 %v4211, %v4213
    %v4215 = vadd.f32 %v4211, %v4214
    %vm4216 = vweird.f32 %v3523
    %vm4217 = vweird.f32 %v4211
    %vm4218 = vmor %vm4216, %vm4217
    %v4219 = vsel %vm4218, %v4211, %v4215
    %v4220 = vand.u32 2147483647, %v3523
    %vm4221 = vcmp.eq.f32.partialorder %v4220, 8.507059e+37
    %v4222 = vand.u32 %v3523, 2147483648
    %v4223 = vor.u32 1.1754944e-38, %v4222
    %v4224 = vsel %vm4221, %v4223, %v4219
    %v4225 = vmul.f32 %v4180, %v4224
    %v4226 = vmul.f32 %v4182, %v4224
    %v4227 = vrcp.pop %v3524
    %v4228 = vmul.f32 %v3524, %v4227
    %v4229 = vsub.f32 1.0, %v4228
    %v4230 = vmul.f32 %v4227, %v4229
    %v4231 = vadd.f32 %v4227, %v4230
    %vm4232 = vweird.f32 %v3524
    %vm4233 = vweird.f32 %v4227
    %vm4234 = vmor %vm4232, %vm4233
    %v4235 = vsel %vm4234, %v4227, %v4231
    %v4236 = vand.u32 2147483647, %v3524
    %vm4237 = vcmp.eq.f32.partialorder %v4236, 8.507059e+37
    %v4238 = vand.u32 %v3524, 2147483648
    %v4239 = vor.u32 1.1754944e-38, %v4238
    %v4240 = vsel %vm4237, %v4239, %v4235
    %v4241 = vmul.f32 %v4184, %v4240
    %v4242 = vmul.f32 %v4186, %v4240
    %v4243 = vrcp.pop %v3525
    %v4244 = vmul.f32 %v3525, %v4243
    %v4245 = vsub.f32 1.0, %v4244
    %v4246 = vmul.f32 %v4243, %v4245
    %v4247 = vadd.f32 %v4243, %v4246
    %vm4248 = vweird.f32 %v3525
    %vm4249 = vweird.f32 %v4243
    %vm4250 = vmor %vm4248, %vm4249
    %v4251 = vsel %vm4250, %v4243, %v4247
    %v4252 = vand.u32 2147483647, %v3525
    %vm4253 = vcmp.eq.f32.partialorder %v4252, 8.507059e+37
    %v4254 = vand.u32 %v3525, 2147483648
    %v4255 = vor.u32 1.1754944e-38, %v4254
    %v4256 = vsel %vm4253, %v4255, %v4251
    %v4257 = vmul.f32 %v4188, %v4256
    %v4258 = vmul.f32 %v4190, %v4256
    %v4259 = vrcp.pop %v3526
    %v4260 = vmul.f32 %v3526, %v4259
    %v4261 = vsub.f32 1.0, %v4260
    %v4262 = vmul.f32 %v4259, %v4261
    %v4263 = vadd.f32 %v4259, %v4262
    %vm4264 = vweird.f32 %v3526
    %vm4265 = vweird.f32 %v4259
    %vm4266 = vmor %vm4264, %vm4265
    %v4267 = vsel %vm4266, %v4259, %v4263
    %v4268 = vand.u32 2147483647, %v3526
    %vm4269 = vcmp.eq.f32.partialorder %v4268, 8.507059e+37
    %v4270 = vand.u32 %v3526, 2147483648
    %v4271 = vor.u32 1.1754944e-38, %v4270
    %v4272 = vsel %vm4269, %v4271, %v4267
    %v4273 = vmul.f32 %v4192, %v4272
    %v4274 = vmul.f32 %v4194, %v4272
    %v4275 = vrcp.pop %v3527
    %v4276 = vmul.f32 %v3527, %v4275
    %v4277 = vsub.f32 1.0, %v4276
    %v4278 = vmul.f32 %v4275, %v4277
    %v4279 = vadd.f32 %v4275, %v4278
    %vm4280 = vweird.f32 %v3527
    %vm4281 = vweird.f32 %v4275
    %vm4282 = vmor %vm4280, %vm4281
    %v4283 = vsel %vm4282, %v4275, %v4279
    %v4284 = vand.u32 2147483647, %v3527
    %vm4285 = vcmp.eq.f32.partialorder %v4284, 8.507059e+37
    %v4286 = vand.u32 %v3527, 2147483648
    %v4287 = vor.u32 1.1754944e-38, %v4286
    %v4288 = vsel %vm4285, %v4287, %v4283
    %v4289 = vmul.f32 %v4196, %v4288
    %v4290 = vmul.f32 %v4198, %v4288
    %v4291 = vrcp.pop %v3528
    %v4292 = vmul.f32 %v3528, %v4291
    %v4293 = vsub.f32 1.0, %v4292
    %v4294 = vmul.f32 %v4291, %v4293
    %v4295 = vadd.f32 %v4291, %v4294
    %vm4296 = vweird.f32 %v3528
    %vm4297 = vweird.f32 %v4291
    %vm4298 = vmor %vm4296, %vm4297
    %v4299 = vsel %vm4298, %v4291, %v4295
    %v4300 = vand.u32 2147483647, %v3528
    %vm4301 = vcmp.eq.f32.partialorder %v4300, 8.507059e+37
    %v4302 = vand.u32 %v3528, 2147483648
    %v4303 = vor.u32 1.1754944e-38, %v4302
    %v4304 = vsel %vm4301, %v4303, %v4299
    %v4305 = vmul.f32 %v4200, %v4304
    %v4306 = vmul.f32 %v4202, %v4304
    %v4307 = vrcp.pop %v3529
    %v4308 = vmul.f32 %v3529, %v4307
    %v4309 = vsub.f32 1.0, %v4308
    %v4310 = vmul.f32 %v4307, %v4309
    %v4311 = vadd.f32 %v4307, %v4310
    %vm4312 = vweird.f32 %v3529
    %vm4313 = vweird.f32 %v4307
    %vm4314 = vmor %vm4312, %vm4313
    %v4315 = vsel %vm4314, %v4307, %v4311
    %v4316 = vand.u32 2147483647, %v3529
    %vm4317 = vcmp.eq.f32.partialorder %v4316, 8.507059e+37
    %v4318 = vand.u32 %v3529, 2147483648
    %v4319 = vor.u32 1.1754944e-38, %v4318
    %v4320 = vsel %vm4317, %v4319, %v4315
    %v4321 = vmul.f32 %v4204, %v4320
    %v4322 = vmul.f32 %v4206, %v4320
    %v4323 = vrcp.pop %v3530
    %v4324 = vmul.f32 %v3530, %v4323
    %v4325 = vsub.f32 1.0, %v4324
    %v4326 = vmul.f32 %v4323, %v4325
    %v4327 = vadd.f32 %v4323, %v4326
    %vm4328 = vweird.f32 %v3530
    %vm4329 = vweird.f32 %v4323
    %vm4330 = vmor %vm4328, %vm4329
    %v4331 = vsel %vm4330, %v4323, %v4327
    %v4332 = vand.u32 2147483647, %v3530
    %vm4333 = vcmp.eq.f32.partialorder %v4332, 8.507059e+37
    %v4334 = vand.u32 %v3530, 2147483648
    %v4335 = vor.u32 1.1754944e-38, %v4334
    %v4336 = vsel %vm4333, %v4335, %v4331
    %v4337 = vmul.f32 %v4208, %v4336
    %v4338 = vmul.f32 %v4210, %v4336
    %v4339 = vmul.f32 %v4225, 1.442695
    %v4340 = vpow.pop %v4339
    %v4341 = vmul.f32 %v4226, 1.442695
    %v4342 = vpow.pop %v4341
    %v4343 = vmul.f32 %v4241, 1.442695
    %v4344 = vpow.pop %v4343
    %v4345 = vmul.f32 %v4242, 1.442695
    %v4346 = vpow.pop %v4345
    %v4347 = vmul.f32 %v4257, 1.442695
    %v4348 = vpow.pop %v4347
    %v4349 = vmul.f32 %v4258, 1.442695
    %v4350 = vpow.pop %v4349
    %v4351 = vmul.f32 %v4273, 1.442695
    %v4352 = vpow.pop %v4351
    %v4353 = vmul.f32 %v4274, 1.442695
    %v4354 = vpow.pop %v4353
    %v4355 = vmul.f32 %v4289, 1.442695
    %v4356 = vpow.pop %v4355
    %v4357 = vmul.f32 %v4290, 1.442695
    %v4358 = vpow.pop %v4357
    %v4359 = vmul.f32 %v4305, 1.442695
    %v4360 = vpow.pop %v4359
    %v4361 = vmul.f32 %v4306, 1.442695
    %v4362 = vpow.pop %v4361
    %v4363 = vmul.f32 %v4321, 1.442695
    %v4364 = vpow.pop %v4363
    %v4365 = vmul.f32 %v4322, 1.442695
    %v4366 = vpow.pop %v4365
    %v4367 = vmul.f32 %v4337, 1.442695
    %v4368 = vpow.pop %v4367
    %v4369 = vmul.f32 %v4338, 1.442695
    %v4370 = vpow.pop %v4369
    %v4371 = vmul.f32 %v4340, 0.9
    %v4372 = vmul.f32 %v4342, 0.9
    %v4373 = vmul.f32 %v4344, 0.9
    %v4374 = vmul.f32 %v4346, 0.9
    %v4375 = vmul.f32 %v4348, 0.9
    %v4376 = vmul.f32 %v4350, 0.9
    %v4377 = vmul.f32 %v4352, 0.9
    %v4378 = vmul.f32 %v4354, 0.9
    %v4379 = vadd.f32 %v4371, %v4356
    %v4380 = vadd.f32 %v4372, %v4358
    %v4381 = vadd.f32 %v4373, %v4360
    %v4382 = vadd.f32 %v4374, %v4362
    %v4383 = vadd.f32 %v4375, %v4364
    %v4384 = vadd.f32 %v4376, %v4366
    %v4385 = vadd.f32 %v4377, %v4368
    %v4386 = vadd.f32 %v4378, %v4370
    %v4387 = vsub.f32 0.0, %v4379
    %v4388 = vsub.f32 0.0, %v4380
    %v4389 = vsub.f32 0.0, %v4381
    %v4390 = vsub.f32 0.0, %v4382
    %v4391 = vsub.f32 0.0, %v4383
    %v4392 = vsub.f32 0.0, %v4384
    %v4393 = vsub.f32 0.0, %v4385
    %v4394 = vsub.f32 0.0, %v4386
    %v4395 = vmul.f32 %v4387, 1.442695
    %v4396 = vpow.pop %v4395
    %v4397 = vmul.f32 %v4388, 1.442695
    %v4398 = vpow.pop %v4397
    %v4399 = vmul.f32 %v4389, 1.442695
    %v4400 = vpow.pop %v4399
    %v4401 = vmul.f32 %v4390, 1.442695
    %v4402 = vpow.pop %v4401
    %v4403 = vmul.f32 %v4391, 1.442695
    %v4404 = vpow.pop %v4403
    %v4405 = vmul.f32 %v4392, 1.442695
    %v4406 = vpow.pop %v4405
    %v4407 = vmul.f32 %v4393, 1.442695
    %v4408 = vpow.pop %v4407
    %v4409 = vmul.f32 %v4394, 1.442695
    %v4410 = vpow.pop %v4409
    %v4411 = vadd.f32 %v4396, 1.0
    %v4412 = vadd.f32 %v4398, 1.0
    %v4413 = vadd.f32 %v4400, 1.0
    %v4414 = vadd.f32 %v4402, 1.0
    %v4415 = vadd.f32 %v4404, 1.0
    %v4416 = vadd.f32 %v4406, 1.0
    %v4417 = vadd.f32 %v4408, 1.0
    %v4418 = vadd.f32 %v4410, 1.0
    %v4419 = vrcp.pop %v4411
    %v4420 = vmul.f32 %v4411, %v4419
    %v4421 = vsub.f32 1.0, %v4420
    %v4422 = vmul.f32 %v4419, %v4421
    %v4423 = vadd.f32 %v4419, %v4422
    %vm4424 = vweird.f32 %v4411
    %vm4425 = vweird.f32 %v4419
    %vm4426 = vmor %vm4424, %vm4425
    %v4427 = vsel %vm4426, %v4419, %v4423
    %v4428 = vand.u32 2147483647, %v4411
    %vm4429 = vcmp.eq.f32.partialorder %v4428, 8.507059e+37
    %v4430 = vand.u32 %v4411, 2147483648
    %v4431 = vor.u32 1.1754944e-38, %v4430
    %v4432 = vsel %vm4429, %v4431, %v4427
    %v4433 = vmul.f32 1.0, %v4432
    %v4434 = vrcp.pop %v4412
    %v4435 = vmul.f32 %v4412, %v4434
    %v4436 = vsub.f32 1.0, %v4435
    %v4437 = vmul.f32 %v4434, %v4436
    %v4438 = vadd.f32 %v4434, %v4437
    %vm4439 = vweird.f32 %v4412
    %vm4440 = vweird.f32 %v4434
    %vm4441 = vmor %vm4439, %vm4440
    %v4442 = vsel %vm4441, %v4434, %v4438
    %v4443 = vand.u32 2147483647, %v4412
    %vm4444 = vcmp.eq.f32.partialorder %v4443, 8.507059e+37
    %v4445 = vand.u32 %v4412, 2147483648
    %v4446 = vor.u32 1.1754944e-38, %v4445
    %v4447 = vsel %vm4444, %v4446, %v4442
    %v4448 = vmul.f32 1.0, %v4447
    %v4449 = vrcp.pop %v4413
    %v4450 = vmul.f32 %v4413, %v4449
    %v4451 = vsub.f32 1.0, %v4450
    %v4452 = vmul.f32 %v4449, %v4451
    %v4453 = vadd.f32 %v4449, %v4452
    %vm4454 = vweird.f32 %v4413
    %vm4455 = vweird.f32 %v4449
    %vm4456 = vmor %vm4454, %vm4455
    %v4457 = vsel %vm4456, %v4449, %v4453
    %v4458 = vand.u32 2147483647, %v4413
    %vm4459 = vcmp.eq.f32.partialorder %v4458, 8.507059e+37
    %v4460 = vand.u32 %v4413, 2147483648
    %v4461 = vor.u32 1.1754944e-38, %v4460
    %v4462 = vsel %vm4459, %v4461, %v4457
    %v4463 = vmul.f32 1.0, %v4462
    %v4464 = vrcp.pop %v4414
    %v4465 = vmul.f32 %v4414, %v4464
    %v4466 = vsub.f32 1.0, %v4465
    %v4467 = vmul.f32 %v4464, %v4466
    %v4468 = vadd.f32 %v4464, %v4467
    %vm4469 = vweird.f32 %v4414
    %vm4470 = vweird.f32 %v4464
    %vm4471 = vmor %vm4469, %vm4470
    %v4472 = vsel %vm4471, %v4464, %v4468
    %v4473 = vand.u32 2147483647, %v4414
    %vm4474 = vcmp.eq.f32.partialorder %v4473, 8.507059e+37
    %v4475 = vand.u32 %v4414, 2147483648
    %v4476 = vor.u32 1.1754944e-38, %v4475
    %v4477 = vsel %vm4474, %v4476, %v4472
    %v4478 = vmul.f32 1.0, %v4477
    %v4479 = vrcp.pop %v4415
    %v4480 = vmul.f32 %v4415, %v4479
    %v4481 = vsub.f32 1.0, %v4480
    %v4482 = vmul.f32 %v4479, %v4481
    %v4483 = vadd.f32 %v4479, %v4482
    %vm4484 = vweird.f32 %v4415
    %vm4485 = vweird.f32 %v4479
    %vm4486 = vmor %vm4484, %vm4485
    %v4487 = vsel %vm4486, %v4479, %v4483
    %v4488 = vand.u32 2147483647, %v4415
    %vm4489 = vcmp.eq.f32.partialorder %v4488, 8.507059e+37
    %v4490 = vand.u32 %v4415, 2147483648
    %v4491 = vor.u32 1.1754944e-38, %v4490
    %v4492 = vsel %vm4489, %v4491, %v4487
    %v4493 = vmul.f32 1.0, %v4492
    %v4494 = vrcp.pop %v4416
    %v4495 = vmul.f32 %v4416, %v4494
    %v4496 = vsub.f32 1.0, %v4495
    %v4497 = vmul.f32 %v4494, %v4496
    %v4498 = vadd.f32 %v4494, %v4497
    %vm4499 = vweird.f32 %v4416
    %vm4500 = vweird.f32 %v4494
    %vm4501 = vmor %vm4499, %vm4500
    %v4502 = vsel %vm4501, %v4494, %v4498
    %v4503 = vand.u32 2147483647, %v4416
    %vm4504 = vcmp.eq.f32.partialorder %v4503, 8.507059e+37
    %v4505 = vand.u32 %v4416, 2147483648
    %v4506 = vor.u32 1.1754944e-38, %v4505
    %v4507 = vsel %vm4504, %v4506, %v4502
    %v4508 = vmul.f32 1.0, %v4507
    %v4509 = vrcp.pop %v4417
    %v4510 = vmul.f32 %v4417, %v4509
    %v4511 = vsub.f32 1.0, %v4510
    %v4512 = vmul.f32 %v4509, %v4511
    %v4513 = vadd.f32 %v4509, %v4512
    %vm4514 = vweird.f32 %v4417
    %vm4515 = vweird.f32 %v4509
    %vm4516 = vmor %vm4514, %vm4515
    %v4517 = vsel %vm4516, %v4509, %v4513
    %v4518 = vand.u32 2147483647, %v4417
    %vm4519 = vcmp.eq.f32.partialorder %v4518, 8.507059e+37
    %v4520 = vand.u32 %v4417, 2147483648
    %v4521 = vor.u32 1.1754944e-38, %v4520
    %v4522 = vsel %vm4519, %v4521, %v4517
    %v4523 = vmul.f32 1.0, %v4522
    %v4524 = vrcp.pop %v4418
    %v4525 = vmul.f32 %v4418, %v4524
    %v4526 = vsub.f32 1.0, %v4525
    %v4527 = vmul.f32 %v4524, %v4526
    %v4528 = vadd.f32 %v4524, %v4527
    %vm4529 = vweird.f32 %v4418
    %vm4530 = vweird.f32 %v4524
    %vm4531 = vmor %vm4529, %vm4530
    %v4532 = vsel %vm4531, %v4524, %v4528
    %v4533 = vand.u32 2147483647, %v4418
    %vm4534 = vcmp.eq.f32.partialorder %v4533, 8.507059e+37
    %v4535 = vand.u32 %v4418, 2147483648
    %v4536 = vor.u32 1.1754944e-38, %v4535
    %v4537 = vsel %vm4534, %v4536, %v4532
    %v4538 = vmul.f32 1.0, %v4537
    %v4539 = vmul.f32 %v4379, %v4433
    %v4540 = vmul.f32 %v4380, %v4448
    %v4541 = vmul.f32 %v4381, %v4463
    %v4542 = vmul.f32 %v4382, %v4478
    %v4543 = vmul.f32 %v4383, %v4493
    %v4544 = vmul.f32 %v4384, %v4508
    %v4545 = vmul.f32 %v4385, %v4523
    %v4546 = vmul.f32 %v4386, %v4538
    %4547 = vst [vmem:[#allocation9] sm:$0xff] %v4539
    %4548 = vst [vmem:[#allocation9 + $0x8] sm:$0xff] %v4541
    %4549 = vst [vmem:[#allocation9 + $0x10] sm:$0xff] %v4543
    %4550 = vst [vmem:[#allocation9 + $0x18] sm:$0xff] %v4545
    %s4551 = scalar_lea.vmem [#allocation9], 32
    %4552 = vst [vmem:[%s4551] sm:$0xff] %v4540
    %4553 = vst [vmem:[%s4551 + $0x8] sm:$0xff] %v4542
    %4554 = vst [vmem:[%s4551 + $0x10] sm:$0xff] %v4544
    %4555 = vst [vmem:[%s4551 + $0x18] sm:$0xff] %v4546
    // Predicated region
    $region50: #{cbam_resblock_forward.1} parent=1 // pred_check
      _
    $region51: #{cbam_resblock_forward.1} parent=1 // pred_check_branch
      %4557 = sbr.rel (0) target = $region53
    $region52: #{cbam_resblock_forward.1} parent=1 // pred_region
      %4559 = vsyncadd [#allocation5], 0
      %s4560 = sshll.u32 [#allocation9], 4
      %s4561 = int_to_ptr.vmem [resolvable:$true] %s4560
      %s4562 = sshll.u32 %s10, 4
      %s4563 = int_to_ptr.hbm [resolvable:$true] %s4562
      %4568 = dma.vmem_to_hbm [thread:$0]  %s4561, 1024, %s4563, [#allocation5], 128, 128, 8
    $region53: #{cbam_resblock_forward.1} parent=1 // pred_fallthru
      _
    // Predicated region
    $region54: #{cbam_resblock_forward.1} parent=1 // pred_check
      _
    $region55: #{cbam_resblock_forward.1} parent=1 // pred_check_branch
      %4570 = sbr.rel (0) target = $region57
    $region56: #{cbam_resblock_forward.1} parent=1 // pred_region
      %4572 = dma.done [#allocation5], 1024
    $region57: #{cbam_resblock_forward.1} parent=1 // pred_fallthru
      _
    %4573 = vsyncpa [#allocation5], 1
    %4574 = vsyncpa [#allocation6], 1
    %4575 = vsyncpa [#allocation8], 1

</llo_original>
